<compile_context>
chip_gen: v7x
topology: tpu7x:2x2x1
jax: 0.10.0
libtpu: 0.0.40
codegen_flags: <defaults>
</compile_context>

<pallas_src>
import math
import functools

import jax
import jax.numpy as jnp
from jax.experimental import pallas as pl
from jax.experimental.pallas import tpu as pltpu


# ---------------------------------------------------------------------------
# helpers
# ---------------------------------------------------------------------------
def _pick_tile_m(M):
    """Largest of {512,256,128} dividing M (enables an M grid); else whole M."""
    for t in (512, 256, 128):
        if M > t and M % t == 0:
            return t
    return M


_PARALLEL_1D = pltpu.CompilerParams(dimension_semantics=("parallel",))


def _ln(y, g, b):
    mu = jnp.mean(y, axis=-1, keepdims=True)
    var = jnp.mean(jnp.square(y - mu), axis=-1, keepdims=True)
    return (y - mu) * jax.lax.rsqrt(var + 1e-6) * g + b


# ---------------------------------------------------------------------------
# Pallas kernels
# ---------------------------------------------------------------------------
def _matmul_bias_kernel(x_ref, w_ref, b_ref, o_ref):
    x = x_ref[...].astype(jnp.bfloat16)
    o_ref[...] = (
        jnp.dot(x, w_ref[...], preferred_element_type=jnp.float32) + b_ref[...]
    )


def matmul_bias(x, w, b):
    """x:[M,K] f32 @ w:[K,N] bf16 + b:[N] f32 -> [M,N] f32, M-tiled parallel grid."""
    M, K = x.shape
    N = w.shape[1]
    tm = _pick_tile_m(M)
    return pl.pallas_call(
        _matmul_bias_kernel,
        out_shape=jax.ShapeDtypeStruct((M, N), jnp.float32),
        grid=(M // tm,),
        in_specs=[
            pl.BlockSpec((tm, K), lambda i: (i, 0)),
            pl.BlockSpec((K, N), lambda i: (0, 0)),
            pl.BlockSpec((1, N), lambda i: (0, 0)),
        ],
        out_specs=pl.BlockSpec((tm, N), lambda i: (i, 0)),
        compiler_params=_PARALLEL_1D,
    )(x, w, b.reshape(1, N))


def _proj_add_ln_kernel(x_ref, w_ref, b_ref, r_ref, g_ref, bt_ref, o_ref):
    # y = LN(x @ w + b + residual)    (matmul in bf16, epilogue in f32)
    x = x_ref[...].astype(jnp.bfloat16)
    y = jnp.dot(x, w_ref[...], preferred_element_type=jnp.float32) + b_ref[...]
    y = y + r_ref[...]
    o_ref[...] = _ln(y, g_ref[...], bt_ref[...])


def proj_add_layernorm(x, w, b, residual, gamma, beta):
    """LN(x @ w + b + residual); fused projection epilogue."""
    M, K = x.shape
    D = w.shape[1]
    tm = _pick_tile_m(M)
    return pl.pallas_call(
        _proj_add_ln_kernel,
        out_shape=jax.ShapeDtypeStruct((M, D), jnp.float32),
        grid=(M // tm,),
        in_specs=[
            pl.BlockSpec((tm, K), lambda i: (i, 0)),
            pl.BlockSpec((K, D), lambda i: (0, 0)),
            pl.BlockSpec((1, D), lambda i: (0, 0)),
            pl.BlockSpec((tm, D), lambda i: (i, 0)),
            pl.BlockSpec((1, D), lambda i: (0, 0)),
            pl.BlockSpec((1, D), lambda i: (0, 0)),
        ],
        out_specs=pl.BlockSpec((tm, D), lambda i: (i, 0)),
        compiler_params=_PARALLEL_1D,
    )(x, w, b.reshape(1, D), residual, gamma.reshape(1, D), beta.reshape(1, D))


def _ffn_add_ln_kernel(x_ref, w1_ref, b1_ref, w2_ref, b2_ref, g_ref, bt_ref, o_ref):
    xf = x_ref[...]                                   # f32 residual
    h = (
        jnp.dot(xf.astype(jnp.bfloat16), w1_ref[...],
                preferred_element_type=jnp.float32)
        + b1_ref[...]
    )
    h = jnp.maximum(h, 0.0)
    y = (
        jnp.dot(h.astype(jnp.bfloat16), w2_ref[...],
                preferred_element_type=jnp.float32)
        + b2_ref[...]
    )
    y = y + xf
    o_ref[...] = _ln(y, g_ref[...], bt_ref[...])


def ffn_add_layernorm(x, w1, b1, w2, b2, gamma, beta):
    """LN(relu(x@w1+b1)@w2 + b2 + x); fully fused position-wise FFN block."""
    M, D = x.shape
    F = w1.shape[1]
    tm = _pick_tile_m(M)
    return pl.pallas_call(
        _ffn_add_ln_kernel,
        out_shape=jax.ShapeDtypeStruct((M, D), jnp.float32),
        grid=(M // tm,),
        in_specs=[
            pl.BlockSpec((tm, D), lambda i: (i, 0)),
            pl.BlockSpec((D, F), lambda i: (0, 0)),
            pl.BlockSpec((1, F), lambda i: (0, 0)),
            pl.BlockSpec((F, D), lambda i: (0, 0)),
            pl.BlockSpec((1, D), lambda i: (0, 0)),
            pl.BlockSpec((1, D), lambda i: (0, 0)),
            pl.BlockSpec((1, D), lambda i: (0, 0)),
        ],
        out_specs=pl.BlockSpec((tm, D), lambda i: (i, 0)),
        compiler_params=_PARALLEL_1D,
    )(x, w1, b1.reshape(1, F), w2, b2.reshape(1, D),
      gamma.reshape(1, D), beta.reshape(1, D))


def _emb_add_ln_kernel(x_ref, r_ref, g_ref, b_ref, o_ref, *, scale):
    y = x_ref[...] * scale + r_ref[...]
    o_ref[...] = _ln(y, g_ref[...], b_ref[...])


def emb_add_layernorm(x, residual, gamma, beta, *, scale=1.0):
    """LayerNorm(scale*x + residual) — embedding + positional-encoding stage."""
    M, D = x.shape
    tm = _pick_tile_m(M)
    return pl.pallas_call(
        functools.partial(_emb_add_ln_kernel, scale=scale),
        out_shape=jax.ShapeDtypeStruct((M, D), jnp.float32),
        grid=(M // tm,),
        in_specs=[
            pl.BlockSpec((tm, D), lambda i: (i, 0)),
            pl.BlockSpec((tm, D), lambda i: (i, 0)),
            pl.BlockSpec((1, D), lambda i: (0, 0)),
            pl.BlockSpec((1, D), lambda i: (0, 0)),
        ],
        out_specs=pl.BlockSpec((tm, D), lambda i: (i, 0)),
        compiler_params=_PARALLEL_1D,
    )(x, residual, gamma.reshape(1, D), beta.reshape(1, D))


# --- attention: grid over B only, all heads handled inside the kernel ---------
def _mha_core(q_all, k_all, v_all, mask, o_ref, *, n_head, d_k, d_v, scale):
    # q_all:[Sq,H*dk] k_all:[Sk,H*dk] v_all:[Sk,H*dv] mask:[Sq,Sk] additive
    q_all = q_all * scale                              # scale the small tensor
    outs = []
    for h in range(n_head):
        q = q_all[:, h * d_k:(h + 1) * d_k].astype(jnp.bfloat16)
        k = k_all[:, h * d_k:(h + 1) * d_k].astype(jnp.bfloat16)
        v = v_all[:, h * d_v:(h + 1) * d_v].astype(jnp.bfloat16)
        s = jnp.dot(q, k.T, preferred_element_type=jnp.float32) + mask
        s = s - jnp.max(s, axis=-1, keepdims=True)
        p = jnp.exp(s)
        p = p * pl.reciprocal(jnp.sum(p, axis=-1, keepdims=True), approx=True)
        outs.append(
            jnp.dot(p.astype(jnp.bfloat16), v, preferred_element_type=jnp.float32)
        )
    o_ref[0] = jnp.concatenate(outs, axis=-1)          # one lane-dense store


def _self_attn_kernel(qkv_ref, m_ref, o_ref, *, n_head, d_k, d_v, scale):
    hq = n_head * d_k
    qkv = qkv_ref[0]                                   # [Sq, 2*hq + hv]
    _mha_core(qkv[:, :hq], qkv[:, hq:2 * hq], qkv[:, 2 * hq:], m_ref[0], o_ref,
              n_head=n_head, d_k=d_k, d_v=d_v, scale=scale)


def _cross_attn_kernel(q_ref, kv_ref, m_ref, o_ref, *, n_head, d_k, d_v, scale):
    hq = n_head * d_k
    kv = kv_ref[0]                                     # [Sk, hq + hv]
    _mha_core(q_ref[0], kv[:, :hq], kv[:, hq:], m_ref[0], o_ref,
              n_head=n_head, d_k=d_k, d_v=d_v, scale=scale)


def self_attention(qkv, mask_bias, *, n_head, d_k, d_v):
    """qkv:[B,Sq,2*H*dk+H*dv], mask_bias:[B,Sq,Sq] additive -> [B,Sq,H*dv]."""
    B, Sq, C = qkv.shape
    hv = n_head * d_v
    kernel = functools.partial(_self_attn_kernel, n_head=n_head, d_k=d_k,
                               d_v=d_v, scale=1.0 / math.sqrt(d_k))
    return pl.pallas_call(
        kernel,
        out_shape=jax.ShapeDtypeStruct((B, Sq, hv), jnp.float32),
        grid=(B,),
        in_specs=[
            pl.BlockSpec((1, Sq, C), lambda b: (b, 0, 0)),
            pl.BlockSpec((1, Sq, Sq), lambda b: (b, 0, 0)),
        ],
        out_specs=pl.BlockSpec((1, Sq, hv), lambda b: (b, 0, 0)),
        compiler_params=_PARALLEL_1D,
    )(qkv, mask_bias)


def cross_attention(q, kv, mask_bias, *, n_head, d_k, d_v):
    """q:[B,Sq,H*dk], kv:[B,Sk,H*dk+H*dv], mask:[B,Sq,Sk] -> [B,Sq,H*dv]."""
    B, Sq, Cq = q.shape
    Sk, Ckv = kv.shape[1], kv.shape[2]
    hv = n_head * d_v
    kernel = functools.partial(_cross_attn_kernel, n_head=n_head, d_k=d_k,
                               d_v=d_v, scale=1.0 / math.sqrt(d_k))
    return pl.pallas_call(
        kernel,
        out_shape=jax.ShapeDtypeStruct((B, Sq, hv), jnp.float32),
        grid=(B,),
        in_specs=[
            pl.BlockSpec((1, Sq, Cq), lambda b: (b, 0, 0)),
            pl.BlockSpec((1, Sk, Ckv), lambda b: (b, 0, 0)),
            pl.BlockSpec((1, Sq, Sk), lambda b: (b, 0, 0)),
        ],
        out_specs=pl.BlockSpec((1, Sq, hv), lambda b: (b, 0, 0)),
        compiler_params=_PARALLEL_1D,
    )(q, kv, mask_bias)


# ---------------------------------------------------------------------------
# Decoder (wrapper glue around the Pallas kernels)
# ---------------------------------------------------------------------------
def decoder_layer(x, enc_o, trg_bias, src_bias, p, *, n_head, d_k, d_v):
    B, S, D = x.shape
    Sk = enc_o.shape[1]
    x2 = x.reshape(B * S, D)

    # --- self attention (fused QKV projection, fused out-proj + residual + LN)
    sp = p["self_attn"]
    qkv = matmul_bias(x2, sp["w_qkv"], sp["b_qkv"]).reshape(B, S, -1)
    ao = self_attention(qkv, trg_bias, n_head=n_head, d_k=d_k, d_v=d_v)
    x2 = proj_add_layernorm(ao.reshape(B * S, -1), sp["wo"], sp["bo"], x2,
                            sp["ln_g"], sp["ln_b"])

    # --- cross attention (fused K/V projection from encoder output)
    cp = p["cross_attn"]
    q = matmul_bias(x2, cp["wq"], cp["bq"]).reshape(B, S, -1)
    kv = matmul_bias(enc_o.reshape(B * Sk, D), cp["w_kv"], cp["b_kv"]
                     ).reshape(B, Sk, -1)
    ao = cross_attention(q, kv, src_bias, n_head=n_head, d_k=d_k, d_v=d_v)
    x2 = proj_add_layernorm(ao.reshape(B * S, -1), cp["wo"], cp["bo"], x2,
                            cp["ln_g"], cp["ln_b"])

    # --- position-wise FFN (fully fused with residual + LN)
    fp = p["ffn"]
    x2 = ffn_add_layernorm(x2, fp["w1"], fp["b1"], fp["w2"], fp["b2"],
                           fp["ln_g"], fp["ln_b"])
    return x2.reshape(B, S, D)


def decoder_forward(params, trg_seq, trg_mask, enc_o, src_mask, *,
                    d_model, n_head, d_k, d_v, scale_emb=False):
    # trg_seq: [S_trg, B] int32 (seq-first, matches PositionalEncoding docstring)
    S, B = trg_seq.shape
    ids = trg_seq.T                                             # [B, S]
    # TODO(synk): embedding gather stays an XLA op (no clean tiny-Pallas gather).
    dec_i = jnp.take(params["emb"], ids, axis=0)                # [B, S, E]
    pe = jnp.broadcast_to(params["pe"][:S, 0][None, :, :], (B, S, d_model))
    emb_scale = float(d_model) ** 0.5 if scale_emb else 1.0
    # dropout layers -> identity at inference; LN(scale*emb + pe) fused kernel
    x = emb_add_layernorm(dec_i.reshape(B * S, d_model),
                          pe.reshape(B * S, d_model),
                          params["ln_g"], params["ln_b"], scale=emb_scale)
    x = x.reshape(B, S, d_model)

    # precompute additive masks once (not per head, not per layer)
    trg_bias = jnp.where(trg_mask > 0, 0.0, -1e9).astype(jnp.float32)
    src_bias = jnp.where(src_mask > 0, 0.0, -1e9).astype(jnp.float32)

    for lp in params["layers"]:
        x = decoder_layer(x, enc_o, trg_bias, src_bias, lp,
                          n_head=n_head, d_k=d_k, d_v=d_v)
    return x                                                    # [B, S_trg, D]


# ---------------------------------------------------------------------------
# Parameter initialization (torch-like layout) + kernel-ready preparation
# ---------------------------------------------------------------------------
def make_positional_encoding(max_len, d_emb):
    position = jnp.arange(max_len, dtype=jnp.float32)[:, None]
    div_term = jnp.exp(
        jnp.arange(0, d_emb, 2, dtype=jnp.float32) * (-math.log(10000.0) / d_emb)
    )
    pe = jnp.zeros((max_len, 1, d_emb), jnp.float32)
    pe = pe.at[:, 0, 0::2].set(jnp.sin(position * div_term))
    pe = pe.at[:, 0, 1::2].set(jnp.cos(position * div_term))
    return pe


def _init_mha(key, d_model, n_head, d_k, d_v):
    ks = jax.random.split(key, 4)
    s = 0.02
    return {
        "wq": jax.random.normal(ks[0], (d_model, n_head * d_k), jnp.float32) * s,
        "bq": jnp.zeros((n_head * d_k,), jnp.float32),
        "wk": jax.random.normal(ks[1], (d_model, n_head * d_k), jnp.float32) * s,
        "bk": jnp.zeros((n_head * d_k,), jnp.float32),
        "wv": jax.random.normal(ks[2], (d_model, n_head * d_v), jnp.float32) * s,
        "bv": jnp.zeros((n_head * d_v,), jnp.float32),
        "wo": jax.random.normal(ks[3], (n_head * d_v, d_model), jnp.float32) * s,
        "bo": jnp.zeros((d_model,), jnp.float32),
        "ln_g": jnp.ones((d_model,), jnp.float32),
        "ln_b": jnp.zeros((d_model,), jnp.float32),
    }


def _init_ffn(key, d_model, d_ffn):
    k1, k2 = jax.random.split(key)
    s = 0.02
    return {
        "w1": jax.random.normal(k1, (d_model, d_ffn), jnp.float32) * s,
        "b1": jnp.zeros((d_ffn,), jnp.float32),
        "w2": jax.random.normal(k2, (d_ffn, d_model), jnp.float32) * s,
        "b2": jnp.zeros((d_model,), jnp.float32),
        "ln_g": jnp.ones((d_model,), jnp.float32),
        "ln_b": jnp.zeros((d_model,), jnp.float32),
    }


def init_decoder_params(key, *, vocab, d_emb, n_layers, n_head, d_k, d_v,
                        d_model, d_ffn, pad_index, max_len):
    keys = jax.random.split(key, 1 + 3 * n_layers)
    emb = jax.random.normal(keys[0], (vocab, d_emb), jnp.float32) * 0.02
    emb = emb.at[pad_index].set(0.0)    # nn.Embedding padding_idx row zeroed
    layers = []
    for i in range(n_layers):
        layers.append({
            "self_attn": _init_mha(keys[1 + 3 * i], d_model, n_head, d_k, d_v),
            "cross_attn": _init_mha(keys[2 + 3 * i], d_model, n_head, d_k, d_v),
            "ffn": _init_ffn(keys[3 + 3 * i], d_model, d_ffn),
        })
    return {
        "emb": emb,
        "pe": make_positional_encoding(max_len, d_emb),
        "ln_g": jnp.ones((d_model,), jnp.float32),
        "ln_b": jnp.zeros((d_model,), jnp.float32),
        "layers": layers,
    }


def prepare_params(params):
    """Fuse QKV / KV weights and pre-cast matmul weights to bf16 (done once)."""
    def prep_mha(p):
        return {
            "w_qkv": jnp.concatenate([p["wq"], p["wk"], p["wv"]], axis=1
                                     ).astype(jnp.bfloat16),
            "b_qkv": jnp.concatenate([p["bq"], p["bk"], p["bv"]]),
            "wq": p["wq"].astype(jnp.bfloat16),
            "bq": p["bq"],
            "w_kv": jnp.concatenate([p["wk"], p["wv"]], axis=1
                                    ).astype(jnp.bfloat16),
            "b_kv": jnp.concatenate([p["bk"], p["bv"]]),
            "wo": p["wo"].astype(jnp.bfloat16),
            "bo": p["bo"],
            "ln_g": p["ln_g"], "ln_b": p["ln_b"],
        }

    def prep_ffn(p):
        return {
            "w1": p["w1"].astype(jnp.bfloat16), "b1": p["b1"],
            "w2": p["w2"].astype(jnp.bfloat16), "b2": p["b2"],
            "ln_g": p["ln_g"], "ln_b": p["ln_b"],
        }

    return {
        "emb": params["emb"], "pe": params["pe"],
        "ln_g": params["ln_g"], "ln_b": params["ln_b"],
        "layers": [{"self_attn": prep_mha(l["self_attn"]),
                    "cross_attn": prep_mha(l["cross_attn"]),
                    "ffn": prep_ffn(l["ffn"])} for l in params["layers"]],
    }


# ---------------------------------------------------------------------------
if __name__ == "__main__":
    B, S_trg, S_src = 2, 8, 8
    vocab = 50
    d_model = d_emb = 32
    n_layers, n_head, d_k, d_v, d_ffn = 2, 2, 16, 16, 64
    pad_index, max_len = 0, 64

    root = jax.random.PRNGKey(0)
    k_params, k_seq, k_enc = jax.random.split(root, 3)

    raw_params = init_decoder_params(
        k_params, vocab=vocab, d_emb=d_emb, n_layers=n_layers, n_head=n_head,
        d_k=d_k, d_v=d_v, d_model=d_model, d_ffn=d_ffn,
        pad_index=pad_index, max_len=max_len)
    params = prepare_params(raw_params)

    # trg_seq: [S_trg, B] (seq-first); enc_o: [B, S_src, d_model]
    trg_seq = jax.random.randint(k_seq, (S_trg, B), 1, vocab).astype(jnp.int32)
    enc_o = jax.random.normal(k_enc, (B, S_src, d_model), jnp.float32)

    # trg_mask: causal [B, S_trg, S_trg]; src_mask: key-padding [B, S_trg, S_src]
    causal = jnp.tril(jnp.ones((S_trg, S_trg), jnp.float32))
    trg_mask = jnp.broadcast_to(causal, (B, S_trg, S_trg))
    src_lens = jnp.array([S_src, S_src - 2])
    src_valid = (jnp.arange(S_src)[None, :] < src_lens[:, None]).astype(jnp.float32)
    src_mask = jnp.broadcast_to(src_valid[:, None, :], (B, S_trg, S_src))

    fwd = jax.jit(functools.partial(decoder_forward, d_model=d_model,
                                    n_head=n_head, d_k=d_k, d_v=d_v,
                                    scale_emb=False))
    out = fwd(params, trg_seq, trg_mask, enc_o, src_mask)
    out = jax.block_until_ready(out)
    assert out.shape == (B, S_trg, d_model), out.shape
    assert bool(jnp.all(jnp.isfinite(out)))
    print("KERNEL_OK")
</pallas_src>

<mosaic_0001>
module attributes {stable_mosaic.version = 11 : i64} {
  func.func @_matmul_bias_kernel(%arg0: i32, %arg1: memref<16x32xf32, #tpu.memory_space<vmem>>, %arg2: memref<32x96xbf16, #tpu.memory_space<vmem>>, %arg3: memref<1x96xf32, #tpu.memory_space<vmem>>, %arg4: memref<16x96xf32, #tpu.memory_space<vmem>>) attributes {dimension_semantics = [#tpu.dimension_semantics<parallel>], iteration_bounds = array<i64: 1>, scalar_prefetch = 0 : i64, scratch_operands = 0 : i64, tpu.core_type = #tpu.core_type<tc>, window_params = [{transform_indices = @transform_0, window_bounds = array<i64: 16, 32>}, {pipeline_mode = #tpu.pipeline_mode<synchronous>, transform_indices = @transform_1, window_bounds = array<i64: 32, 96>}, {pipeline_mode = #tpu.pipeline_mode<synchronous>, transform_indices = @transform_2, window_bounds = array<i64: 1, 96>}, {transform_indices = @transform_3, window_bounds = array<i64: 16, 96>}]} {
    %c0 = arith.constant 0 : index
    %c0_0 = arith.constant 0 : index
    %0 = vector.load %arg1[%c0, %c0_0] : memref<16x32xf32, #tpu.memory_space<vmem>>, vector<16x32xf32>
    %1 = arith.truncf %0 : vector<16x32xf32> to vector<16x32xbf16>
    %c0_1 = arith.constant 0 : index
    %c0_2 = arith.constant 0 : index
    %2 = vector.load %arg2[%c0_1, %c0_2] : memref<32x96xbf16, #tpu.memory_space<vmem>>, vector<32x96xbf16>
    %cst = arith.constant dense<0.000000e+00> : vector<16x96xf32>
    %3 = tpu.matmul %1, %2, %cst {dimension_numbers = #tpu.dot_dimension_numbers<[1], [0], [0], [1], [0, 0, 1, 1], [], []>} : vector<16x32xbf16>, vector<32x96xbf16>, vector<16x96xf32> -> vector<16x96xf32>
    %c0_3 = arith.constant 0 : index
    %c0_4 = arith.constant 0 : index
    %4 = vector.load %arg3[%c0_3, %c0_4] : memref<1x96xf32, #tpu.memory_space<vmem>>, vector<1x96xf32>
    %5 = vector.broadcast %4 : vector<1x96xf32> to vector<16x96xf32>
    %6 = arith.addf %3, %5 : vector<16x96xf32>
    %c0_5 = arith.constant 0 : index
    %c0_6 = arith.constant 0 : index
    %7 = vector.load %arg4[%c0_5, %c0_6] : memref<16x96xf32, #tpu.memory_space<vmem>>, vector<16x96xf32>
    tpu.vector_store %arg4[%c0_5, %c0_6], %6 {strides = array<i32>} : memref<16x96xf32, #tpu.memory_space<vmem>>, vector<16x96xf32>,
    return
  }
  func.func @transform_0(%arg0: i32) -> (i32, i32) {
    %c0_i32 = arith.constant 0 : i32
    %c0_i32_0 = arith.constant 0 : i32
    return %arg0, %c0_i32 : i32, i32
  }
  func.func @transform_1(%arg0: i32) -> (i32, i32) {
    %c0_i32 = arith.constant 0 : i32
    %c0_i32_0 = arith.constant 0 : i32
    %c0_i32_1 = arith.constant 0 : i32
    return %c0_i32, %c0_i32_0 : i32, i32
  }
  func.func @transform_2(%arg0: i32) -> (i32, i32) {
    %c0_i32 = arith.constant 0 : i32
    %c0_i32_0 = arith.constant 0 : i32
    %c0_i32_1 = arith.constant 0 : i32
    return %c0_i32, %c0_i32_0 : i32, i32
  }
  func.func @transform_3(%arg0: i32) -> (i32, i32) {
    %c0_i32 = arith.constant 0 : i32
    %c0_i32_0 = arith.constant 0 : i32
    return %arg0, %c0_i32 : i32, i32
  }
}

module attributes {stable_mosaic.version = 11 : i64} {
  func.func @_emb_add_ln_kernel(%arg0: i32, %arg1: memref<16x32xf32, #tpu.memory_space<vmem>>, %arg2: memref<16x32xf32, #tpu.memory_space<vmem>>, %arg3: memref<1x32xf32, #tpu.memory_space<vmem>>, %arg4: memref<1x32xf32, #tpu.memory_space<vmem>>, %arg5: memref<16x32xf32, #tpu.memory_space<vmem>>) attributes {dimension_semantics = [#tpu.dimension_semantics<parallel>], iteration_bounds = array<i64: 1>, scalar_prefetch = 0 : i64, scratch_operands = 0 : i64, tpu.core_type = #tpu.core_type<tc>, window_params = [{transform_indices = @transform_0, window_bounds = array<i64: 16, 32>}, {transform_indices = @transform_1, window_bounds = array<i64: 16, 32>}, {pipeline_mode = #tpu.pipeline_mode<synchronous>, transform_indices = @transform_2, window_bounds = array<i64: 1, 32>}, {pipeline_mode = #tpu.pipeline_mode<synchronous>, transform_indices = @transform_3, window_bounds = array<i64: 1, 32>}, {transform_indices = @transform_4, window_bounds = array<i64: 16, 32>}]} {
    %c0 = arith.constant 0 : index
    %c0_0 = arith.constant 0 : index
    %0 = vector.load %arg1[%c0, %c0_0] : memref<16x32xf32, #tpu.memory_space<vmem>>, vector<16x32xf32>
    %cst = arith.constant 1.000000e+00 : f32
    %1 = vector.broadcast %cst : f32 to vector<16x32xf32>
    %2 = arith.mulf %0, %1 : vector<16x32xf32>
    %c0_1 = arith.constant 0 : index
    %c0_2 = arith.constant 0 : index
    %3 = vector.load %arg2[%c0_1, %c0_2] : memref<16x32xf32, #tpu.memory_space<vmem>>, vector<16x32xf32>
    %4 = arith.addf %2, %3 : vector<16x32xf32>
    %c0_3 = arith.constant 0 : index
    %c0_4 = arith.constant 0 : index
    %5 = vector.load %arg3[%c0_3, %c0_4] : memref<1x32xf32, #tpu.memory_space<vmem>>, vector<1x32xf32>
    %c0_5 = arith.constant 0 : index
    %c0_6 = arith.constant 0 : index
    %6 = vector.load %arg4[%c0_5, %c0_6] : memref<1x32xf32, #tpu.memory_space<vmem>>, vector<1x32xf32>
    %cst_7 = arith.constant dense<0.000000e+00> : vector<16xf32>
    %7 = vector.multi_reduction <add>, %4, %cst_7 [1] : vector<16x32xf32> to vector<16xf32>
    %8 = vector.shape_cast %7 : vector<16xf32> to vector<16x1xf32>
    %cst_8 = arith.constant 3.200000e+01 : f32
    %9 = vector.broadcast %cst_8 : f32 to vector<16x1xf32>
    %10 = arith.divf %8, %9 : vector<16x1xf32>
    %11 = vector.broadcast %10 : vector<16x1xf32> to vector<16x32xf32>
    %12 = arith.subf %4, %11 : vector<16x32xf32>
    %13 = arith.mulf %12, %12 : vector<16x32xf32>
    %cst_9 = arith.constant dense<0.000000e+00> : vector<16xf32>
    %14 = vector.multi_reduction <add>, %13, %cst_9 [1] : vector<16x32xf32> to vector<16xf32>
    %15 = vector.shape_cast %14 : vector<16xf32> to vector<16x1xf32>
    %cst_10 = arith.constant 3.200000e+01 : f32
    %16 = vector.broadcast %cst_10 : f32 to vector<16x1xf32>
    %17 = arith.divf %15, %16 : vector<16x1xf32>
    %18 = vector.broadcast %10 : vector<16x1xf32> to vector<16x32xf32>
    %19 = arith.subf %4, %18 : vector<16x32xf32>
    %cst_11 = arith.constant 9.99999997E-7 : f32
    %20 = vector.broadcast %cst_11 : f32 to vector<16x1xf32>
    %21 = arith.addf %17, %20 : vector<16x1xf32>
    %22 = math.rsqrt %21 : vector<16x1xf32>
    %23 = vector.broadcast %22 : vector<16x1xf32> to vector<16x32xf32>
    %24 = arith.mulf %19, %23 : vector<16x32xf32>
    %25 = vector.broadcast %5 : vector<1x32xf32> to vector<16x32xf32>
    %26 = arith.mulf %24, %25 : vector<16x32xf32>
    %27 = vector.broadcast %6 : vector<1x32xf32> to vector<16x32xf32>
    %28 = arith.addf %26, %27 : vector<16x32xf32>
    %c0_12 = arith.constant 0 : index
    %c0_13 = arith.constant 0 : index
    %29 = vector.load %arg5[%c0_12, %c0_13] : memref<16x32xf32, #tpu.memory_space<vmem>>, vector<16x32xf32>
    tpu.vector_store %arg5[%c0_12, %c0_13], %28 {strides = array<i32>} : memref<16x32xf32, #tpu.memory_space<vmem>>, vector<16x32xf32>,
    return
  }
  func.func @transform_0(%arg0: i32) -> (i32, i32) {
    %c0_i32 = arith.constant 0 : i32
    %c0_i32_0 = arith.constant 0 : i32
    return %arg0, %c0_i32 : i32, i32
  }
  func.func @transform_1(%arg0: i32) -> (i32, i32) {
    %c0_i32 = arith.constant 0 : i32
    %c0_i32_0 = arith.constant 0 : i32
    return %arg0, %c0_i32 : i32, i32
  }
  func.func @transform_2(%arg0: i32) -> (i32, i32) {
    %c0_i32 = arith.constant 0 : i32
    %c0_i32_0 = arith.constant 0 : i32
    %c0_i32_1 = arith.constant 0 : i32
    return %c0_i32, %c0_i32_0 : i32, i32
  }
  func.func @transform_3(%arg0: i32) -> (i32, i32) {
    %c0_i32 = arith.constant 0 : i32
    %c0_i32_0 = arith.constant 0 : i32
    %c0_i32_1 = arith.constant 0 : i32
    return %c0_i32, %c0_i32_0 : i32, i32
  }
  func.func @transform_4(%arg0: i32) -> (i32, i32) {
    %c0_i32 = arith.constant 0 : i32
    %c0_i32_0 = arith.constant 0 : i32
    return %arg0, %c0_i32 : i32, i32
  }
}

module attributes {stable_mosaic.version = 11 : i64} {
  func.func @_self_attn_kernel(%arg0: i32, %arg1: memref<1x8x96xf32, #tpu.memory_space<vmem>>, %arg2: memref<1x8x8xf32, #tpu.memory_space<vmem>>, %arg3: memref<1x8x32xf32, #tpu.memory_space<vmem>>) attributes {dimension_semantics = [#tpu.dimension_semantics<parallel>], iteration_bounds = array<i64: 2>, scalar_prefetch = 0 : i64, scratch_operands = 0 : i64, tpu.core_type = #tpu.core_type<tc>, window_params = [{transform_indices = @transform_0, window_bounds = array<i64: 1, 8, 96>}, {transform_indices = @transform_1, window_bounds = array<i64: 1, 8, 8>}, {transform_indices = @transform_2, window_bounds = array<i64: 1, 8, 32>}]} {
    %c0 = arith.constant 0 : index
    %c0_0 = arith.constant 0 : index
    %c0_1 = arith.constant 0 : index
    %0 = vector.load %arg1[%c0, %c0_0, %c0_1] : memref<1x8x96xf32, #tpu.memory_space<vmem>>, vector<1x8x96xf32>
    %1 = vector.shape_cast %0 : vector<1x8x96xf32> to vector<8x96xf32>
    %2 = vector.extract_strided_slice %1 {offsets = [0, 0], sizes = [8, 32], strides = [1, 1]} : vector<8x96xf32> to vector<8x32xf32>
    %3 = vector.extract_strided_slice %1 {offsets = [0, 32], sizes = [8, 32], strides = [1, 1]} : vector<8x96xf32> to vector<8x32xf32>
    %4 = vector.extract_strided_slice %1 {offsets = [0, 64], sizes = [8, 32], strides = [1, 1]} : vector<8x96xf32> to vector<8x32xf32>
    %c0_2 = arith.constant 0 : index
    %c0_3 = arith.constant 0 : index
    %c0_4 = arith.constant 0 : index
    %5 = vector.load %arg2[%c0_2, %c0_3, %c0_4] : memref<1x8x8xf32, #tpu.memory_space<vmem>>, vector<1x8x8xf32>
    %6 = vector.shape_cast %5 : vector<1x8x8xf32> to vector<8x8xf32>
    %cst = arith.constant 2.500000e-01 : f32
    %7 = vector.broadcast %cst : f32 to vector<8x32xf32>
    %8 = arith.mulf %2, %7 : vector<8x32xf32>
    %9 = vector.extract_strided_slice %8 {offsets = [0, 0], sizes = [8, 16], strides = [1, 1]} : vector<8x32xf32> to vector<8x16xf32>
    %10 = arith.truncf %9 : vector<8x16xf32> to vector<8x16xbf16>
    %11 = vector.extract_strided_slice %3 {offsets = [0, 0], sizes = [8, 16], strides = [1, 1]} : vector<8x32xf32> to vector<8x16xf32>
    %12 = arith.truncf %11 : vector<8x16xf32> to vector<8x16xbf16>
    %13 = vector.extract_strided_slice %4 {offsets = [0, 0], sizes = [8, 16], strides = [1, 1]} : vector<8x32xf32> to vector<8x16xf32>
    %14 = arith.truncf %13 : vector<8x16xf32> to vector<8x16xbf16>
    %15 = tpu.transpose %12, [1, 0] : vector<8x16xbf16> -> vector<16x8xbf16>
    %cst_5 = arith.constant dense<0.000000e+00> : vector<8x8xf32>
    %16 = tpu.matmul %10, %15, %cst_5 {dimension_numbers = #tpu.dot_dimension_numbers<[1], [0], [0], [1], [0, 0, 1, 1], [], []>} : vector<8x16xbf16>, vector<16x8xbf16>, vector<8x8xf32> -> vector<8x8xf32>
    %17 = arith.addf %16, %6 : vector<8x8xf32>
    %cst_6 = arith.constant dense<0xFF800000> : vector<8xf32>
    %18 = vector.multi_reduction <maximumf>, %17, %cst_6 [1] : vector<8x8xf32> to vector<8xf32>
    %19 = vector.shape_cast %18 : vector<8xf32> to vector<8x1xf32>
    %20 = vector.broadcast %19 : vector<8x1xf32> to vector<8x8xf32>
    %21 = arith.subf %17, %20 : vector<8x8xf32>
    %22 = math.exp %21 : vector<8x8xf32>
    %cst_7 = arith.constant dense<0.000000e+00> : vector<8xf32>
    %23 = vector.multi_reduction <add>, %22, %cst_7 [1] : vector<8x8xf32> to vector<8xf32>
    %24 = vector.shape_cast %23 : vector<8xf32> to vector<8x1xf32>
    %25 = tpu.reciprocal %24 {approx = true} : vector<8x1xf32> -> vector<8x1xf32>
    %26 = vector.broadcast %25 : vector<8x1xf32> to vector<8x8xf32>
    %27 = arith.mulf %22, %26 : vector<8x8xf32>
    %28 = arith.truncf %27 : vector<8x8xf32> to vector<8x8xbf16>
    %cst_8 = arith.constant dense<0.000000e+00> : vector<8x16xf32>
    %29 = tpu.matmul %28, %14, %cst_8 {dimension_numbers = #tpu.dot_dimension_numbers<[1], [0], [0], [1], [0, 0, 1, 1], [], []>} : vector<8x8xbf16>, vector<8x16xbf16>, vector<8x16xf32> -> vector<8x16xf32>
    %30 = vector.extract_strided_slice %8 {offsets = [0, 16], sizes = [8, 16], strides = [1, 1]} : vector<8x32xf32> to vector<8x16xf32>
    %31 = arith.truncf %30 : vector<8x16xf32> to vector<8x16xbf16>
    %32 = vector.extract_strided_slice %3 {offsets = [0, 16], sizes = [8, 16], strides = [1, 1]} : vector<8x32xf32> to vector<8x16xf32>
    %33 = arith.truncf %32 : vector<8x16xf32> to vector<8x16xbf16>
    %34 = vector.extract_strided_slice %4 {offsets = [0, 16], sizes = [8, 16], strides = [1, 1]} : vector<8x32xf32> to vector<8x16xf32>
    %35 = arith.truncf %34 : vector<8x16xf32> to vector<8x16xbf16>
    %36 = tpu.transpose %33, [1, 0] : vector<8x16xbf16> -> vector<16x8xbf16>
    %cst_9 = arith.constant dense<0.000000e+00> : vector<8x8xf32>
    %37 = tpu.matmul %31, %36, %cst_9 {dimension_numbers = #tpu.dot_dimension_numbers<[1], [0], [0], [1], [0, 0, 1, 1], [], []>} : vector<8x16xbf16>, vector<16x8xbf16>, vector<8x8xf32> -> vector<8x8xf32>
    %38 = arith.addf %37, %6 : vector<8x8xf32>
    %cst_10 = arith.constant dense<0xFF800000> : vector<8xf32>
    %39 = vector.multi_reduction <maximumf>, %38, %cst_10 [1] : vector<8x8xf32> to vector<8xf32>
    %40 = vector.shape_cast %39 : vector<8xf32> to vector<8x1xf32>
    %41 = vector.broadcast %40 : vector<8x1xf32> to vector<8x8xf32>
    %42 = arith.subf %38, %41 : vector<8x8xf32>
    %43 = math.exp %42 : vector<8x8xf32>
    %cst_11 = arith.constant dense<0.000000e+00> : vector<8xf32>
    %44 = vector.multi_reduction <add>, %43, %cst_11 [1] : vector<8x8xf32> to vector<8xf32>
    %45 = vector.shape_cast %44 : vector<8xf32> to vector<8x1xf32>
    %46 = tpu.reciprocal %45 {approx = true} : vector<8x1xf32> -> vector<8x1xf32>
    %47 = vector.broadcast %46 : vector<8x1xf32> to vector<8x8xf32>
    %48 = arith.mulf %43, %47 : vector<8x8xf32>
    %49 = arith.truncf %48 : vector<8x8xf32> to vector<8x8xbf16>
    %cst_12 = arith.constant dense<0.000000e+00> : vector<8x16xf32>
    %50 = tpu.matmul %49, %35, %cst_12 {dimension_numbers = #tpu.dot_dimension_numbers<[1], [0], [0], [1], [0, 0, 1, 1], [], []>} : vector<8x8xbf16>, vector<8x16xbf16>, vector<8x16xf32> -> vector<8x16xf32>
    %51 = tpu.concatenate %29, %50 in 1 : vector<8x16xf32>, vector<8x16xf32> -> vector<8x32xf32>
    %c0_13 = arith.constant 0 : index
    %c0_14 = arith.constant 0 : index
    %c0_15 = arith.constant 0 : index
    %52 = vector.load %arg3[%c0_13, %c0_14, %c0_15] : memref<1x8x32xf32, #tpu.memory_space<vmem>>, vector<1x8x32xf32>
    %53 = vector.shape_cast %52 : vector<1x8x32xf32> to vector<8x32xf32>
    %54 = vector.shape_cast %51 : vector<8x32xf32> to vector<1x8x32xf32>
    tpu.vector_store %arg3[%c0_13, %c0_14, %c0_15], %54 {strides = array<i32>} : memref<1x8x32xf32, #tpu.memory_space<vmem>>, vector<1x8x32xf32>,
    return
  }
  func.func @transform_0(%arg0: i32) -> (i32, i32, i32) {
    %c0_i32 = arith.constant 0 : i32
    %c0_i32_0 = arith.constant 0 : i32
    %c0_i32_1 = arith.constant 0 : i32
    return %arg0, %c0_i32, %c0_i32_0 : i32, i32, i32
  }
  func.func @transform_1(%arg0: i32) -> (i32, i32, i32) {
    %c0_i32 = arith.constant 0 : i32
    %c0_i32_0 = arith.constant 0 : i32
    %c0_i32_1 = arith.constant 0 : i32
    return %arg0, %c0_i32, %c0_i32_0 : i32, i32, i32
  }
  func.func @transform_2(%arg0: i32) -> (i32, i32, i32) {
    %c0_i32 = arith.constant 0 : i32
    %c0_i32_0 = arith.constant 0 : i32
    %c0_i32_1 = arith.constant 0 : i32
    return %arg0, %c0_i32, %c0_i32_0 : i32, i32, i32
  }
}

module attributes {stable_mosaic.version = 11 : i64} {
  func.func @_proj_add_ln_kernel(%arg0: i32, %arg1: memref<16x32xf32, #tpu.memory_space<vmem>>, %arg2: memref<32x32xbf16, #tpu.memory_space<vmem>>, %arg3: memref<1x32xf32, #tpu.memory_space<vmem>>, %arg4: memref<16x32xf32, #tpu.memory_space<vmem>>, %arg5: memref<1x32xf32, #tpu.memory_space<vmem>>, %arg6: memref<1x32xf32, #tpu.memory_space<vmem>>, %arg7: memref<16x32xf32, #tpu.memory_space<vmem>>) attributes {dimension_semantics = [#tpu.dimension_semantics<parallel>], iteration_bounds = array<i64: 1>, scalar_prefetch = 0 : i64, scratch_operands = 0 : i64, tpu.core_type = #tpu.core_type<tc>, window_params = [{transform_indices = @transform_0, window_bounds = array<i64: 16, 32>}, {pipeline_mode = #tpu.pipeline_mode<synchronous>, transform_indices = @transform_1, window_bounds = array<i64: 32, 32>}, {pipeline_mode = #tpu.pipeline_mode<synchronous>, transform_indices = @transform_2, window_bounds = array<i64: 1, 32>}, {transform_indices = @transform_3, window_bounds = array<i64: 16, 32>}, {pipeline_mode = #tpu.pipeline_mode<synchronous>, transform_indices = @transform_4, window_bounds = array<i64: 1, 32>}, {pipeline_mode = #tpu.pipeline_mode<synchronous>, transform_indices = @transform_5, window_bounds = array<i64: 1, 32>}, {transform_indices = @transform_6, window_bounds = array<i64: 16, 32>}]} {
    %c0 = arith.constant 0 : index
    %c0_0 = arith.constant 0 : index
    %0 = vector.load %arg1[%c0, %c0_0] : memref<16x32xf32, #tpu.memory_space<vmem>>, vector<16x32xf32>
    %1 = arith.truncf %0 : vector<16x32xf32> to vector<16x32xbf16>
    %c0_1 = arith.constant 0 : index
    %c0_2 = arith.constant 0 : index
    %2 = vector.load %arg2[%c0_1, %c0_2] : memref<32x32xbf16, #tpu.memory_space<vmem>>, vector<32x32xbf16>
    %cst = arith.constant dense<0.000000e+00> : vector<16x32xf32>
    %3 = tpu.matmul %1, %2, %cst {dimension_numbers = #tpu.dot_dimension_numbers<[1], [0], [0], [1], [0, 0, 1, 1], [], []>} : vector<16x32xbf16>, vector<32x32xbf16>, vector<16x32xf32> -> vector<16x32xf32>
    %c0_3 = arith.constant 0 : index
    %c0_4 = arith.constant 0 : index
    %4 = vector.load %arg3[%c0_3, %c0_4] : memref<1x32xf32, #tpu.memory_space<vmem>>, vector<1x32xf32>
    %5 = vector.broadcast %4 : vector<1x32xf32> to vector<16x32xf32>
    %6 = arith.addf %3, %5 : vector<16x32xf32>
    %c0_5 = arith.constant 0 : index
    %c0_6 = arith.constant 0 : index
    %7 = vector.load %arg4[%c0_5, %c0_6] : memref<16x32xf32, #tpu.memory_space<vmem>>, vector<16x32xf32>
    %8 = arith.addf %6, %7 : vector<16x32xf32>
    %c0_7 = arith.constant 0 : index
    %c0_8 = arith.constant 0 : index
    %9 = vector.load %arg5[%c0_7, %c0_8] : memref<1x32xf32, #tpu.memory_space<vmem>>, vector<1x32xf32>
    %c0_9 = arith.constant 0 : index
    %c0_10 = arith.constant 0 : index
    %10 = vector.load %arg6[%c0_9, %c0_10] : memref<1x32xf32, #tpu.memory_space<vmem>>, vector<1x32xf32>
    %cst_11 = arith.constant dense<0.000000e+00> : vector<16xf32>
    %11 = vector.multi_reduction <add>, %8, %cst_11 [1] : vector<16x32xf32> to vector<16xf32>
    %12 = vector.shape_cast %11 : vector<16xf32> to vector<16x1xf32>
    %cst_12 = arith.constant 3.200000e+01 : f32
    %13 = vector.broadcast %cst_12 : f32 to vector<16x1xf32>
    %14 = arith.divf %12, %13 : vector<16x1xf32>
    %15 = vector.broadcast %14 : vector<16x1xf32> to vector<16x32xf32>
    %16 = arith.subf %8, %15 : vector<16x32xf32>
    %17 = arith.mulf %16, %16 : vector<16x32xf32>
    %cst_13 = arith.constant dense<0.000000e+00> : vector<16xf32>
    %18 = vector.multi_reduction <add>, %17, %cst_13 [1] : vector<16x32xf32> to vector<16xf32>
    %19 = vector.shape_cast %18 : vector<16xf32> to vector<16x1xf32>
    %cst_14 = arith.constant 3.200000e+01 : f32
    %20 = vector.broadcast %cst_14 : f32 to vector<16x1xf32>
    %21 = arith.divf %19, %20 : vector<16x1xf32>
    %22 = vector.broadcast %14 : vector<16x1xf32> to vector<16x32xf32>
    %23 = arith.subf %8, %22 : vector<16x32xf32>
    %cst_15 = arith.constant 9.99999997E-7 : f32
    %24 = vector.broadcast %cst_15 : f32 to vector<16x1xf32>
    %25 = arith.addf %21, %24 : vector<16x1xf32>
    %26 = math.rsqrt %25 : vector<16x1xf32>
    %27 = vector.broadcast %26 : vector<16x1xf32> to vector<16x32xf32>
    %28 = arith.mulf %23, %27 : vector<16x32xf32>
    %29 = vector.broadcast %9 : vector<1x32xf32> to vector<16x32xf32>
    %30 = arith.mulf %28, %29 : vector<16x32xf32>
    %31 = vector.broadcast %10 : vector<1x32xf32> to vector<16x32xf32>
    %32 = arith.addf %30, %31 : vector<16x32xf32>
    %c0_16 = arith.constant 0 : index
    %c0_17 = arith.constant 0 : index
    %33 = vector.load %arg7[%c0_16, %c0_17] : memref<16x32xf32, #tpu.memory_space<vmem>>, vector<16x32xf32>
    tpu.vector_store %arg7[%c0_16, %c0_17], %32 {strides = array<i32>} : memref<16x32xf32, #tpu.memory_space<vmem>>, vector<16x32xf32>,
    return
  }
  func.func @transform_0(%arg0: i32) -> (i32, i32) {
    %c0_i32 = arith.constant 0 : i32
    %c0_i32_0 = arith.constant 0 : i32
    return %arg0, %c0_i32 : i32, i32
  }
  func.func @transform_1(%arg0: i32) -> (i32, i32) {
    %c0_i32 = arith.constant 0 : i32
    %c0_i32_0 = arith.constant 0 : i32
    %c0_i32_1 = arith.constant 0 : i32
    return %c0_i32, %c0_i32_0 : i32, i32
  }
  func.func @transform_2(%arg0: i32) -> (i32, i32) {
    %c0_i32 = arith.constant 0 : i32
    %c0_i32_0 = arith.constant 0 : i32
    %c0_i32_1 = arith.constant 0 : i32
    return %c0_i32, %c0_i32_0 : i32, i32
  }
  func.func @transform_3(%arg0: i32) -> (i32, i32) {
    %c0_i32 = arith.constant 0 : i32
    %c0_i32_0 = arith.constant 0 : i32
    return %arg0, %c0_i32 : i32, i32
  }
  func.func @transform_4(%arg0: i32) -> (i32, i32) {
    %c0_i32 = arith.constant 0 : i32
    %c0_i32_0 = arith.constant 0 : i32
    %c0_i32_1 = arith.constant 0 : i32
    return %c0_i32, %c0_i32_0 : i32, i32
  }
  func.func @transform_5(%arg0: i32) -> (i32, i32) {
    %c0_i32 = arith.constant 0 : i32
    %c0_i32_0 = arith.constant 0 : i32
    %c0_i32_1 = arith.constant 0 : i32
    return %c0_i32, %c0_i32_0 : i32, i32
  }
  func.func @transform_6(%arg0: i32) -> (i32, i32) {
    %c0_i32 = arith.constant 0 : i32
    %c0_i32_0 = arith.constant 0 : i32
    return %arg0, %c0_i32 : i32, i32
  }
}

module attributes {stable_mosaic.version = 11 : i64} {
  func.func @_matmul_bias_kernel(%arg0: i32, %arg1: memref<16x32xf32, #tpu.memory_space<vmem>>, %arg2: memref<32x32xbf16, #tpu.memory_space<vmem>>, %arg3: memref<1x32xf32, #tpu.memory_space<vmem>>, %arg4: memref<16x32xf32, #tpu.memory_space<vmem>>) attributes {dimension_semantics = [#tpu.dimension_semantics<parallel>], iteration_bounds = array<i64: 1>, scalar_prefetch = 0 : i64, scratch_operands = 0 : i64, tpu.core_type = #tpu.core_type<tc>, window_params = [{transform_indices = @transform_0, window_bounds = array<i64: 16, 32>}, {pipeline_mode = #tpu.pipeline_mode<synchronous>, transform_indices = @transform_1, window_bounds = array<i64: 32, 32>}, {pipeline_mode = #tpu.pipeline_mode<synchronous>, transform_indices = @transform_2, window_bounds = array<i64: 1, 32>}, {transform_indices = @transform_3, window_bounds = array<i64: 16, 32>}]} {
    %c0 = arith.constant 0 : index
    %c0_0 = arith.constant 0 : index
    %0 = vector.load %arg1[%c0, %c0_0] : memref<16x32xf32, #tpu.memory_space<vmem>>, vector<16x32xf32>
    %1 = arith.truncf %0 : vector<16x32xf32> to vector<16x32xbf16>
    %c0_1 = arith.constant 0 : index
    %c0_2 = arith.constant 0 : index
    %2 = vector.load %arg2[%c0_1, %c0_2] : memref<32x32xbf16, #tpu.memory_space<vmem>>, vector<32x32xbf16>
    %cst = arith.constant dense<0.000000e+00> : vector<16x32xf32>
    %3 = tpu.matmul %1, %2, %cst {dimension_numbers = #tpu.dot_dimension_numbers<[1], [0], [0], [1], [0, 0, 1, 1], [], []>} : vector<16x32xbf16>, vector<32x32xbf16>, vector<16x32xf32> -> vector<16x32xf32>
    %c0_3 = arith.constant 0 : index
    %c0_4 = arith.constant 0 : index
    %4 = vector.load %arg3[%c0_3, %c0_4] : memref<1x32xf32, #tpu.memory_space<vmem>>, vector<1x32xf32>
    %5 = vector.broadcast %4 : vector<1x32xf32> to vector<16x32xf32>
    %6 = arith.addf %3, %5 : vector<16x32xf32>
    %c0_5 = arith.constant 0 : index
    %c0_6 = arith.constant 0 : index
    %7 = vector.load %arg4[%c0_5, %c0_6] : memref<16x32xf32, #tpu.memory_space<vmem>>, vector<16x32xf32>
    tpu.vector_store %arg4[%c0_5, %c0_6], %6 {strides = array<i32>} : memref<16x32xf32, #tpu.memory_space<vmem>>, vector<16x32xf32>,
    return
  }
  func.func @transform_0(%arg0: i32) -> (i32, i32) {
    %c0_i32 = arith.constant 0 : i32
    %c0_i32_0 = arith.constant 0 : i32
    return %arg0, %c0_i32 : i32, i32
  }
  func.func @transform_1(%arg0: i32) -> (i32, i32) {
    %c0_i32 = arith.constant 0 : i32
    %c0_i32_0 = arith.constant 0 : i32
    %c0_i32_1 = arith.constant 0 : i32
    return %c0_i32, %c0_i32_0 : i32, i32
  }
  func.func @transform_2(%arg0: i32) -> (i32, i32) {
    %c0_i32 = arith.constant 0 : i32
    %c0_i32_0 = arith.constant 0 : i32
    %c0_i32_1 = arith.constant 0 : i32
    return %c0_i32, %c0_i32_0 : i32, i32
  }
  func.func @transform_3(%arg0: i32) -> (i32, i32) {
    %c0_i32 = arith.constant 0 : i32
    %c0_i32_0 = arith.constant 0 : i32
    return %arg0, %c0_i32 : i32, i32
  }
}

module attributes {stable_mosaic.version = 11 : i64} {
  func.func @_matmul_bias_kernel(%arg0: i32, %arg1: memref<16x32xf32, #tpu.memory_space<vmem>>, %arg2: memref<32x64xbf16, #tpu.memory_space<vmem>>, %arg3: memref<1x64xf32, #tpu.memory_space<vmem>>, %arg4: memref<16x64xf32, #tpu.memory_space<vmem>>) attributes {dimension_semantics = [#tpu.dimension_semantics<parallel>], iteration_bounds = array<i64: 1>, scalar_prefetch = 0 : i64, scratch_operands = 0 : i64, tpu.core_type = #tpu.core_type<tc>, window_params = [{transform_indices = @transform_0, window_bounds = array<i64: 16, 32>}, {pipeline_mode = #tpu.pipeline_mode<synchronous>, transform_indices = @transform_1, window_bounds = array<i64: 32, 64>}, {pipeline_mode = #tpu.pipeline_mode<synchronous>, transform_indices = @transform_2, window_bounds = array<i64: 1, 64>}, {transform_indices = @transform_3, window_bounds = array<i64: 16, 64>}]} {
    %c0 = arith.constant 0 : index
    %c0_0 = arith.constant 0 : index
    %0 = vector.load %arg1[%c0, %c0_0] : memref<16x32xf32, #tpu.memory_space<vmem>>, vector<16x32xf32>
    %1 = arith.truncf %0 : vector<16x32xf32> to vector<16x32xbf16>
    %c0_1 = arith.constant 0 : index
    %c0_2 = arith.constant 0 : index
    %2 = vector.load %arg2[%c0_1, %c0_2] : memref<32x64xbf16, #tpu.memory_space<vmem>>, vector<32x64xbf16>
    %cst = arith.constant dense<0.000000e+00> : vector<16x64xf32>
    %3 = tpu.matmul %1, %2, %cst {dimension_numbers = #tpu.dot_dimension_numbers<[1], [0], [0], [1], [0, 0, 1, 1], [], []>} : vector<16x32xbf16>, vector<32x64xbf16>, vector<16x64xf32> -> vector<16x64xf32>
    %c0_3 = arith.constant 0 : index
    %c0_4 = arith.constant 0 : index
    %4 = vector.load %arg3[%c0_3, %c0_4] : memref<1x64xf32, #tpu.memory_space<vmem>>, vector<1x64xf32>
    %5 = vector.broadcast %4 : vector<1x64xf32> to vector<16x64xf32>
    %6 = arith.addf %3, %5 : vector<16x64xf32>
    %c0_5 = arith.constant 0 : index
    %c0_6 = arith.constant 0 : index
    %7 = vector.load %arg4[%c0_5, %c0_6] : memref<16x64xf32, #tpu.memory_space<vmem>>, vector<16x64xf32>
    tpu.vector_store %arg4[%c0_5, %c0_6], %6 {strides = array<i32>} : memref<16x64xf32, #tpu.memory_space<vmem>>, vector<16x64xf32>,
    return
  }
  func.func @transform_0(%arg0: i32) -> (i32, i32) {
    %c0_i32 = arith.constant 0 : i32
    %c0_i32_0 = arith.constant 0 : i32
    return %arg0, %c0_i32 : i32, i32
  }
  func.func @transform_1(%arg0: i32) -> (i32, i32) {
    %c0_i32 = arith.constant 0 : i32
    %c0_i32_0 = arith.constant 0 : i32
    %c0_i32_1 = arith.constant 0 : i32
    return %c0_i32, %c0_i32_0 : i32, i32
  }
  func.func @transform_2(%arg0: i32) -> (i32, i32) {
    %c0_i32 = arith.constant 0 : i32
    %c0_i32_0 = arith.constant 0 : i32
    %c0_i32_1 = arith.constant 0 : i32
    return %c0_i32, %c0_i32_0 : i32, i32
  }
  func.func @transform_3(%arg0: i32) -> (i32, i32) {
    %c0_i32 = arith.constant 0 : i32
    %c0_i32_0 = arith.constant 0 : i32
    return %arg0, %c0_i32 : i32, i32
  }
}

module attributes {stable_mosaic.version = 11 : i64} {
  func.func @_cross_attn_kernel(%arg0: i32, %arg1: memref<1x8x32xf32, #tpu.memory_space<vmem>>, %arg2: memref<1x8x64xf32, #tpu.memory_space<vmem>>, %arg3: memref<1x8x8xf32, #tpu.memory_space<vmem>>, %arg4: memref<1x8x32xf32, #tpu.memory_space<vmem>>) attributes {dimension_semantics = [#tpu.dimension_semantics<parallel>], iteration_bounds = array<i64: 2>, scalar_prefetch = 0 : i64, scratch_operands = 0 : i64, tpu.core_type = #tpu.core_type<tc>, window_params = [{transform_indices = @transform_0, window_bounds = array<i64: 1, 8, 32>}, {transform_indices = @transform_1, window_bounds = array<i64: 1, 8, 64>}, {transform_indices = @transform_2, window_bounds = array<i64: 1, 8, 8>}, {transform_indices = @transform_3, window_bounds = array<i64: 1, 8, 32>}]} {
    %c0 = arith.constant 0 : index
    %c0_0 = arith.constant 0 : index
    %c0_1 = arith.constant 0 : index
    %0 = vector.load %arg2[%c0, %c0_0, %c0_1] : memref<1x8x64xf32, #tpu.memory_space<vmem>>, vector<1x8x64xf32>
    %1 = vector.shape_cast %0 : vector<1x8x64xf32> to vector<8x64xf32>
    %c0_2 = arith.constant 0 : index
    %c0_3 = arith.constant 0 : index
    %c0_4 = arith.constant 0 : index
    %2 = vector.load %arg1[%c0_2, %c0_3, %c0_4] : memref<1x8x32xf32, #tpu.memory_space<vmem>>, vector<1x8x32xf32>
    %3 = vector.shape_cast %2 : vector<1x8x32xf32> to vector<8x32xf32>
    %4 = vector.extract_strided_slice %1 {offsets = [0, 0], sizes = [8, 32], strides = [1, 1]} : vector<8x64xf32> to vector<8x32xf32>
    %5 = vector.extract_strided_slice %1 {offsets = [0, 32], sizes = [8, 32], strides = [1, 1]} : vector<8x64xf32> to vector<8x32xf32>
    %c0_5 = arith.constant 0 : index
    %c0_6 = arith.constant 0 : index
    %c0_7 = arith.constant 0 : index
    %6 = vector.load %arg3[%c0_5, %c0_6, %c0_7] : memref<1x8x8xf32, #tpu.memory_space<vmem>>, vector<1x8x8xf32>
    %7 = vector.shape_cast %6 : vector<1x8x8xf32> to vector<8x8xf32>
    %cst = arith.constant 2.500000e-01 : f32
    %8 = vector.broadcast %cst : f32 to vector<8x32xf32>
    %9 = arith.mulf %3, %8 : vector<8x32xf32>
    %10 = vector.extract_strided_slice %9 {offsets = [0, 0], sizes = [8, 16], strides = [1, 1]} : vector<8x32xf32> to vector<8x16xf32>
    %11 = arith.truncf %10 : vector<8x16xf32> to vector<8x16xbf16>
    %12 = vector.extract_strided_slice %4 {offsets = [0, 0], sizes = [8, 16], strides = [1, 1]} : vector<8x32xf32> to vector<8x16xf32>
    %13 = arith.truncf %12 : vector<8x16xf32> to vector<8x16xbf16>
    %14 = vector.extract_strided_slice %5 {offsets = [0, 0], sizes = [8, 16], strides = [1, 1]} : vector<8x32xf32> to vector<8x16xf32>
    %15 = arith.truncf %14 : vector<8x16xf32> to vector<8x16xbf16>
    %16 = tpu.transpose %13, [1, 0] : vector<8x16xbf16> -> vector<16x8xbf16>
    %cst_8 = arith.constant dense<0.000000e+00> : vector<8x8xf32>
    %17 = tpu.matmul %11, %16, %cst_8 {dimension_numbers = #tpu.dot_dimension_numbers<[1], [0], [0], [1], [0, 0, 1, 1], [], []>} : vector<8x16xbf16>, vector<16x8xbf16>, vector<8x8xf32> -> vector<8x8xf32>
    %18 = arith.addf %17, %7 : vector<8x8xf32>
    %cst_9 = arith.constant dense<0xFF800000> : vector<8xf32>
    %19 = vector.multi_reduction <maximumf>, %18, %cst_9 [1] : vector<8x8xf32> to vector<8xf32>
    %20 = vector.shape_cast %19 : vector<8xf32> to vector<8x1xf32>
    %21 = vector.broadcast %20 : vector<8x1xf32> to vector<8x8xf32>
    %22 = arith.subf %18, %21 : vector<8x8xf32>
    %23 = math.exp %22 : vector<8x8xf32>
    %cst_10 = arith.constant dense<0.000000e+00> : vector<8xf32>
    %24 = vector.multi_reduction <add>, %23, %cst_10 [1] : vector<8x8xf32> to vector<8xf32>
    %25 = vector.shape_cast %24 : vector<8xf32> to vector<8x1xf32>
    %26 = tpu.reciprocal %25 {approx = true} : vector<8x1xf32> -> vector<8x1xf32>
    %27 = vector.broadcast %26 : vector<8x1xf32> to vector<8x8xf32>
    %28 = arith.mulf %23, %27 : vector<8x8xf32>
    %29 = arith.truncf %28 : vector<8x8xf32> to vector<8x8xbf16>
    %cst_11 = arith.constant dense<0.000000e+00> : vector<8x16xf32>
    %30 = tpu.matmul %29, %15, %cst_11 {dimension_numbers = #tpu.dot_dimension_numbers<[1], [0], [0], [1], [0, 0, 1, 1], [], []>} : vector<8x8xbf16>, vector<8x16xbf16>, vector<8x16xf32> -> vector<8x16xf32>
    %31 = vector.extract_strided_slice %9 {offsets = [0, 16], sizes = [8, 16], strides = [1, 1]} : vector<8x32xf32> to vector<8x16xf32>
    %32 = arith.truncf %31 : vector<8x16xf32> to vector<8x16xbf16>
    %33 = vector.extract_strided_slice %4 {offsets = [0, 16], sizes = [8, 16], strides = [1, 1]} : vector<8x32xf32> to vector<8x16xf32>
    %34 = arith.truncf %33 : vector<8x16xf32> to vector<8x16xbf16>
    %35 = vector.extract_strided_slice %5 {offsets = [0, 16], sizes = [8, 16], strides = [1, 1]} : vector<8x32xf32> to vector<8x16xf32>
    %36 = arith.truncf %35 : vector<8x16xf32> to vector<8x16xbf16>
    %37 = tpu.transpose %34, [1, 0] : vector<8x16xbf16> -> vector<16x8xbf16>
    %cst_12 = arith.constant dense<0.000000e+00> : vector<8x8xf32>
    %38 = tpu.matmul %32, %37, %cst_12 {dimension_numbers = #tpu.dot_dimension_numbers<[1], [0], [0], [1], [0, 0, 1, 1], [], []>} : vector<8x16xbf16>, vector<16x8xbf16>, vector<8x8xf32> -> vector<8x8xf32>
    %39 = arith.addf %38, %7 : vector<8x8xf32>
    %cst_13 = arith.constant dense<0xFF800000> : vector<8xf32>
    %40 = vector.multi_reduction <maximumf>, %39, %cst_13 [1] : vector<8x8xf32> to vector<8xf32>
    %41 = vector.shape_cast %40 : vector<8xf32> to vector<8x1xf32>
    %42 = vector.broadcast %41 : vector<8x1xf32> to vector<8x8xf32>
    %43 = arith.subf %39, %42 : vector<8x8xf32>
    %44 = math.exp %43 : vector<8x8xf32>
    %cst_14 = arith.constant dense<0.000000e+00> : vector<8xf32>
    %45 = vector.multi_reduction <add>, %44, %cst_14 [1] : vector<8x8xf32> to vector<8xf32>
    %46 = vector.shape_cast %45 : vector<8xf32> to vector<8x1xf32>
    %47 = tpu.reciprocal %46 {approx = true} : vector<8x1xf32> -> vector<8x1xf32>
    %48 = vector.broadcast %47 : vector<8x1xf32> to vector<8x8xf32>
    %49 = arith.mulf %44, %48 : vector<8x8xf32>
    %50 = arith.truncf %49 : vector<8x8xf32> to vector<8x8xbf16>
    %cst_15 = arith.constant dense<0.000000e+00> : vector<8x16xf32>
    %51 = tpu.matmul %50, %36, %cst_15 {dimension_numbers = #tpu.dot_dimension_numbers<[1], [0], [0], [1], [0, 0, 1, 1], [], []>} : vector<8x8xbf16>, vector<8x16xbf16>, vector<8x16xf32> -> vector<8x16xf32>
    %52 = tpu.concatenate %30, %51 in 1 : vector<8x16xf32>, vector<8x16xf32> -> vector<8x32xf32>
    %c0_16 = arith.constant 0 : index
    %c0_17 = arith.constant 0 : index
    %c0_18 = arith.constant 0 : index
    %53 = vector.load %arg4[%c0_16, %c0_17, %c0_18] : memref<1x8x32xf32, #tpu.memory_space<vmem>>, vector<1x8x32xf32>
    %54 = vector.shape_cast %53 : vector<1x8x32xf32> to vector<8x32xf32>
    %55 = vector.shape_cast %52 : vector<8x32xf32> to vector<1x8x32xf32>
    tpu.vector_store %arg4[%c0_16, %c0_17, %c0_18], %55 {strides = array<i32>} : memref<1x8x32xf32, #tpu.memory_space<vmem>>, vector<1x8x32xf32>,
    return
  }
  func.func @transform_0(%arg0: i32) -> (i32, i32, i32) {
    %c0_i32 = arith.constant 0 : i32
    %c0_i32_0 = arith.constant 0 : i32
    %c0_i32_1 = arith.constant 0 : i32
    return %arg0, %c0_i32, %c0_i32_0 : i32, i32, i32
  }
  func.func @transform_1(%arg0: i32) -> (i32, i32, i32) {
    %c0_i32 = arith.constant 0 : i32
    %c0_i32_0 = arith.constant 0 : i32
    %c0_i32_1 = arith.constant 0 : i32
    return %arg0, %c0_i32, %c0_i32_0 : i32, i32, i32
  }
  func.func @transform_2(%arg0: i32) -> (i32, i32, i32) {
    %c0_i32 = arith.constant 0 : i32
    %c0_i32_0 = arith.constant 0 : i32
    %c0_i32_1 = arith.constant 0 : i32
    return %arg0, %c0_i32, %c0_i32_0 : i32, i32, i32
  }
  func.func @transform_3(%arg0: i32) -> (i32, i32, i32) {
    %c0_i32 = arith.constant 0 : i32
    %c0_i32_0 = arith.constant 0 : i32
    %c0_i32_1 = arith.constant 0 : i32
    return %arg0, %c0_i32, %c0_i32_0 : i32, i32, i32
  }
}

module attributes {stable_mosaic.version = 11 : i64} {
  func.func @_ffn_add_ln_kernel(%arg0: i32, %arg1: memref<16x32xf32, #tpu.memory_space<vmem>>, %arg2: memref<32x64xbf16, #tpu.memory_space<vmem>>, %arg3: memref<1x64xf32, #tpu.memory_space<vmem>>, %arg4: memref<64x32xbf16, #tpu.memory_space<vmem>>, %arg5: memref<1x32xf32, #tpu.memory_space<vmem>>, %arg6: memref<1x32xf32, #tpu.memory_space<vmem>>, %arg7: memref<1x32xf32, #tpu.memory_space<vmem>>, %arg8: memref<16x32xf32, #tpu.memory_space<vmem>>) attributes {dimension_semantics = [#tpu.dimension_semantics<parallel>], iteration_bounds = array<i64: 1>, scalar_prefetch = 0 : i64, scratch_operands = 0 : i64, tpu.core_type = #tpu.core_type<tc>, window_params = [{transform_indices = @transform_0, window_bounds = array<i64: 16, 32>}, {pipeline_mode = #tpu.pipeline_mode<synchronous>, transform_indices = @transform_1, window_bounds = array<i64: 32, 64>}, {pipeline_mode = #tpu.pipeline_mode<synchronous>, transform_indices = @transform_2, window_bounds = array<i64: 1, 64>}, {pipeline_mode = #tpu.pipeline_mode<synchronous>, transform_indices = @transform_3, window_bounds = array<i64: 64, 32>}, {pipeline_mode = #tpu.pipeline_mode<synchronous>, transform_indices = @transform_4, window_bounds = array<i64: 1, 32>}, {pipeline_mode = #tpu.pipeline_mode<synchronous>, transform_indices = @transform_5, window_bounds = array<i64: 1, 32>}, {pipeline_mode = #tpu.pipeline_mode<synchronous>, transform_indices = @transform_6, window_bounds = array<i64: 1, 32>}, {transform_indices = @transform_7, window_bounds = array<i64: 16, 32>}]} {
    %c0 = arith.constant 0 : index
    %c0_0 = arith.constant 0 : index
    %0 = vector.load %arg1[%c0, %c0_0] : memref<16x32xf32, #tpu.memory_space<vmem>>, vector<16x32xf32>
    %1 = arith.truncf %0 : vector<16x32xf32> to vector<16x32xbf16>
    %c0_1 = arith.constant 0 : index
    %c0_2 = arith.constant 0 : index
    %2 = vector.load %arg2[%c0_1, %c0_2] : memref<32x64xbf16, #tpu.memory_space<vmem>>, vector<32x64xbf16>
    %cst = arith.constant dense<0.000000e+00> : vector<16x64xf32>
    %3 = tpu.matmul %1, %2, %cst {dimension_numbers = #tpu.dot_dimension_numbers<[1], [0], [0], [1], [0, 0, 1, 1], [], []>} : vector<16x32xbf16>, vector<32x64xbf16>, vector<16x64xf32> -> vector<16x64xf32>
    %c0_3 = arith.constant 0 : index
    %c0_4 = arith.constant 0 : index
    %4 = vector.load %arg3[%c0_3, %c0_4] : memref<1x64xf32, #tpu.memory_space<vmem>>, vector<1x64xf32>
    %5 = vector.broadcast %4 : vector<1x64xf32> to vector<16x64xf32>
    %6 = arith.addf %3, %5 : vector<16x64xf32>
    %cst_5 = arith.constant 0.000000e+00 : f32
    %7 = vector.broadcast %cst_5 : f32 to vector<16x64xf32>
    %8 = arith.maximumf %6, %7 : vector<16x64xf32>
    %9 = arith.truncf %8 : vector<16x64xf32> to vector<16x64xbf16>
    %c0_6 = arith.constant 0 : index
    %c0_7 = arith.constant 0 : index
    %10 = vector.load %arg4[%c0_6, %c0_7] : memref<64x32xbf16, #tpu.memory_space<vmem>>, vector<64x32xbf16>
    %cst_8 = arith.constant dense<0.000000e+00> : vector<16x32xf32>
    %11 = tpu.matmul %9, %10, %cst_8 {dimension_numbers = #tpu.dot_dimension_numbers<[1], [0], [0], [1], [0, 0, 1, 1], [], []>} : vector<16x64xbf16>, vector<64x32xbf16>, vector<16x32xf32> -> vector<16x32xf32>
    %c0_9 = arith.constant 0 : index
    %c0_10 = arith.constant 0 : index
    %12 = vector.load %arg5[%c0_9, %c0_10] : memref<1x32xf32, #tpu.memory_space<vmem>>, vector<1x32xf32>
    %13 = vector.broadcast %12 : vector<1x32xf32> to vector<16x32xf32>
    %14 = arith.addf %11, %13 : vector<16x32xf32>
    %15 = arith.addf %14, %0 : vector<16x32xf32>
    %c0_11 = arith.constant 0 : index
    %c0_12 = arith.constant 0 : index
    %16 = vector.load %arg6[%c0_11, %c0_12] : memref<1x32xf32, #tpu.memory_space<vmem>>, vector<1x32xf32>
    %c0_13 = arith.constant 0 : index
    %c0_14 = arith.constant 0 : index
    %17 = vector.load %arg7[%c0_13, %c0_14] : memref<1x32xf32, #tpu.memory_space<vmem>>, vector<1x32xf32>
    %cst_15 = arith.constant dense<0.000000e+00> : vector<16xf32>
    %18 = vector.multi_reduction <add>, %15, %cst_15 [1] : vector<16x32xf32> to vector<16xf32>
    %19 = vector.shape_cast %18 : vector<16xf32> to vector<16x1xf32>
    %cst_16 = arith.constant 3.200000e+01 : f32
    %20 = vector.broadcast %cst_16 : f32 to vector<16x1xf32>
    %21 = arith.divf %19, %20 : vector<16x1xf32>
    %22 = vector.broadcast %21 : vector<16x1xf32> to vector<16x32xf32>
    %23 = arith.subf %15, %22 : vector<16x32xf32>
    %24 = arith.mulf %23, %23 : vector<16x32xf32>
    %cst_17 = arith.constant dense<0.000000e+00> : vector<16xf32>
    %25 = vector.multi_reduction <add>, %24, %cst_17 [1] : vector<16x32xf32> to vector<16xf32>
    %26 = vector.shape_cast %25 : vector<16xf32> to vector<16x1xf32>
    %cst_18 = arith.constant 3.200000e+01 : f32
    %27 = vector.broadcast %cst_18 : f32 to vector<16x1xf32>
    %28 = arith.divf %26, %27 : vector<16x1xf32>
    %29 = vector.broadcast %21 : vector<16x1xf32> to vector<16x32xf32>
    %30 = arith.subf %15, %29 : vector<16x32xf32>
    %cst_19 = arith.constant 9.99999997E-7 : f32
    %31 = vector.broadcast %cst_19 : f32 to vector<16x1xf32>
    %32 = arith.addf %28, %31 : vector<16x1xf32>
    %33 = math.rsqrt %32 : vector<16x1xf32>
    %34 = vector.broadcast %33 : vector<16x1xf32> to vector<16x32xf32>
    %35 = arith.mulf %30, %34 : vector<16x32xf32>
    %36 = vector.broadcast %16 : vector<1x32xf32> to vector<16x32xf32>
    %37 = arith.mulf %35, %36 : vector<16x32xf32>
    %38 = vector.broadcast %17 : vector<1x32xf32> to vector<16x32xf32>
    %39 = arith.addf %37, %38 : vector<16x32xf32>
    %c0_20 = arith.constant 0 : index
    %c0_21 = arith.constant 0 : index
    %40 = vector.load %arg8[%c0_20, %c0_21] : memref<16x32xf32, #tpu.memory_space<vmem>>, vector<16x32xf32>
    tpu.vector_store %arg8[%c0_20, %c0_21], %39 {strides = array<i32>} : memref<16x32xf32, #tpu.memory_space<vmem>>, vector<16x32xf32>,
    return
  }
  func.func @transform_0(%arg0: i32) -> (i32, i32) {
    %c0_i32 = arith.constant 0 : i32
    %c0_i32_0 = arith.constant 0 : i32
    return %arg0, %c0_i32 : i32, i32
  }
  func.func @transform_1(%arg0: i32) -> (i32, i32) {
    %c0_i32 = arith.constant 0 : i32
    %c0_i32_0 = arith.constant 0 : i32
    %c0_i32_1 = arith.constant 0 : i32
    return %c0_i32, %c0_i32_0 : i32, i32
  }
  func.func @transform_2(%arg0: i32) -> (i32, i32) {
    %c0_i32 = arith.constant 0 : i32
    %c0_i32_0 = arith.constant 0 : i32
    %c0_i32_1 = arith.constant 0 : i32
    return %c0_i32, %c0_i32_0 : i32, i32
  }
  func.func @transform_3(%arg0: i32) -> (i32, i32) {
    %c0_i32 = arith.constant 0 : i32
    %c0_i32_0 = arith.constant 0 : i32
    %c0_i32_1 = arith.constant 0 : i32
    return %c0_i32, %c0_i32_0 : i32, i32
  }
  func.func @transform_4(%arg0: i32) -> (i32, i32) {
    %c0_i32 = arith.constant 0 : i32
    %c0_i32_0 = arith.constant 0 : i32
    %c0_i32_1 = arith.constant 0 : i32
    return %c0_i32, %c0_i32_0 : i32, i32
  }
  func.func @transform_5(%arg0: i32) -> (i32, i32) {
    %c0_i32 = arith.constant 0 : i32
    %c0_i32_0 = arith.constant 0 : i32
    %c0_i32_1 = arith.constant 0 : i32
    return %c0_i32, %c0_i32_0 : i32, i32
  }
  func.func @transform_6(%arg0: i32) -> (i32, i32) {
    %c0_i32 = arith.constant 0 : i32
    %c0_i32_0 = arith.constant 0 : i32
    %c0_i32_1 = arith.constant 0 : i32
    return %c0_i32, %c0_i32_0 : i32, i32
  }
  func.func @transform_7(%arg0: i32) -> (i32, i32) {
    %c0_i32 = arith.constant 0 : i32
    %c0_i32_0 = arith.constant 0 : i32
    return %arg0, %c0_i32 : i32, i32
  }
}

module attributes {stable_mosaic.version = 11 : i64} {
  func.func @_ffn_add_ln_kernel(%arg0: i32, %arg1: memref<16x32xf32, #tpu.memory_space<vmem>>, %arg2: memref<32x64xbf16, #tpu.memory_space<vmem>>, %arg3: memref<1x64xf32, #tpu.memory_space<vmem>>, %arg4: memref<64x32xbf16, #tpu.memory_space<vmem>>, %arg5: memref<1x32xf32, #tpu.memory_space<vmem>>, %arg6: memref<1x32xf32, #tpu.memory_space<vmem>>, %arg7: memref<1x32xf32, #tpu.memory_space<vmem>>, %arg8: memref<16x32xf32, #tpu.memory_space<vmem>>) attributes {dimension_semantics = [#tpu.dimension_semantics<parallel>], iteration_bounds = array<i64: 1>, scalar_prefetch = 0 : i64, scratch_operands = 0 : i64, tpu.core_type = #tpu.core_type<tc>, window_params = [{transform_indices = @transform_0, window_bounds = array<i64: 16, 32>}, {pipeline_mode = #tpu.pipeline_mode<synchronous>, transform_indices = @transform_1, window_bounds = array<i64: 32, 64>}, {pipeline_mode = #tpu.pipeline_mode<synchronous>, transform_indices = @transform_2, window_bounds = array<i64: 1, 64>}, {pipeline_mode = #tpu.pipeline_mode<synchronous>, transform_indices = @transform_3, window_bounds = array<i64: 64, 32>}, {pipeline_mode = #tpu.pipeline_mode<synchronous>, transform_indices = @transform_4, window_bounds = array<i64: 1, 32>}, {pipeline_mode = #tpu.pipeline_mode<synchronous>, transform_indices = @transform_5, window_bounds = array<i64: 1, 32>}, {pipeline_mode = #tpu.pipeline_mode<synchronous>, transform_indices = @transform_6, window_bounds = array<i64: 1, 32>}, {transform_indices = @transform_7, window_bounds = array<i64: 16, 32>}]} {
    %c0 = arith.constant 0 : index
    %c0_0 = arith.constant 0 : index
    %0 = vector.load %arg1[%c0, %c0_0] : memref<16x32xf32, #tpu.memory_space<vmem>>, vector<16x32xf32>
    %1 = arith.truncf %0 : vector<16x32xf32> to vector<16x32xbf16>
    %c0_1 = arith.constant 0 : index
    %c0_2 = arith.constant 0 : index
    %2 = vector.load %arg2[%c0_1, %c0_2] : memref<32x64xbf16, #tpu.memory_space<vmem>>, vector<32x64xbf16>
    %cst = arith.constant dense<0.000000e+00> : vector<16x64xf32>
    %3 = tpu.matmul %1, %2, %cst {dimension_numbers = #tpu.dot_dimension_numbers<[1], [0], [0], [1], [0, 0, 1, 1], [], []>} : vector<16x32xbf16>, vector<32x64xbf16>, vector<16x64xf32> -> vector<16x64xf32>
    %c0_3 = arith.constant 0 : index
    %c0_4 = arith.constant 0 : index
    %4 = vector.load %arg3[%c0_3, %c0_4] : memref<1x64xf32, #tpu.memory_space<vmem>>, vector<1x64xf32>
    %5 = vector.broadcast %4 : vector<1x64xf32> to vector<16x64xf32>
    %6 = arith.addf %3, %5 : vector<16x64xf32>
    %cst_5 = arith.constant 0.000000e+00 : f32
    %7 = vector.broadcast %cst_5 : f32 to vector<16x64xf32>
    %8 = arith.maximumf %6, %7 : vector<16x64xf32>
    %9 = arith.truncf %8 : vector<16x64xf32> to vector<16x64xbf16>
    %c0_6 = arith.constant 0 : index
    %c0_7 = arith.constant 0 : index
    %10 = vector.load %arg4[%c0_6, %c0_7] : memref<64x32xbf16, #tpu.memory_space<vmem>>, vector<64x32xbf16>
    %cst_8 = arith.constant dense<0.000000e+00> : vector<16x32xf32>
    %11 = tpu.matmul %9, %10, %cst_8 {dimension_numbers = #tpu.dot_dimension_numbers<[1], [0], [0], [1], [0, 0, 1, 1], [], []>} : vector<16x64xbf16>, vector<64x32xbf16>, vector<16x32xf32> -> vector<16x32xf32>
    %c0_9 = arith.constant 0 : index
    %c0_10 = arith.constant 0 : index
    %12 = vector.load %arg5[%c0_9, %c0_10] : memref<1x32xf32, #tpu.memory_space<vmem>>, vector<1x32xf32>
    %13 = vector.broadcast %12 : vector<1x32xf32> to vector<16x32xf32>
    %14 = arith.addf %11, %13 : vector<16x32xf32>
    %15 = arith.addf %14, %0 : vector<16x32xf32>
    %c0_11 = arith.constant 0 : index
    %c0_12 = arith.constant 0 : index
    %16 = vector.load %arg6[%c0_11, %c0_12] : memref<1x32xf32, #tpu.memory_space<vmem>>, vector<1x32xf32>
    %c0_13 = arith.constant 0 : index
    %c0_14 = arith.constant 0 : index
    %17 = vector.load %arg7[%c0_13, %c0_14] : memref<1x32xf32, #tpu.memory_space<vmem>>, vector<1x32xf32>
    %cst_15 = arith.constant dense<0.000000e+00> : vector<16xf32>
    %18 = vector.multi_reduction <add>, %15, %cst_15 [1] : vector<16x32xf32> to vector<16xf32>
    %19 = vector.shape_cast %18 : vector<16xf32> to vector<16x1xf32>
    %cst_16 = arith.constant 3.200000e+01 : f32
    %20 = vector.broadcast %cst_16 : f32 to vector<16x1xf32>
    %21 = arith.divf %19, %20 : vector<16x1xf32>
    %22 = vector.broadcast %21 : vector<16x1xf32> to vector<16x32xf32>
    %23 = arith.subf %15, %22 : vector<16x32xf32>
    %24 = arith.mulf %23, %23 : vector<16x32xf32>
    %cst_17 = arith.constant dense<0.000000e+00> : vector<16xf32>
    %25 = vector.multi_reduction <add>, %24, %cst_17 [1] : vector<16x32xf32> to vector<16xf32>
    %26 = vector.shape_cast %25 : vector<16xf32> to vector<16x1xf32>
    %cst_18 = arith.constant 3.200000e+01 : f32
    %27 = vector.broadcast %cst_18 : f32 to vector<16x1xf32>
    %28 = arith.divf %26, %27 : vector<16x1xf32>
    %29 = vector.broadcast %21 : vector<16x1xf32> to vector<16x32xf32>
    %30 = arith.subf %15, %29 : vector<16x32xf32>
    %cst_19 = arith.constant 9.99999997E-7 : f32
    %31 = vector.broadcast %cst_19 : f32 to vector<16x1xf32>
    %32 = arith.addf %28, %31 : vector<16x1xf32>
    %33 = math.rsqrt %32 : vector<16x1xf32>
    %34 = vector.broadcast %33 : vector<16x1xf32> to vector<16x32xf32>
    %35 = arith.mulf %30, %34 : vector<16x32xf32>
    %36 = vector.broadcast %16 : vector<1x32xf32> to vector<16x32xf32>
    %37 = arith.mulf %35, %36 : vector<16x32xf32>
    %38 = vector.broadcast %17 : vector<1x32xf32> to vector<16x32xf32>
    %39 = arith.addf %37, %38 : vector<16x32xf32>
    %c0_20 = arith.constant 0 : index
    %c0_21 = arith.constant 0 : index
    %40 = vector.load %arg8[%c0_20, %c0_21] : memref<16x32xf32, #tpu.memory_space<vmem>>, vector<16x32xf32>
    tpu.vector_store %arg8[%c0_20, %c0_21], %39 {strides = array<i32>} : memref<16x32xf32, #tpu.memory_space<vmem>>, vector<16x32xf32>,
    return
  }
  func.func @transform_0(%arg0: i32) -> (i32, i32) {
    %c0_i32 = arith.constant 0 : i32
    %c0_i32_0 = arith.constant 0 : i32
    return %arg0, %c0_i32 : i32, i32
  }
  func.func @transform_1(%arg0: i32) -> (i32, i32) {
    %c0_i32 = arith.constant 0 : i32
    %c0_i32_0 = arith.constant 0 : i32
    %c0_i32_1 = arith.constant 0 : i32
    return %c0_i32, %c0_i32_0 : i32, i32
  }
  func.func @transform_2(%arg0: i32) -> (i32, i32) {
    %c0_i32 = arith.constant 0 : i32
    %c0_i32_0 = arith.constant 0 : i32
    %c0_i32_1 = arith.constant 0 : i32
    return %c0_i32, %c0_i32_0 : i32, i32
  }
  func.func @transform_3(%arg0: i32) -> (i32, i32) {
    %c0_i32 = arith.constant 0 : i32
    %c0_i32_0 = arith.constant 0 : i32
    %c0_i32_1 = arith.constant 0 : i32
    return %c0_i32, %c0_i32_0 : i32, i32
  }
  func.func @transform_4(%arg0: i32) -> (i32, i32) {
    %c0_i32 = arith.constant 0 : i32
    %c0_i32_0 = arith.constant 0 : i32
    %c0_i32_1 = arith.constant 0 : i32
    return %c0_i32, %c0_i32_0 : i32, i32
  }
  func.func @transform_5(%arg0: i32) -> (i32, i32) {
    %c0_i32 = arith.constant 0 : i32
    %c0_i32_0 = arith.constant 0 : i32
    %c0_i32_1 = arith.constant 0 : i32
    return %c0_i32, %c0_i32_0 : i32, i32
  }
  func.func @transform_6(%arg0: i32) -> (i32, i32) {
    %c0_i32 = arith.constant 0 : i32
    %c0_i32_0 = arith.constant 0 : i32
    %c0_i32_1 = arith.constant 0 : i32
    return %c0_i32, %c0_i32_0 : i32, i32
  }
  func.func @transform_7(%arg0: i32) -> (i32, i32) {
    %c0_i32 = arith.constant 0 : i32
    %c0_i32_0 = arith.constant 0 : i32
    return %arg0, %c0_i32 : i32, i32
  }
}

</mosaic_0001>

<llo_original>
// kernel: decoder_forward.17
$region0: #{decoder_forward.17}
  #allocation0 [shape = 'u32[]', space=smem, size = 0x4, offset = 0x4, fixed_abs, tag = 'smem constant byte address 0x4 - core index']
  #allocation1 [shape = 'u32[144,128]{1,0:T(1,128)}', space=vmem, size = 0x12000, scoped, tag = 'internal scratch']
  %s0 = inlined_call_operand.vmem [shape: f32[16,32], index: 0, kind: input, shape index: {}]
  %s1 = inlined_call_operand.vmem [shape: f32[16,32], index: 1, kind: input, shape index: {}]
  %s2 = inlined_call_operand.vmem [shape: f32[1,32], index: 2, kind: input, shape index: {}]
  %s3 = inlined_call_operand.vmem [shape: f32[1,32], index: 3, kind: input, shape index: {}]
  %s4 = inlined_call_operand.vmem [shape: f32[16,32], index: 4, kind: output, shape index: {}]
  %s5 = sld [smem:[#allocation0]]
  $region26: #{decoder_forward.17} parent=0
    _
  %s7 = ssub.s32 1, %s5
  %s8 = scalar_select 0, %s7, %s5
  // Predicated region
  $region2: #{decoder_forward.17} parent=0 // pred_check
    _
  $region3: #{decoder_forward.17} parent=0 // pred_check_branch
    %10 = sbr.rel (0) target = $region5
  $region4: #{decoder_forward.17} parent=0 // pred_region
    _
  $region5: #{decoder_forward.17} parent=0 // pred_fallthru
    _
  // Predicated region
  $region6: #{decoder_forward.17} parent=0 // pred_check
    _
  $region7: #{decoder_forward.17} parent=0 // pred_check_branch
    %12 = sbr.rel (0) target = $region9
  $region8: #{decoder_forward.17} parent=0 // pred_region
    _
  $region9: #{decoder_forward.17} parent=0 // pred_fallthru
    _
  // Predicated region
  $region10: #{decoder_forward.17} parent=0 // pred_check
    _
  $region11: #{decoder_forward.17} parent=0 // pred_check_branch
    %14 = sbr.rel (0) target = $region13
  $region12: #{decoder_forward.17} parent=0 // pred_region
    _
  $region13: #{decoder_forward.17} parent=0 // pred_fallthru
    _
  // Predicated region
  $region14: #{decoder_forward.17} parent=0 // pred_check
    _
  $region15: #{decoder_forward.17} parent=0 // pred_check_branch
    %16 = sbr.rel (0) target = $region17
  $region16: #{decoder_forward.17} parent=0 // pred_region
    _
  $region17: #{decoder_forward.17} parent=0 // pred_fallthru
    _
  %v17 = vld [vmem:[%s0] sm:$0xff]
  %v18 = vld [vmem:[%s0 + $0x8] sm:$0xff]
  %v19 = vld [vmem:[%s1] sm:$0xff]
  %v20 = vld [vmem:[%s1 + $0x8] sm:$0xff]
  %v21 = vadd.f32 %v17, %v19
  %v22 = vadd.f32 %v18, %v20
  %v23 = vld [vmem:[%s2] sm:$0x1]
  %v24 = vld [vmem:[%s3] sm:$0x1]
  %vm25 = vcmask 261120
  %v26 = vsel %vm25, %v21, 0.0
  %27 = vadd.xlane.f32.xlu0 %v26
  %v28 = vpop.xlane.xlu0 %27
  %v29 = vsel %vm25, %v22, 0.0
  %30 = vadd.xlane.f32.xlu0 %v29
  %v31 = vpop.xlane.xlu0 %30
  %v32 = vrcp.pop 32.0
  %v33 = vmul.f32 %v28, %v32
  %v34 = vmul.f32 %v31, %v32
  %v35 = vsub.f32 %v21, %v33
  %v36 = vsub.f32 %v22, %v34
  %v37 = vmul.f32 %v35, %v35
  %v38 = vmul.f32 %v36, %v36
  %v39 = vsel %vm25, %v37, 0.0
  %40 = vadd.xlane.f32.xlu0 %v39
  %v41 = vpop.xlane.xlu0 %40
  %v42 = vsel %vm25, %v38, 0.0
  %43 = vadd.xlane.f32.xlu0 %v42
  %v44 = vpop.xlane.xlu0 %43
  %v45 = vmul.f32 %v41, %v32
  %v46 = vmul.f32 %v44, %v32
  %v47 = vadd.f32 %v45, 1e-06
  %v48 = vadd.f32 %v46, 1e-06
  %v49 = vrsqrt.pop %v47
  %v50 = vrsqrt.pop %v48
  %v51 = vmul.f32 %v35, %v49
  %v52 = vmul.f32 %v36, %v50
  %v54 = vlaneseq
  %v55 = vshrl.u32 %v54, 7
  %v56 = vsub.s32 0, %v55
  %v57 = vrot.slane %v23, %v56
  %v59 = vmul.f32 %v51, %v57
  %v60 = vmul.f32 %v52, %v57
  %v62 = vlaneseq
  %v63 = vshrl.u32 %v62, 7
  %v64 = vsub.s32 0, %v63
  %v65 = vrot.slane %v24, %v64
  %v67 = vadd.f32 %v59, %v65
  %v68 = vadd.f32 %v60, %v65
  %69 = vst.msk [vmem:[%s4] sm:$0xff] %vm25, %v67
  %70 = vst.msk [vmem:[%s4 + $0x8] sm:$0xff] %vm25, %v68
  // Predicated region
  $region18: #{decoder_forward.17} parent=0 // pred_check
    _
  $region19: #{decoder_forward.17} parent=0 // pred_check_branch
    %72 = sbr.rel (0) target = $region21
  $region20: #{decoder_forward.17} parent=0 // pred_region
    _
  $region21: #{decoder_forward.17} parent=0 // pred_fallthru
    _
  // Predicated region
  $region22: #{decoder_forward.17} parent=0 // pred_check
    _
  $region23: #{decoder_forward.17} parent=0 // pred_check_branch
    %74 = sbr.rel (0) target = $region25
  $region24: #{decoder_forward.17} parent=0 // pred_region
    _
  $region25: #{decoder_forward.17} parent=0 // pred_fallthru
    _

// kernel: decoder_forward.18
$region0: #{decoder_forward.18}
  #allocation0 [shape = 'u32[]', space=smem, size = 0x4, offset = 0x4, fixed_abs, tag = 'smem constant byte address 0x4 - core index']
  #allocation1 [shape = 'u32[144,128]{1,0:T(1,128)}', space=vmem, size = 0x12000, scoped, tag = 'internal scratch']
  %s0 = inlined_call_operand.vmem [shape: f32[16,32], index: 0, kind: input, shape index: {}]
  %s1 = inlined_call_operand.vmem [shape: bf16[32,96], index: 1, kind: input, shape index: {}]
  %s2 = inlined_call_operand.vmem [shape: f32[1,96], index: 2, kind: input, shape index: {}]
  %s3 = inlined_call_operand.vmem [shape: f32[16,96], index: 3, kind: output, shape index: {}]
  %s4 = sld [smem:[#allocation0]]
  $region22: #{decoder_forward.18} parent=0
    _
  %s6 = ssub.s32 1, %s4
  %s7 = scalar_select 0, %s6, %s4
  // Predicated region
  $region2: #{decoder_forward.18} parent=0 // pred_check
    _
  $region3: #{decoder_forward.18} parent=0 // pred_check_branch
    %9 = sbr.rel (0) target = $region5
  $region4: #{decoder_forward.18} parent=0 // pred_region
    _
  $region5: #{decoder_forward.18} parent=0 // pred_fallthru
    _
  // Predicated region
  $region6: #{decoder_forward.18} parent=0 // pred_check
    _
  $region7: #{decoder_forward.18} parent=0 // pred_check_branch
    %11 = sbr.rel (0) target = $region9
  $region8: #{decoder_forward.18} parent=0 // pred_region
    _
  $region9: #{decoder_forward.18} parent=0 // pred_fallthru
    _
  // Predicated region
  $region10: #{decoder_forward.18} parent=0 // pred_check
    _
  $region11: #{decoder_forward.18} parent=0 // pred_check_branch
    %13 = sbr.rel (0) target = $region13
  $region12: #{decoder_forward.18} parent=0 // pred_region
    _
  $region13: #{decoder_forward.18} parent=0 // pred_fallthru
    _
  %v15 = vld [vmem:[%s0] sm:$0xff]
  %v16 = vld [vmem:[%s0 + $0x8] sm:$0xff]
  %v17 = vpack.c.bf16 %v16, %v15
  %v18 = vld [vmem:[%s1] sm:$0xf]
  %v19 = vld [vmem:[%s1 + $0x4] sm:$0xf]
  %v20 = vld [vmem:[%s1 + $0x8] sm:$0xf]
  %v21 = vld [vmem:[%s1 + $0xc] sm:$0xf]
  %v22 = vld [vmem:[%s2] sm:$0x1]
  %v24 = vlaneseq
  %v25 = vshrl.u32 %v24, 7
  %v26 = vsub.s32 0, %v25
  %v27 = vrot.slane %v22, %v26
  %v33 = vunpack.c.l.b16 %v18
  %v34 = vunpack.c.l.b16 %v19
  %v35 = vunpack.c.l.b16 %v20
  %v36 = vunpack.c.l.b16 %v21
  %v37 = vpack.c.b16 %v34, %v33
  %v38 = vpack.c.b16 %v36, %v35
  %vm41 = vcmask 261120
  %v43 = vsel %vm41, %v17, 0
  %45 = vmatprep.subr.bf16.mxu0 0
  %46 = vmatpush1.bf16.msra.mxu0 %v37
  %47 = vmatprep.subr.bf16.mxu0 0
  %48 = vmatpush1.bf16.msra.mxu0 %v38
  %49 = vmatprep.subr.bf16.mxu0 0
  %50 = vmatpush1.bf16.msra.mxu0 0
  %51 = vmatprep.subr.bf16.mxu0 0
  %52 = vmatpush1.bf16.msra.mxu0 0
  %53 = vmatprep.subr.bf16.mxu0 0
  %54 = vmatpush1.bf16.msra.mxu0 0
  %55 = vmatprep.subr.bf16.mxu0 0
  %56 = vmatpush1.bf16.msra.mxu0 0
  %57 = vmatprep.subr.bf16.mxu0 0
  %58 = vmatpush1.bf16.msra.mxu0 0
  %59 = vmatprep.subr.bf16.mxu0 0
  %60 = vmatpush1.bf16.msra.mxu0 0
  %61 = vmatprep.subr.bf16.mxu0 0
  %62 = vmatpush1.bf16.msra.mxu0 0
  %63 = vmatprep.subr.bf16.mxu0 0
  %64 = vmatpush1.bf16.msra.mxu0 0
  %65 = vmatprep.subr.bf16.mxu0 0
  %66 = vmatpush1.bf16.msra.mxu0 0
  %67 = vmatprep.subr.bf16.mxu0 0
  %68 = vmatpush1.bf16.msra.mxu0 0
  %69 = vmatprep.subr.bf16.mxu0 0
  %70 = vmatpush1.bf16.msra.mxu0 0
  %71 = vmatprep.subr.bf16.mxu0 0
  %72 = vmatpush1.bf16.msra.mxu0 0
  %73 = vmatprep.subr.bf16.mxu0 0
  %74 = vmatpush1.bf16.msra.mxu0 0
  %75 = vmatprep.subr.bf16.mxu0 0
  %76 = vmatpush1.bf16.msra.mxu0 0
  %77 = vmatprep.mubr.bf16.mxu0 0
  %78 = vmatmul.mubr.bf16.gmra.mrb[0].mxu0 %v43
  %v79 = vpop.f32.mrb[0].mxu0
  %v80 = vadd.f32 %v27, %v79
  %v81 = vpop.f32.mrb[0].mxu0
  %v82 = vpop.f32.mrb[0].mxu0
  %v83 = vadd.f32 %v27, %v82
  %v84 = vpop.f32.mrb[0].mxu0
  %85 = vdwg.mxu0
  %vm86 = vcmask 785408
  %87 = vst.msk [vmem:[%s3] sm:$0xff] %vm86, %v80
  %88 = vst.msk [vmem:[%s3 + $0x8] sm:$0xff] %vm86, %v83
  // Predicated region
  $region14: #{decoder_forward.18} parent=0 // pred_check
    _
  $region15: #{decoder_forward.18} parent=0 // pred_check_branch
    %90 = sbr.rel (0) target = $region17
  $region16: #{decoder_forward.18} parent=0 // pred_region
    _
  $region17: #{decoder_forward.18} parent=0 // pred_fallthru
    _
  // Predicated region
  $region18: #{decoder_forward.18} parent=0 // pred_check
    _
  $region19: #{decoder_forward.18} parent=0 // pred_check_branch
    %92 = sbr.rel (0) target = $region21
  $region20: #{decoder_forward.18} parent=0 // pred_region
    _
  $region21: #{decoder_forward.18} parent=0 // pred_fallthru
    _

// kernel: decoder_forward.20
$region0: #{decoder_forward.20}
  #allocation0 [shape = 'u32[]', space=smem, size = 0x4, offset = 0x4, fixed_abs, tag = 'smem constant byte address 0x4 - core index']
  #allocation1 [shape = 'u32[144,128]{1,0:T(1,128)}', space=vmem, size = 0x12000, scoped, tag = 'internal scratch']
  %s0 = inlined_call_operand.vmem [shape: f32[16,32], index: 0, kind: input, shape index: {}]
  %s1 = inlined_call_operand.vmem [shape: bf16[32,32], index: 1, kind: input, shape index: {}]
  %s2 = inlined_call_operand.vmem [shape: f32[1,32], index: 2, kind: input, shape index: {}]
  %s3 = inlined_call_operand.vmem [shape: f32[16,32], index: 3, kind: input, shape index: {}]
  %s4 = inlined_call_operand.vmem [shape: f32[1,32], index: 4, kind: input, shape index: {}]
  %s5 = inlined_call_operand.vmem [shape: f32[1,32], index: 5, kind: input, shape index: {}]
  %s6 = inlined_call_operand.vmem [shape: f32[16,32], index: 6, kind: output, shape index: {}]
  %s7 = sld [smem:[#allocation0]]
  $region34: #{decoder_forward.20} parent=0
    _
  %s9 = ssub.s32 1, %s7
  %s10 = scalar_select 0, %s9, %s7
  // Predicated region
  $region2: #{decoder_forward.20} parent=0 // pred_check
    _
  $region3: #{decoder_forward.20} parent=0 // pred_check_branch
    %12 = sbr.rel (0) target = $region5
  $region4: #{decoder_forward.20} parent=0 // pred_region
    _
  $region5: #{decoder_forward.20} parent=0 // pred_fallthru
    _
  // Predicated region
  $region6: #{decoder_forward.20} parent=0 // pred_check
    _
  $region7: #{decoder_forward.20} parent=0 // pred_check_branch
    %14 = sbr.rel (0) target = $region9
  $region8: #{decoder_forward.20} parent=0 // pred_region
    _
  $region9: #{decoder_forward.20} parent=0 // pred_fallthru
    _
  // Predicated region
  $region10: #{decoder_forward.20} parent=0 // pred_check
    _
  $region11: #{decoder_forward.20} parent=0 // pred_check_branch
    %16 = sbr.rel (0) target = $region13
  $region12: #{decoder_forward.20} parent=0 // pred_region
    _
  $region13: #{decoder_forward.20} parent=0 // pred_fallthru
    _
  // Predicated region
  $region14: #{decoder_forward.20} parent=0 // pred_check
    _
  $region15: #{decoder_forward.20} parent=0 // pred_check_branch
    %18 = sbr.rel (0) target = $region17
  $region16: #{decoder_forward.20} parent=0 // pred_region
    _
  $region17: #{decoder_forward.20} parent=0 // pred_fallthru
    _
  // Predicated region
  $region18: #{decoder_forward.20} parent=0 // pred_check
    _
  $region19: #{decoder_forward.20} parent=0 // pred_check_branch
    %20 = sbr.rel (0) target = $region21
  $region20: #{decoder_forward.20} parent=0 // pred_region
    _
  $region21: #{decoder_forward.20} parent=0 // pred_fallthru
    _
  // Predicated region
  $region22: #{decoder_forward.20} parent=0 // pred_check
    _
  $region23: #{decoder_forward.20} parent=0 // pred_check_branch
    %22 = sbr.rel (0) target = $region25
  $region24: #{decoder_forward.20} parent=0 // pred_region
    _
  $region25: #{decoder_forward.20} parent=0 // pred_fallthru
    _
  %v24 = vld [vmem:[%s0] sm:$0xff]
  %v25 = vld [vmem:[%s0 + $0x8] sm:$0xff]
  %v26 = vpack.c.bf16 %v25, %v24
  %v27 = vld [vmem:[%s1] sm:$0xf]
  %v28 = vld [vmem:[%s1 + $0x4] sm:$0xf]
  %v29 = vld [vmem:[%s1 + $0x8] sm:$0xf]
  %v30 = vld [vmem:[%s1 + $0xc] sm:$0xf]
  %v31 = vld [vmem:[%s2] sm:$0x1]
  %v33 = vlaneseq
  %v34 = vshrl.u32 %v33, 7
  %v35 = vsub.s32 0, %v34
  %v36 = vrot.slane %v31, %v35
  %v42 = vunpack.c.l.b16 %v27
  %v43 = vunpack.c.l.b16 %v28
  %v44 = vunpack.c.l.b16 %v29
  %v45 = vunpack.c.l.b16 %v30
  %v46 = vpack.c.b16 %v43, %v42
  %v47 = vpack.c.b16 %v45, %v44
  %vm50 = vcmask 261120
  %v52 = vsel %vm50, %v26, 0
  %54 = vmatprep.subr.bf16.mxu0 0
  %55 = vmatpush1.bf16.msra.mxu0 %v46
  %56 = vmatprep.subr.bf16.mxu0 0
  %57 = vmatpush1.bf16.msra.mxu0 %v47
  %58 = vmatprep.subr.bf16.mxu0 0
  %59 = vmatpush1.bf16.msra.mxu0 0
  %60 = vmatprep.subr.bf16.mxu0 0
  %61 = vmatpush1.bf16.msra.mxu0 0
  %62 = vmatprep.subr.bf16.mxu0 0
  %63 = vmatpush1.bf16.msra.mxu0 0
  %64 = vmatprep.subr.bf16.mxu0 0
  %65 = vmatpush1.bf16.msra.mxu0 0
  %66 = vmatprep.subr.bf16.mxu0 0
  %67 = vmatpush1.bf16.msra.mxu0 0
  %68 = vmatprep.subr.bf16.mxu0 0
  %69 = vmatpush1.bf16.msra.mxu0 0
  %70 = vmatprep.subr.bf16.mxu0 0
  %71 = vmatpush1.bf16.msra.mxu0 0
  %72 = vmatprep.subr.bf16.mxu0 0
  %73 = vmatpush1.bf16.msra.mxu0 0
  %74 = vmatprep.subr.bf16.mxu0 0
  %75 = vmatpush1.bf16.msra.mxu0 0
  %76 = vmatprep.subr.bf16.mxu0 0
  %77 = vmatpush1.bf16.msra.mxu0 0
  %78 = vmatprep.subr.bf16.mxu0 0
  %79 = vmatpush1.bf16.msra.mxu0 0
  %80 = vmatprep.subr.bf16.mxu0 0
  %81 = vmatpush1.bf16.msra.mxu0 0
  %82 = vmatprep.subr.bf16.mxu0 0
  %83 = vmatpush1.bf16.msra.mxu0 0
  %84 = vmatprep.subr.bf16.mxu0 0
  %85 = vmatpush1.bf16.msra.mxu0 0
  %86 = vmatprep.mubr.bf16.mxu0 0
  %87 = vmatmul.mubr.bf16.gmra.mrb[0].mxu0 %v52
  %v88 = vpop.f32.mrb[0].mxu0
  %v89 = vadd.f32 %v36, %v88
  %v90 = vpop.f32.mrb[0].mxu0
  %v91 = vpop.f32.mrb[0].mxu0
  %v92 = vadd.f32 %v36, %v91
  %v93 = vpop.f32.mrb[0].mxu0
  %94 = vdwg.mxu0
  %v95 = vld [vmem:[%s3] sm:$0xff]
  %v96 = vld [vmem:[%s3 + $0x8] sm:$0xff]
  %v97 = vadd.f32 %v89, %v95
  %v98 = vadd.f32 %v92, %v96
  %v99 = vld [vmem:[%s4] sm:$0x1]
  %v100 = vld [vmem:[%s5] sm:$0x1]
  %v101 = vsel %vm50, %v97, 0.0
  %102 = vadd.xlane.f32.xlu0 %v101
  %v103 = vpop.xlane.xlu0 %102
  %v104 = vsel %vm50, %v98, 0.0
  %105 = vadd.xlane.f32.xlu0 %v104
  %v106 = vpop.xlane.xlu0 %105
  %v107 = vrcp.pop 32.0
  %v108 = vmul.f32 %v103, %v107
  %v109 = vmul.f32 %v106, %v107
  %v110 = vsub.f32 %v97, %v108
  %v111 = vsub.f32 %v98, %v109
  %v112 = vmul.f32 %v110, %v110
  %v113 = vmul.f32 %v111, %v111
  %v114 = vsel %vm50, %v112, 0.0
  %115 = vadd.xlane.f32.xlu0 %v114
  %v116 = vpop.xlane.xlu0 %115
  %v117 = vsel %vm50, %v113, 0.0
  %118 = vadd.xlane.f32.xlu0 %v117
  %v119 = vpop.xlane.xlu0 %118
  %v120 = vmul.f32 %v116, %v107
  %v121 = vmul.f32 %v119, %v107
  %v122 = vadd.f32 %v120, 1e-06
  %v123 = vadd.f32 %v121, 1e-06
  %v124 = vrsqrt.pop %v122
  %v125 = vrsqrt.pop %v123
  %v126 = vmul.f32 %v110, %v124
  %v127 = vmul.f32 %v111, %v125
  %v129 = vlaneseq
  %v130 = vshrl.u32 %v129, 7
  %v131 = vsub.s32 0, %v130
  %v132 = vrot.slane %v99, %v131
  %v134 = vmul.f32 %v126, %v132
  %v135 = vmul.f32 %v127, %v132
  %v137 = vlaneseq
  %v138 = vshrl.u32 %v137, 7
  %v139 = vsub.s32 0, %v138
  %v140 = vrot.slane %v100, %v139
  %v142 = vadd.f32 %v134, %v140
  %v143 = vadd.f32 %v135, %v140
  %144 = vst.msk [vmem:[%s6] sm:$0xff] %vm50, %v142
  %145 = vst.msk [vmem:[%s6 + $0x8] sm:$0xff] %vm50, %v143
  // Predicated region
  $region26: #{decoder_forward.20} parent=0 // pred_check
    _
  $region27: #{decoder_forward.20} parent=0 // pred_check_branch
    %147 = sbr.rel (0) target = $region29
  $region28: #{decoder_forward.20} parent=0 // pred_region
    _
  $region29: #{decoder_forward.20} parent=0 // pred_fallthru
    _
  // Predicated region
  $region30: #{decoder_forward.20} parent=0 // pred_check
    _
  $region31: #{decoder_forward.20} parent=0 // pred_check_branch
    %149 = sbr.rel (0) target = $region33
  $region32: #{decoder_forward.20} parent=0 // pred_region
    _
  $region33: #{decoder_forward.20} parent=0 // pred_fallthru
    _

// kernel: decoder_forward.19
$region0: #{decoder_forward.19}
  #allocation0 [shape = 'u32[]', space=smem, size = 0x4, offset = 0x4, fixed_abs, tag = 'smem constant byte address 0x4 - core index']
  #allocation1 [shape = 'u32[144,128]{1,0:T(1,128)}', space=vmem, size = 0x12000, scoped, tag = 'internal scratch']
  %s0 = inlined_call_operand.vmem [shape: f32[2,8,96], index: 0, kind: input, shape index: {}]
  %s1 = inlined_call_operand.vmem [shape: f32[2,8,8], index: 1, kind: input, shape index: {}]
  %s2 = inlined_call_operand.vmem [shape: f32[2,8,32], index: 2, kind: output, shape index: {}]
  %s3 = sld [smem:[#allocation0]]
  $region41: #{decoder_forward.19} parent=0
    _
  %s5 = ssub.s32 1, %s3
  %s6 = scalar_select 0, %s5, %s3
  loop: start=0, step=1, limit=4
  $region2: #{decoder_forward.19} parent=0 // loop_pre_header
    _
  $region3: #{decoder_forward.19} parent=0 // loop_header
    %s8 = sphi 0, %s12
    %p9 = scmp.ge.s32.totalorder %s8, 4
    %s18 = sphi 0, %s20
    %s21 = sphi 0, %s18
    %s22 = sphi 0, %s21
    %s38 = sphi 0, %s22
    %s44 = sphi 0, %s46
    %s47 = sphi 0, %s44
    %s48 = sphi 0, %s47
    %s64 = sphi 0, %s48
    %s70 = sphi 0, %s72
    %s73 = sphi 0, %s70
    %s74 = sphi 0, %s73
    %s90 = sphi 0, %s74
  $region4: #{decoder_forward.19} parent=0 // loop_header_branch
    %11 = sbr.rel (%p9) target = $region8
  $region5: #{decoder_forward.19} parent=0 // loop_body
    %s13 = ssub.s32 %s8, 1
    %s14 = ssub.s32 %s8, 2
    %s15 = sadd.s32 %s8, 1
    %s16 = ssub.s32 %s8, %s15
    %p17 = scmp.eq.s32.totalorder %s16, 0
    %s19 = sadd.s32 %s18, 1
    %s20 = scalar_select %p17, %s18, %s19
    %p23 = pneg %p17
    %p24 = scmp.eq.s32.totalorder %s8, 1
    %p25 = por %p23, %p24
    %p26 = scmp.ne.s32.totalorder %s18, %s21
    %p27 = scmp.eq.s32.totalorder %s8, 0
    %p28 = por %p26, %p27
    %p29 = scmp.ne.s32.totalorder %s18, %s21
    %p30 = scmp.eq.s32.totalorder %s13, 1
    %p31 = por %p29, %p30
    %p32 = scmp.ne.s32.totalorder %s21, %s22
    %p33 = scmp.eq.s32.totalorder %s13, 0
    %p34 = por %p32, %p33
    %p35 = scmp.ne.s32.totalorder %s21, %s22
    %p36 = scmp.eq.s32.totalorder %s14, 1
    %p37 = por %p35, %p36
    %p39 = scmp.ne.s32.totalorder %s22, %s38
    %p40 = scmp.eq.s32.totalorder %s14, 0
    %p41 = por %p39, %p40
    %s42 = ssub.s32 %s8, %s15
    %p43 = scmp.eq.s32.totalorder %s42, 0
    %s45 = sadd.s32 %s44, 1
    %s46 = scalar_select %p43, %s44, %s45
    %p49 = pneg %p43
    %p50 = scmp.eq.s32.totalorder %s8, 1
    %p51 = por %p49, %p50
    %p52 = scmp.ne.s32.totalorder %s44, %s47
    %p53 = scmp.eq.s32.totalorder %s8, 0
    %p54 = por %p52, %p53
    %p55 = scmp.ne.s32.totalorder %s44, %s47
    %p56 = scmp.eq.s32.totalorder %s13, 1
    %p57 = por %p55, %p56
    %p58 = scmp.ne.s32.totalorder %s47, %s48
    %p59 = scmp.eq.s32.totalorder %s13, 0
    %p60 = por %p58, %p59
    %p61 = scmp.ne.s32.totalorder %s47, %s48
    %p62 = scmp.eq.s32.totalorder %s14, 1
    %p63 = por %p61, %p62
    %p65 = scmp.ne.s32.totalorder %s48, %s64
    %p66 = scmp.eq.s32.totalorder %s14, 0
    %p67 = por %p65, %p66
    %s68 = ssub.s32 %s8, %s15
    %p69 = scmp.eq.s32.totalorder %s68, 0
    %s71 = sadd.s32 %s70, 1
    %s72 = scalar_select %p69, %s70, %s71
    %p75 = pneg %p69
    %p76 = scmp.eq.s32.totalorder %s8, 1
    %p77 = por %p75, %p76
    %p78 = scmp.ne.s32.totalorder %s70, %s73
    %p79 = scmp.eq.s32.totalorder %s8, 0
    %p80 = por %p78, %p79
    %p81 = scmp.ne.s32.totalorder %s70, %s73
    %p82 = scmp.eq.s32.totalorder %s13, 1
    %p83 = por %p81, %p82
    %p84 = scmp.ne.s32.totalorder %s73, %s74
    %p85 = scmp.eq.s32.totalorder %s13, 0
    %p86 = por %p84, %p85
    %p87 = scmp.ne.s32.totalorder %s73, %s74
    %p88 = scmp.eq.s32.totalorder %s14, 1
    %p89 = por %p87, %p88
    %p91 = scmp.ne.s32.totalorder %s74, %s90
    %p92 = scmp.eq.s32.totalorder %s14, 0
    %p93 = por %p91, %p92
    %p94 = scmp.le.s32.totalorder 1, %s8
    %p95 = scmp.lt.s32.totalorder %s8, 3
    %p96 = pnand %p94, %p95
    %p97 = pneg %p96
    // Predicated region
    $region9: #{decoder_forward.19} parent=5 // pred_check
      _
    $region10: #{decoder_forward.19} parent=5 // pred_check_branch
      %99 = sbr.rel (%p96) target = $region12
    $region11: #{decoder_forward.19} parent=5 // pred_region
      %s100 = ssub.s32 %s8, 1
    $region12: #{decoder_forward.19} parent=5 // pred_fallthru
      _
    %p101 = scmp.lt.s32.totalorder %s8, 2
    // Predicated region
    $region13: #{decoder_forward.19} parent=5 // pred_check
      %p102 = pneg %p101
    $region14: #{decoder_forward.19} parent=5 // pred_check_branch
      %104 = sbr.rel (%p102) target = $region16
    $region15: #{decoder_forward.19} parent=5 // pred_region
      // Predicated region
      $region17: #{decoder_forward.19} parent=15 // pred_check
        %p105 = pneg %p28
      $region18: #{decoder_forward.19} parent=15 // pred_check_branch
        %107 = sbr.rel (%p105) target = $region20
      $region19: #{decoder_forward.19} parent=15 // pred_region
        %p108 = scmp.lt.s32.totalorder %s8, 1
        %s109 = scalar_select %p108, %s8, 1
        %s110 = smul.addr %s109, 8
        %s111 = scalar_lea.vmem %s0, %s110
      $region20: #{decoder_forward.19} parent=15 // pred_fallthru
        _
      // Predicated region
      $region21: #{decoder_forward.19} parent=15 // pred_check
        %p112 = pneg %p54
      $region22: #{decoder_forward.19} parent=15 // pred_check_branch
        %114 = sbr.rel (%p112) target = $region24
      $region23: #{decoder_forward.19} parent=15 // pred_region
        %p115 = scmp.lt.s32.totalorder %s8, 1
        %s116 = scalar_select %p115, %s8, 1
        %s117 = smul.addr %s116, 8
        %s118 = scalar_lea.vmem %s1, %s117
      $region24: #{decoder_forward.19} parent=15 // pred_fallthru
        _
    $region16: #{decoder_forward.19} parent=5 // pred_fallthru
      _
    %p119 = scmp.le.s32.totalorder 1, %s8
    %p120 = scmp.lt.s32.totalorder %s8, 3
    %p121 = pnand %p119, %p120
    %p122 = pneg %p121
    // Predicated region
    $region25: #{decoder_forward.19} parent=5 // pred_check
      _
    $region26: #{decoder_forward.19} parent=5 // pred_check_branch
      %124 = sbr.rel (%p121) target = $region28
    $region27: #{decoder_forward.19} parent=5 // pred_region
      %s125 = ssub.s32 %s8, 1
      %p126 = scmp.lt.s32.totalorder %s13, 1
      %s127 = scalar_select %p126, %s13, 1
      %s128 = smul.addr %s127, 8
      %s129 = scalar_lea.vmem %s0, %s128
      %p130 = pneg %p34
      %p131 = pneg %p31
      %p132 = scmp.lt.s32.totalorder %s13, 1
      %s133 = scalar_select %p132, %s13, 1
      %s134 = smul.addr %s133, 8
      %s135 = scalar_lea.vmem %s1, %s134
      %p136 = pneg %p60
      %p137 = pneg %p57
      %p138 = pneg %p86
      %p139 = pneg %p83
      %p140 = scmp.lt.s32.totalorder %s13, 1
      %s141 = scalar_select %p140, %s13, 1
      %s142 = smul.addr %s141, 8
      %s143 = scalar_lea.vmem %s2, %s142
      %p144 = scmp.lt.s32.totalorder %s13, 1
      %s145 = scalar_select %p144, %s13, 1
      %s146 = smul.addr %s145, 8
      %s147 = scalar_lea.vmem %s0, %s146
      %p148 = scmp.lt.s32.totalorder %s13, 1
      %s149 = scalar_select %p148, %s13, 1
      %s150 = smul.addr %s149, 8
      %s151 = scalar_lea.vmem %s1, %s150
      %p152 = scmp.lt.s32.totalorder %s13, 1
      %s153 = scalar_select %p152, %s13, 1
      %s154 = smul.addr %s153, 8
      %s155 = scalar_lea.vmem %s2, %s154
      %v157 = vld [vmem:[%s147] sm:$0xff]
      %v158 = vld [vmem:[%s151] sm:$0xff]
      %v159 = vmul.f32 %v157, 0.25
      %v160 = vpack.c.bf16 %v159, %v159
      %v161 = vpack.c.bf16 %v157, %v157
      %163 = vrot.lane.b32.xlu0 %v161, 96
      %v164 = vpop.permute.xlu0 %163
      %vm165 = vcmask 130048
      %v167 = vsel %vm165, %v160, 0
      %v170 = vsel %vm165, %v164, 0
      %172 = vmatprep.subr.bf16.mxu0 0
      %173 = vmatpush1.bf16.xpose.msra.mxu0 %v170
      %174 = vmatprep.subr.bf16.mxu0 0
      %175 = vmatpush1.bf16.xpose.msra.mxu0 0
      %176 = vmatprep.subr.bf16.mxu0 0
      %177 = vmatpush1.bf16.xpose.msra.mxu0 0
      %178 = vmatprep.subr.bf16.mxu0 0
      %179 = vmatpush1.bf16.xpose.msra.mxu0 0
      %180 = vmatprep.subr.bf16.mxu0 0
      %181 = vmatpush1.bf16.xpose.msra.mxu0 0
      %182 = vmatprep.subr.bf16.mxu0 0
      %183 = vmatpush1.bf16.xpose.msra.mxu0 0
      %184 = vmatprep.subr.bf16.mxu0 0
      %185 = vmatpush1.bf16.xpose.msra.mxu0 0
      %186 = vmatprep.subr.bf16.mxu0 0
      %187 = vmatpush1.bf16.xpose.msra.mxu0 0
      %188 = vmatprep.subr.bf16.mxu0 0
      %189 = vmatpush1.bf16.xpose.msra.mxu0 0
      %190 = vmatprep.subr.bf16.mxu0 0
      %191 = vmatpush1.bf16.xpose.msra.mxu0 0
      %192 = vmatprep.subr.bf16.mxu0 0
      %193 = vmatpush1.bf16.xpose.msra.mxu0 0
      %194 = vmatprep.subr.bf16.mxu0 0
      %195 = vmatpush1.bf16.xpose.msra.mxu0 0
      %196 = vmatprep.subr.bf16.mxu0 0
      %197 = vmatpush1.bf16.xpose.msra.mxu0 0
      %198 = vmatprep.subr.bf16.mxu0 0
      %199 = vmatpush1.bf16.xpose.msra.mxu0 0
      %200 = vmatprep.subr.bf16.mxu0 0
      %201 = vmatpush1.bf16.xpose.msra.mxu0 0
      %202 = vmatprep.subr.bf16.mxu0 0
      %203 = vmatpush1.bf16.xpose.msra.mxu0 0
      %204 = vmatprep.mubr.bf16.mxu0 0
      %205 = vmatmul.mubr.bf16.gmra.mrb[0].mxu0 %v167
      %v206 = vpop.f32.mrb[0].mxu0
      %v207 = vadd.f32 %v158, %v206
      %v208 = vpop.f32.mrb[0].mxu0
      %v209 = vpop.f32.mrb[0].mxu0
      %v210 = vpop.f32.mrb[0].mxu0
      %211 = vdwg.mxu0
      %vm212 = vcmask 64512
      %v213 = vsel %vm212, %v207, -inf
      %214 = vmax.xlane.f32.xlu0 %v213
      %v215 = vpop.xlane.xlu0 %214
      %v216 = vsub.f32 %v207, %v215
      %v217 = vmul.f32 %v216, 1.442695
      %v218 = vpow.pop %v217
      %v219 = vsel %vm212, %v218, 0.0
      %220 = vadd.xlane.f32.xlu0 %v219
      %v221 = vpop.xlane.xlu0 %220
      %v222 = vrcp.pop %v221
      %v223 = vmul.f32 %v218, %v222
      %v224 = vpack.c.bf16 %v223, %v223
      %225 = vrot.lane.b32.xlu0 %v161, 64
      %v226 = vpop.permute.xlu0 %225
      %v228 = vsel %vm212, %v224, 0
      %vm230 = vcmask 1043456
      %v232 = vsel %vm230, %v226, 0
      %234 = vmatprep.subr.bf16.mxu0 0
      %235 = vmatpush1.bf16.msra.mxu0 %v232
      %236 = vmatprep.subr.bf16.mxu0 0
      %237 = vmatpush1.bf16.msra.mxu0 0
      %238 = vmatprep.subr.bf16.mxu0 0
      %239 = vmatpush1.bf16.msra.mxu0 0
      %240 = vmatprep.subr.bf16.mxu0 0
      %241 = vmatpush1.bf16.msra.mxu0 0
      %242 = vmatprep.subr.bf16.mxu0 0
      %243 = vmatpush1.bf16.msra.mxu0 0
      %244 = vmatprep.subr.bf16.mxu0 0
      %245 = vmatpush1.bf16.msra.mxu0 0
      %246 = vmatprep.subr.bf16.mxu0 0
      %247 = vmatpush1.bf16.msra.mxu0 0
      %248 = vmatprep.subr.bf16.mxu0 0
      %249 = vmatpush1.bf16.msra.mxu0 0
      %250 = vmatprep.subr.bf16.mxu0 0
      %251 = vmatpush1.bf16.msra.mxu0 0
      %252 = vmatprep.subr.bf16.mxu0 0
      %253 = vmatpush1.bf16.msra.mxu0 0
      %254 = vmatprep.subr.bf16.mxu0 0
      %255 = vmatpush1.bf16.msra.mxu0 0
      %256 = vmatprep.subr.bf16.mxu0 0
      %257 = vmatpush1.bf16.msra.mxu0 0
      %258 = vmatprep.subr.bf16.mxu0 0
      %259 = vmatpush1.bf16.msra.mxu0 0
      %260 = vmatprep.subr.bf16.mxu0 0
      %261 = vmatpush1.bf16.msra.mxu0 0
      %262 = vmatprep.subr.bf16.mxu0 0
      %263 = vmatpush1.bf16.msra.mxu0 0
      %264 = vmatprep.subr.bf16.mxu0 0
      %265 = vmatpush1.bf16.msra.mxu0 0
      %266 = vmatprep.mubr.bf16.mxu0 0
      %267 = vmatmul.mubr.bf16.gmra.mrb[0].mxu0 %v228
      %v268 = vpop.f32.mrb[0].mxu0
      %v269 = vadd.f32 0.0, %v268
      %v270 = vpop.f32.mrb[0].mxu0
      %v271 = vpop.f32.mrb[0].mxu0
      %v272 = vpop.f32.mrb[0].mxu0
      %273 = vdwg.mxu0
      %275 = vrot.lane.b32.xlu0 %v160, 112
      %v276 = vpop.permute.xlu0 %275
      %277 = vrot.lane.b32.xlu0 %v161, 80
      %v278 = vpop.permute.xlu0 %277
      %v280 = vsel %vm165, %v276, 0
      %v283 = vsel %vm165, %v278, 0
      %285 = vmatprep.subr.bf16.mxu0 0
      %286 = vmatpush1.bf16.xpose.msra.mxu0 %v283
      %287 = vmatprep.subr.bf16.mxu0 0
      %288 = vmatpush1.bf16.xpose.msra.mxu0 0
      %289 = vmatprep.subr.bf16.mxu0 0
      %290 = vmatpush1.bf16.xpose.msra.mxu0 0
      %291 = vmatprep.subr.bf16.mxu0 0
      %292 = vmatpush1.bf16.xpose.msra.mxu0 0
      %293 = vmatprep.subr.bf16.mxu0 0
      %294 = vmatpush1.bf16.xpose.msra.mxu0 0
      %295 = vmatprep.subr.bf16.mxu0 0
      %296 = vmatpush1.bf16.xpose.msra.mxu0 0
      %297 = vmatprep.subr.bf16.mxu0 0
      %298 = vmatpush1.bf16.xpose.msra.mxu0 0
      %299 = vmatprep.subr.bf16.mxu0 0
      %300 = vmatpush1.bf16.xpose.msra.mxu0 0
      %301 = vmatprep.subr.bf16.mxu0 0
      %302 = vmatpush1.bf16.xpose.msra.mxu0 0
      %303 = vmatprep.subr.bf16.mxu0 0
      %304 = vmatpush1.bf16.xpose.msra.mxu0 0
      %305 = vmatprep.subr.bf16.mxu0 0
      %306 = vmatpush1.bf16.xpose.msra.mxu0 0
      %307 = vmatprep.subr.bf16.mxu0 0
      %308 = vmatpush1.bf16.xpose.msra.mxu0 0
      %309 = vmatprep.subr.bf16.mxu0 0
      %310 = vmatpush1.bf16.xpose.msra.mxu0 0
      %311 = vmatprep.subr.bf16.mxu0 0
      %312 = vmatpush1.bf16.xpose.msra.mxu0 0
      %313 = vmatprep.subr.bf16.mxu0 0
      %314 = vmatpush1.bf16.xpose.msra.mxu0 0
      %315 = vmatprep.subr.bf16.mxu0 0
      %316 = vmatpush1.bf16.xpose.msra.mxu0 0
      %317 = vmatprep.mubr.bf16.mxu0 0
      %318 = vmatmul.mubr.bf16.gmra.mrb[0].mxu0 %v280
      %v319 = vpop.f32.mrb[0].mxu0
      %v320 = vadd.f32 %v158, %v319
      %v321 = vpop.f32.mrb[0].mxu0
      %v322 = vpop.f32.mrb[0].mxu0
      %v323 = vpop.f32.mrb[0].mxu0
      %324 = vdwg.mxu0
      %v325 = vsel %vm212, %v320, -inf
      %326 = vmax.xlane.f32.xlu0 %v325
      %v327 = vpop.xlane.xlu0 %326
      %v328 = vsub.f32 %v320, %v327
      %v329 = vmul.f32 %v328, 1.442695
      %v330 = vpow.pop %v329
      %v331 = vsel %vm212, %v330, 0.0
      %332 = vadd.xlane.f32.xlu0 %v331
      %v333 = vpop.xlane.xlu0 %332
      %v334 = vrcp.pop %v333
      %v335 = vmul.f32 %v330, %v334
      %v336 = vpack.c.bf16 %v335, %v335
      %337 = vrot.lane.b32.xlu0 %v161, 48
      %v338 = vpop.permute.xlu0 %337
      %v340 = vsel %vm212, %v336, 0
      %v343 = vsel %vm230, %v338, 0
      %345 = vmatprep.subr.bf16.mxu0 0
      %346 = vmatpush1.bf16.msra.mxu0 %v343
      %347 = vmatprep.subr.bf16.mxu0 0
      %348 = vmatpush1.bf16.msra.mxu0 0
      %349 = vmatprep.subr.bf16.mxu0 0
      %350 = vmatpush1.bf16.msra.mxu0 0
      %351 = vmatprep.subr.bf16.mxu0 0
      %352 = vmatpush1.bf16.msra.mxu0 0
      %353 = vmatprep.subr.bf16.mxu0 0
      %354 = vmatpush1.bf16.msra.mxu0 0
      %355 = vmatprep.subr.bf16.mxu0 0
      %356 = vmatpush1.bf16.msra.mxu0 0
      %357 = vmatprep.subr.bf16.mxu0 0
      %358 = vmatpush1.bf16.msra.mxu0 0
      %359 = vmatprep.subr.bf16.mxu0 0
      %360 = vmatpush1.bf16.msra.mxu0 0
      %361 = vmatprep.subr.bf16.mxu0 0
      %362 = vmatpush1.bf16.msra.mxu0 0
      %363 = vmatprep.subr.bf16.mxu0 0
      %364 = vmatpush1.bf16.msra.mxu0 0
      %365 = vmatprep.subr.bf16.mxu0 0
      %366 = vmatpush1.bf16.msra.mxu0 0
      %367 = vmatprep.subr.bf16.mxu0 0
      %368 = vmatpush1.bf16.msra.mxu0 0
      %369 = vmatprep.subr.bf16.mxu0 0
      %370 = vmatpush1.bf16.msra.mxu0 0
      %371 = vmatprep.subr.bf16.mxu0 0
      %372 = vmatpush1.bf16.msra.mxu0 0
      %373 = vmatprep.subr.bf16.mxu0 0
      %374 = vmatpush1.bf16.msra.mxu0 0
      %375 = vmatprep.subr.bf16.mxu0 0
      %376 = vmatpush1.bf16.msra.mxu0 0
      %377 = vmatprep.mubr.bf16.mxu0 0
      %378 = vmatmul.mubr.bf16.gmra.mrb[0].mxu0 %v340
      %v379 = vpop.f32.mrb[0].mxu0
      %v380 = vadd.f32 0.0, %v379
      %v381 = vpop.f32.mrb[0].mxu0
      %v382 = vpop.f32.mrb[0].mxu0
      %v383 = vpop.f32.mrb[0].mxu0
      %384 = vdwg.mxu0
      %386 = vrot.lane.b32.xlu0 %v380, 16
      %v387 = vpop.permute.xlu0 %386
      %v389 = vsel %vm165, %v269, %v387
      %vm390 = vcmask 261120
      %391 = vst.msk [vmem:[%s155] sm:$0xff] %vm390, %v389
      %p392 = scmp.lt.s32.totalorder %s13, 1
      %s393 = scalar_select %p392, %s13, 1
      %s394 = smul.addr %s393, 8
      %s395 = scalar_lea.vmem %s2, %s394
      // Predicated region
      $region29: #{decoder_forward.19} parent=27 // pred_check
        %p396 = pneg %p83
      $region30: #{decoder_forward.19} parent=27 // pred_check_branch
        %398 = sbr.rel (%p396) target = $region32
      $region31: #{decoder_forward.19} parent=27 // pred_region
        _
      $region32: #{decoder_forward.19} parent=27 // pred_fallthru
        _
    $region28: #{decoder_forward.19} parent=5 // pred_fallthru
      _
    %p399 = scmp.le.s32.totalorder 2, %s8
    // Predicated region
    $region33: #{decoder_forward.19} parent=5 // pred_check
      %p400 = pneg %p399
    $region34: #{decoder_forward.19} parent=5 // pred_check_branch
      %402 = sbr.rel (%p400) target = $region36
    $region35: #{decoder_forward.19} parent=5 // pred_region
      %s403 = ssub.s32 %s8, 2
      // Predicated region
      $region37: #{decoder_forward.19} parent=35 // pred_check
        %p404 = pneg %p89
      $region38: #{decoder_forward.19} parent=35 // pred_check_branch
        %406 = sbr.rel (%p404) target = $region40
      $region39: #{decoder_forward.19} parent=35 // pred_region
        %p407 = scmp.lt.s32.totalorder %s14, 1
        %s408 = scalar_select %p407, %s14, 1
        %s409 = smul.addr %s408, 8
        %s410 = scalar_lea.vmem %s2, %s409
      $region40: #{decoder_forward.19} parent=35 // pred_fallthru
        _
    $region36: #{decoder_forward.19} parent=5 // pred_fallthru
      _
  $region6: #{decoder_forward.19} parent=0 // loop_footer
    %s12 = sadd.s32 1, %s8
  $region7: #{decoder_forward.19} parent=0 // loop_footer_branch
    %7 = sbr.rel target = $region3
  $region8: #{decoder_forward.19} parent=0 // loop_exit
    _

// kernel: decoder_forward.21
$region0: #{decoder_forward.21}
  #allocation0 [shape = 'u32[]', space=smem, size = 0x4, offset = 0x4, fixed_abs, tag = 'smem constant byte address 0x4 - core index']
  #allocation1 [shape = 'u32[144,128]{1,0:T(1,128)}', space=vmem, size = 0x12000, scoped, tag = 'internal scratch']
  %s0 = inlined_call_operand.vmem [shape: f32[16,32], index: 0, kind: input, shape index: {}]
  %s1 = inlined_call_operand.vmem [shape: bf16[32,32], index: 1, kind: input, shape index: {}]
  %s2 = inlined_call_operand.vmem [shape: f32[1,32], index: 2, kind: input, shape index: {}]
  %s3 = inlined_call_operand.vmem [shape: f32[16,32], index: 3, kind: output, shape index: {}]
  %s4 = sld [smem:[#allocation0]]
  $region22: #{decoder_forward.21} parent=0
    _
  %s6 = ssub.s32 1, %s4
  %s7 = scalar_select 0, %s6, %s4
  // Predicated region
  $region2: #{decoder_forward.21} parent=0 // pred_check
    _
  $region3: #{decoder_forward.21} parent=0 // pred_check_branch
    %9 = sbr.rel (0) target = $region5
  $region4: #{decoder_forward.21} parent=0 // pred_region
    _
  $region5: #{decoder_forward.21} parent=0 // pred_fallthru
    _
  // Predicated region
  $region6: #{decoder_forward.21} parent=0 // pred_check
    _
  $region7: #{decoder_forward.21} parent=0 // pred_check_branch
    %11 = sbr.rel (0) target = $region9
  $region8: #{decoder_forward.21} parent=0 // pred_region
    _
  $region9: #{decoder_forward.21} parent=0 // pred_fallthru
    _
  // Predicated region
  $region10: #{decoder_forward.21} parent=0 // pred_check
    _
  $region11: #{decoder_forward.21} parent=0 // pred_check_branch
    %13 = sbr.rel (0) target = $region13
  $region12: #{decoder_forward.21} parent=0 // pred_region
    _
  $region13: #{decoder_forward.21} parent=0 // pred_fallthru
    _
  %v15 = vld [vmem:[%s0] sm:$0xff]
  %v16 = vld [vmem:[%s0 + $0x8] sm:$0xff]
  %v17 = vpack.c.bf16 %v16, %v15
  %v18 = vld [vmem:[%s1] sm:$0xf]
  %v19 = vld [vmem:[%s1 + $0x4] sm:$0xf]
  %v20 = vld [vmem:[%s1 + $0x8] sm:$0xf]
  %v21 = vld [vmem:[%s1 + $0xc] sm:$0xf]
  %v22 = vld [vmem:[%s2] sm:$0x1]
  %v24 = vlaneseq
  %v25 = vshrl.u32 %v24, 7
  %v26 = vsub.s32 0, %v25
  %v27 = vrot.slane %v22, %v26
  %v33 = vunpack.c.l.b16 %v18
  %v34 = vunpack.c.l.b16 %v19
  %v35 = vunpack.c.l.b16 %v20
  %v36 = vunpack.c.l.b16 %v21
  %v37 = vpack.c.b16 %v34, %v33
  %v38 = vpack.c.b16 %v36, %v35
  %vm41 = vcmask 261120
  %v43 = vsel %vm41, %v17, 0
  %45 = vmatprep.subr.bf16.mxu0 0
  %46 = vmatpush1.bf16.msra.mxu0 %v37
  %47 = vmatprep.subr.bf16.mxu0 0
  %48 = vmatpush1.bf16.msra.mxu0 %v38
  %49 = vmatprep.subr.bf16.mxu0 0
  %50 = vmatpush1.bf16.msra.mxu0 0
  %51 = vmatprep.subr.bf16.mxu0 0
  %52 = vmatpush1.bf16.msra.mxu0 0
  %53 = vmatprep.subr.bf16.mxu0 0
  %54 = vmatpush1.bf16.msra.mxu0 0
  %55 = vmatprep.subr.bf16.mxu0 0
  %56 = vmatpush1.bf16.msra.mxu0 0
  %57 = vmatprep.subr.bf16.mxu0 0
  %58 = vmatpush1.bf16.msra.mxu0 0
  %59 = vmatprep.subr.bf16.mxu0 0
  %60 = vmatpush1.bf16.msra.mxu0 0
  %61 = vmatprep.subr.bf16.mxu0 0
  %62 = vmatpush1.bf16.msra.mxu0 0
  %63 = vmatprep.subr.bf16.mxu0 0
  %64 = vmatpush1.bf16.msra.mxu0 0
  %65 = vmatprep.subr.bf16.mxu0 0
  %66 = vmatpush1.bf16.msra.mxu0 0
  %67 = vmatprep.subr.bf16.mxu0 0
  %68 = vmatpush1.bf16.msra.mxu0 0
  %69 = vmatprep.subr.bf16.mxu0 0
  %70 = vmatpush1.bf16.msra.mxu0 0
  %71 = vmatprep.subr.bf16.mxu0 0
  %72 = vmatpush1.bf16.msra.mxu0 0
  %73 = vmatprep.subr.bf16.mxu0 0
  %74 = vmatpush1.bf16.msra.mxu0 0
  %75 = vmatprep.subr.bf16.mxu0 0
  %76 = vmatpush1.bf16.msra.mxu0 0
  %77 = vmatprep.mubr.bf16.mxu0 0
  %78 = vmatmul.mubr.bf16.gmra.mrb[0].mxu0 %v43
  %v79 = vpop.f32.mrb[0].mxu0
  %v80 = vadd.f32 %v27, %v79
  %v81 = vpop.f32.mrb[0].mxu0
  %v82 = vpop.f32.mrb[0].mxu0
  %v83 = vadd.f32 %v27, %v82
  %v84 = vpop.f32.mrb[0].mxu0
  %85 = vdwg.mxu0
  %86 = vst.msk [vmem:[%s3] sm:$0xff] %vm41, %v80
  %87 = vst.msk [vmem:[%s3 + $0x8] sm:$0xff] %vm41, %v83
  // Predicated region
  $region14: #{decoder_forward.21} parent=0 // pred_check
    _
  $region15: #{decoder_forward.21} parent=0 // pred_check_branch
    %89 = sbr.rel (0) target = $region17
  $region16: #{decoder_forward.21} parent=0 // pred_region
    _
  $region17: #{decoder_forward.21} parent=0 // pred_fallthru
    _
  // Predicated region
  $region18: #{decoder_forward.21} parent=0 // pred_check
    _
  $region19: #{decoder_forward.21} parent=0 // pred_check_branch
    %91 = sbr.rel (0) target = $region21
  $region20: #{decoder_forward.21} parent=0 // pred_region
    _
  $region21: #{decoder_forward.21} parent=0 // pred_fallthru
    _

// kernel: decoder_forward.22
$region0: #{decoder_forward.22}
  #allocation0 [shape = 'u32[]', space=smem, size = 0x4, offset = 0x4, fixed_abs, tag = 'smem constant byte address 0x4 - core index']
  #allocation1 [shape = 'u32[144,128]{1,0:T(1,128)}', space=vmem, size = 0x12000, scoped, tag = 'internal scratch']
  %s0 = inlined_call_operand.vmem [shape: f32[16,32], index: 0, kind: input, shape index: {}]
  %s1 = inlined_call_operand.vmem [shape: bf16[32,64], index: 1, kind: input, shape index: {}]
  %s2 = inlined_call_operand.vmem [shape: f32[1,64], index: 2, kind: input, shape index: {}]
  %s3 = inlined_call_operand.vmem [shape: f32[16,64], index: 3, kind: output, shape index: {}]
  %s4 = sld [smem:[#allocation0]]
  $region22: #{decoder_forward.22} parent=0
    _
  %s6 = ssub.s32 1, %s4
  %s7 = scalar_select 0, %s6, %s4
  // Predicated region
  $region2: #{decoder_forward.22} parent=0 // pred_check
    _
  $region3: #{decoder_forward.22} parent=0 // pred_check_branch
    %9 = sbr.rel (0) target = $region5
  $region4: #{decoder_forward.22} parent=0 // pred_region
    _
  $region5: #{decoder_forward.22} parent=0 // pred_fallthru
    _
  // Predicated region
  $region6: #{decoder_forward.22} parent=0 // pred_check
    _
  $region7: #{decoder_forward.22} parent=0 // pred_check_branch
    %11 = sbr.rel (0) target = $region9
  $region8: #{decoder_forward.22} parent=0 // pred_region
    _
  $region9: #{decoder_forward.22} parent=0 // pred_fallthru
    _
  // Predicated region
  $region10: #{decoder_forward.22} parent=0 // pred_check
    _
  $region11: #{decoder_forward.22} parent=0 // pred_check_branch
    %13 = sbr.rel (0) target = $region13
  $region12: #{decoder_forward.22} parent=0 // pred_region
    _
  $region13: #{decoder_forward.22} parent=0 // pred_fallthru
    _
  %v15 = vld [vmem:[%s0] sm:$0xff]
  %v16 = vld [vmem:[%s0 + $0x8] sm:$0xff]
  %v17 = vpack.c.bf16 %v16, %v15
  %v18 = vld [vmem:[%s1] sm:$0xf]
  %v19 = vld [vmem:[%s1 + $0x4] sm:$0xf]
  %v20 = vld [vmem:[%s1 + $0x8] sm:$0xf]
  %v21 = vld [vmem:[%s1 + $0xc] sm:$0xf]
  %v22 = vld [vmem:[%s2] sm:$0x1]
  %v24 = vlaneseq
  %v25 = vshrl.u32 %v24, 7
  %v26 = vsub.s32 0, %v25
  %v27 = vrot.slane %v22, %v26
  %v33 = vunpack.c.l.b16 %v18
  %v34 = vunpack.c.l.b16 %v19
  %v35 = vunpack.c.l.b16 %v20
  %v36 = vunpack.c.l.b16 %v21
  %v37 = vpack.c.b16 %v34, %v33
  %v38 = vpack.c.b16 %v36, %v35
  %vm41 = vcmask 261120
  %v43 = vsel %vm41, %v17, 0
  %45 = vmatprep.subr.bf16.mxu0 0
  %46 = vmatpush1.bf16.msra.mxu0 %v37
  %47 = vmatprep.subr.bf16.mxu0 0
  %48 = vmatpush1.bf16.msra.mxu0 %v38
  %49 = vmatprep.subr.bf16.mxu0 0
  %50 = vmatpush1.bf16.msra.mxu0 0
  %51 = vmatprep.subr.bf16.mxu0 0
  %52 = vmatpush1.bf16.msra.mxu0 0
  %53 = vmatprep.subr.bf16.mxu0 0
  %54 = vmatpush1.bf16.msra.mxu0 0
  %55 = vmatprep.subr.bf16.mxu0 0
  %56 = vmatpush1.bf16.msra.mxu0 0
  %57 = vmatprep.subr.bf16.mxu0 0
  %58 = vmatpush1.bf16.msra.mxu0 0
  %59 = vmatprep.subr.bf16.mxu0 0
  %60 = vmatpush1.bf16.msra.mxu0 0
  %61 = vmatprep.subr.bf16.mxu0 0
  %62 = vmatpush1.bf16.msra.mxu0 0
  %63 = vmatprep.subr.bf16.mxu0 0
  %64 = vmatpush1.bf16.msra.mxu0 0
  %65 = vmatprep.subr.bf16.mxu0 0
  %66 = vmatpush1.bf16.msra.mxu0 0
  %67 = vmatprep.subr.bf16.mxu0 0
  %68 = vmatpush1.bf16.msra.mxu0 0
  %69 = vmatprep.subr.bf16.mxu0 0
  %70 = vmatpush1.bf16.msra.mxu0 0
  %71 = vmatprep.subr.bf16.mxu0 0
  %72 = vmatpush1.bf16.msra.mxu0 0
  %73 = vmatprep.subr.bf16.mxu0 0
  %74 = vmatpush1.bf16.msra.mxu0 0
  %75 = vmatprep.subr.bf16.mxu0 0
  %76 = vmatpush1.bf16.msra.mxu0 0
  %77 = vmatprep.mubr.bf16.mxu0 0
  %78 = vmatmul.mubr.bf16.gmra.mrb[0].mxu0 %v43
  %v79 = vpop.f32.mrb[0].mxu0
  %v80 = vadd.f32 %v27, %v79
  %v81 = vpop.f32.mrb[0].mxu0
  %v82 = vpop.f32.mrb[0].mxu0
  %v83 = vadd.f32 %v27, %v82
  %v84 = vpop.f32.mrb[0].mxu0
  %85 = vdwg.mxu0
  %vm86 = vcmask 523264
  %87 = vst.msk [vmem:[%s3] sm:$0xff] %vm86, %v80
  %88 = vst.msk [vmem:[%s3 + $0x8] sm:$0xff] %vm86, %v83
  // Predicated region
  $region14: #{decoder_forward.22} parent=0 // pred_check
    _
  $region15: #{decoder_forward.22} parent=0 // pred_check_branch
    %90 = sbr.rel (0) target = $region17
  $region16: #{decoder_forward.22} parent=0 // pred_region
    _
  $region17: #{decoder_forward.22} parent=0 // pred_fallthru
    _
  // Predicated region
  $region18: #{decoder_forward.22} parent=0 // pred_check
    _
  $region19: #{decoder_forward.22} parent=0 // pred_check_branch
    %92 = sbr.rel (0) target = $region21
  $region20: #{decoder_forward.22} parent=0 // pred_region
    _
  $region21: #{decoder_forward.22} parent=0 // pred_fallthru
    _

// kernel: decoder_forward.23
$region0: #{decoder_forward.23}
  #allocation0 [shape = 'u32[]', space=smem, size = 0x4, offset = 0x4, fixed_abs, tag = 'smem constant byte address 0x4 - core index']
  #allocation1 [shape = 'u32[144,128]{1,0:T(1,128)}', space=vmem, size = 0x12000, scoped, tag = 'internal scratch']
  %s0 = inlined_call_operand.vmem [shape: f32[2,8,32], index: 0, kind: input, shape index: {}]
  %s1 = inlined_call_operand.vmem [shape: f32[2,8,64], index: 1, kind: input, shape index: {}]
  %s2 = inlined_call_operand.vmem [shape: f32[2,8,8], index: 2, kind: input, shape index: {}]
  %s3 = inlined_call_operand.vmem [shape: f32[2,8,32], index: 3, kind: output, shape index: {}]
  %s4 = sld [smem:[#allocation0]]
  $region45: #{decoder_forward.23} parent=0
    _
  %s6 = ssub.s32 1, %s4
  %s7 = scalar_select 0, %s6, %s4
  loop: start=0, step=1, limit=4
  $region2: #{decoder_forward.23} parent=0 // loop_pre_header
    _
  $region3: #{decoder_forward.23} parent=0 // loop_header
    %s9 = sphi 0, %s13
    %p10 = scmp.ge.s32.totalorder %s9, 4
    %s19 = sphi 0, %s21
    %s22 = sphi 0, %s19
    %s23 = sphi 0, %s22
    %s39 = sphi 0, %s23
    %s45 = sphi 0, %s47
    %s48 = sphi 0, %s45
    %s49 = sphi 0, %s48
    %s65 = sphi 0, %s49
    %s71 = sphi 0, %s73
    %s74 = sphi 0, %s71
    %s75 = sphi 0, %s74
    %s91 = sphi 0, %s75
    %s97 = sphi 0, %s99
    %s100 = sphi 0, %s97
    %s101 = sphi 0, %s100
    %s117 = sphi 0, %s101
  $region4: #{decoder_forward.23} parent=0 // loop_header_branch
    %12 = sbr.rel (%p10) target = $region8
  $region5: #{decoder_forward.23} parent=0 // loop_body
    %s14 = ssub.s32 %s9, 1
    %s15 = ssub.s32 %s9, 2
    %s16 = sadd.s32 %s9, 1
    %s17 = ssub.s32 %s9, %s16
    %p18 = scmp.eq.s32.totalorder %s17, 0
    %s20 = sadd.s32 %s19, 1
    %s21 = scalar_select %p18, %s19, %s20
    %p24 = pneg %p18
    %p25 = scmp.eq.s32.totalorder %s9, 1
    %p26 = por %p24, %p25
    %p27 = scmp.ne.s32.totalorder %s19, %s22
    %p28 = scmp.eq.s32.totalorder %s9, 0
    %p29 = por %p27, %p28
    %p30 = scmp.ne.s32.totalorder %s19, %s22
    %p31 = scmp.eq.s32.totalorder %s14, 1
    %p32 = por %p30, %p31
    %p33 = scmp.ne.s32.totalorder %s22, %s23
    %p34 = scmp.eq.s32.totalorder %s14, 0
    %p35 = por %p33, %p34
    %p36 = scmp.ne.s32.totalorder %s22, %s23
    %p37 = scmp.eq.s32.totalorder %s15, 1
    %p38 = por %p36, %p37
    %p40 = scmp.ne.s32.totalorder %s23, %s39
    %p41 = scmp.eq.s32.totalorder %s15, 0
    %p42 = por %p40, %p41
    %s43 = ssub.s32 %s9, %s16
    %p44 = scmp.eq.s32.totalorder %s43, 0
    %s46 = sadd.s32 %s45, 1
    %s47 = scalar_select %p44, %s45, %s46
    %p50 = pneg %p44
    %p51 = scmp.eq.s32.totalorder %s9, 1
    %p52 = por %p50, %p51
    %p53 = scmp.ne.s32.totalorder %s45, %s48
    %p54 = scmp.eq.s32.totalorder %s9, 0
    %p55 = por %p53, %p54
    %p56 = scmp.ne.s32.totalorder %s45, %s48
    %p57 = scmp.eq.s32.totalorder %s14, 1
    %p58 = por %p56, %p57
    %p59 = scmp.ne.s32.totalorder %s48, %s49
    %p60 = scmp.eq.s32.totalorder %s14, 0
    %p61 = por %p59, %p60
    %p62 = scmp.ne.s32.totalorder %s48, %s49
    %p63 = scmp.eq.s32.totalorder %s15, 1
    %p64 = por %p62, %p63
    %p66 = scmp.ne.s32.totalorder %s49, %s65
    %p67 = scmp.eq.s32.totalorder %s15, 0
    %p68 = por %p66, %p67
    %s69 = ssub.s32 %s9, %s16
    %p70 = scmp.eq.s32.totalorder %s69, 0
    %s72 = sadd.s32 %s71, 1
    %s73 = scalar_select %p70, %s71, %s72
    %p76 = pneg %p70
    %p77 = scmp.eq.s32.totalorder %s9, 1
    %p78 = por %p76, %p77
    %p79 = scmp.ne.s32.totalorder %s71, %s74
    %p80 = scmp.eq.s32.totalorder %s9, 0
    %p81 = por %p79, %p80
    %p82 = scmp.ne.s32.totalorder %s71, %s74
    %p83 = scmp.eq.s32.totalorder %s14, 1
    %p84 = por %p82, %p83
    %p85 = scmp.ne.s32.totalorder %s74, %s75
    %p86 = scmp.eq.s32.totalorder %s14, 0
    %p87 = por %p85, %p86
    %p88 = scmp.ne.s32.totalorder %s74, %s75
    %p89 = scmp.eq.s32.totalorder %s15, 1
    %p90 = por %p88, %p89
    %p92 = scmp.ne.s32.totalorder %s75, %s91
    %p93 = scmp.eq.s32.totalorder %s15, 0
    %p94 = por %p92, %p93
    %s95 = ssub.s32 %s9, %s16
    %p96 = scmp.eq.s32.totalorder %s95, 0
    %s98 = sadd.s32 %s97, 1
    %s99 = scalar_select %p96, %s97, %s98
    %p102 = pneg %p96
    %p103 = scmp.eq.s32.totalorder %s9, 1
    %p104 = por %p102, %p103
    %p105 = scmp.ne.s32.totalorder %s97, %s100
    %p106 = scmp.eq.s32.totalorder %s9, 0
    %p107 = por %p105, %p106
    %p108 = scmp.ne.s32.totalorder %s97, %s100
    %p109 = scmp.eq.s32.totalorder %s14, 1
    %p110 = por %p108, %p109
    %p111 = scmp.ne.s32.totalorder %s100, %s101
    %p112 = scmp.eq.s32.totalorder %s14, 0
    %p113 = por %p111, %p112
    %p114 = scmp.ne.s32.totalorder %s100, %s101
    %p115 = scmp.eq.s32.totalorder %s15, 1
    %p116 = por %p114, %p115
    %p118 = scmp.ne.s32.totalorder %s101, %s117
    %p119 = scmp.eq.s32.totalorder %s15, 0
    %p120 = por %p118, %p119
    %p121 = scmp.le.s32.totalorder 1, %s9
    %p122 = scmp.lt.s32.totalorder %s9, 3
    %p123 = pnand %p121, %p122
    %p124 = pneg %p123
    // Predicated region
    $region9: #{decoder_forward.23} parent=5 // pred_check
      _
    $region10: #{decoder_forward.23} parent=5 // pred_check_branch
      %126 = sbr.rel (%p123) target = $region12
    $region11: #{decoder_forward.23} parent=5 // pred_region
      %s127 = ssub.s32 %s9, 1
    $region12: #{decoder_forward.23} parent=5 // pred_fallthru
      _
    %p128 = scmp.lt.s32.totalorder %s9, 2
    // Predicated region
    $region13: #{decoder_forward.23} parent=5 // pred_check
      %p129 = pneg %p128
    $region14: #{decoder_forward.23} parent=5 // pred_check_branch
      %131 = sbr.rel (%p129) target = $region16
    $region15: #{decoder_forward.23} parent=5 // pred_region
      // Predicated region
      $region17: #{decoder_forward.23} parent=15 // pred_check
        %p132 = pneg %p29
      $region18: #{decoder_forward.23} parent=15 // pred_check_branch
        %134 = sbr.rel (%p132) target = $region20
      $region19: #{decoder_forward.23} parent=15 // pred_region
        %p135 = scmp.lt.s32.totalorder %s9, 1
        %s136 = scalar_select %p135, %s9, 1
        %s137 = smul.addr %s136, 8
        %s138 = scalar_lea.vmem %s0, %s137
      $region20: #{decoder_forward.23} parent=15 // pred_fallthru
        _
      // Predicated region
      $region21: #{decoder_forward.23} parent=15 // pred_check
        %p139 = pneg %p55
      $region22: #{decoder_forward.23} parent=15 // pred_check_branch
        %141 = sbr.rel (%p139) target = $region24
      $region23: #{decoder_forward.23} parent=15 // pred_region
        %p142 = scmp.lt.s32.totalorder %s9, 1
        %s143 = scalar_select %p142, %s9, 1
        %s144 = smul.addr %s143, 8
        %s145 = scalar_lea.vmem %s1, %s144
      $region24: #{decoder_forward.23} parent=15 // pred_fallthru
        _
      // Predicated region
      $region25: #{decoder_forward.23} parent=15 // pred_check
        %p146 = pneg %p81
      $region26: #{decoder_forward.23} parent=15 // pred_check_branch
        %148 = sbr.rel (%p146) target = $region28
      $region27: #{decoder_forward.23} parent=15 // pred_region
        %p149 = scmp.lt.s32.totalorder %s9, 1
        %s150 = scalar_select %p149, %s9, 1
        %s151 = smul.addr %s150, 8
        %s152 = scalar_lea.vmem %s2, %s151
      $region28: #{decoder_forward.23} parent=15 // pred_fallthru
        _
    $region16: #{decoder_forward.23} parent=5 // pred_fallthru
      _
    %p153 = scmp.le.s32.totalorder 1, %s9
    %p154 = scmp.lt.s32.totalorder %s9, 3
    %p155 = pnand %p153, %p154
    %p156 = pneg %p155
    // Predicated region
    $region29: #{decoder_forward.23} parent=5 // pred_check
      _
    $region30: #{decoder_forward.23} parent=5 // pred_check_branch
      %158 = sbr.rel (%p155) target = $region32
    $region31: #{decoder_forward.23} parent=5 // pred_region
      %s159 = ssub.s32 %s9, 1
      %p160 = scmp.lt.s32.totalorder %s14, 1
      %s161 = scalar_select %p160, %s14, 1
      %s162 = smul.addr %s161, 8
      %s163 = scalar_lea.vmem %s0, %s162
      %p164 = pneg %p35
      %p165 = pneg %p32
      %p166 = scmp.lt.s32.totalorder %s14, 1
      %s167 = scalar_select %p166, %s14, 1
      %s168 = smul.addr %s167, 8
      %s169 = scalar_lea.vmem %s1, %s168
      %p170 = pneg %p61
      %p171 = pneg %p58
      %p172 = scmp.lt.s32.totalorder %s14, 1
      %s173 = scalar_select %p172, %s14, 1
      %s174 = smul.addr %s173, 8
      %s175 = scalar_lea.vmem %s2, %s174
      %p176 = pneg %p87
      %p177 = pneg %p84
      %p178 = pneg %p113
      %p179 = pneg %p110
      %p180 = scmp.lt.s32.totalorder %s14, 1
      %s181 = scalar_select %p180, %s14, 1
      %s182 = smul.addr %s181, 8
      %s183 = scalar_lea.vmem %s3, %s182
      %p184 = scmp.lt.s32.totalorder %s14, 1
      %s185 = scalar_select %p184, %s14, 1
      %s186 = smul.addr %s185, 8
      %s187 = scalar_lea.vmem %s0, %s186
      %p188 = scmp.lt.s32.totalorder %s14, 1
      %s189 = scalar_select %p188, %s14, 1
      %s190 = smul.addr %s189, 8
      %s191 = scalar_lea.vmem %s1, %s190
      %p192 = scmp.lt.s32.totalorder %s14, 1
      %s193 = scalar_select %p192, %s14, 1
      %s194 = smul.addr %s193, 8
      %s195 = scalar_lea.vmem %s2, %s194
      %p196 = scmp.lt.s32.totalorder %s14, 1
      %s197 = scalar_select %p196, %s14, 1
      %s198 = smul.addr %s197, 8
      %s199 = scalar_lea.vmem %s3, %s198
      %v201 = vld [vmem:[%s191] sm:$0xff]
      %v202 = vld [vmem:[%s187] sm:$0xff]
      %v203 = vld [vmem:[%s195] sm:$0xff]
      %v204 = vmul.f32 %v202, 0.25
      %v205 = vpack.c.bf16 %v204, %v204
      %v206 = vpack.c.bf16 %v201, %v201
      %vm207 = vcmask 130048
      %v209 = vsel %vm207, %v205, 0
      %v212 = vsel %vm207, %v206, 0
      %214 = vmatprep.subr.bf16.mxu0 0
      %215 = vmatpush1.bf16.xpose.msra.mxu0 %v212
      %216 = vmatprep.subr.bf16.mxu0 0
      %217 = vmatpush1.bf16.xpose.msra.mxu0 0
      %218 = vmatprep.subr.bf16.mxu0 0
      %219 = vmatpush1.bf16.xpose.msra.mxu0 0
      %220 = vmatprep.subr.bf16.mxu0 0
      %221 = vmatpush1.bf16.xpose.msra.mxu0 0
      %222 = vmatprep.subr.bf16.mxu0 0
      %223 = vmatpush1.bf16.xpose.msra.mxu0 0
      %224 = vmatprep.subr.bf16.mxu0 0
      %225 = vmatpush1.bf16.xpose.msra.mxu0 0
      %226 = vmatprep.subr.bf16.mxu0 0
      %227 = vmatpush1.bf16.xpose.msra.mxu0 0
      %228 = vmatprep.subr.bf16.mxu0 0
      %229 = vmatpush1.bf16.xpose.msra.mxu0 0
      %230 = vmatprep.subr.bf16.mxu0 0
      %231 = vmatpush1.bf16.xpose.msra.mxu0 0
      %232 = vmatprep.subr.bf16.mxu0 0
      %233 = vmatpush1.bf16.xpose.msra.mxu0 0
      %234 = vmatprep.subr.bf16.mxu0 0
      %235 = vmatpush1.bf16.xpose.msra.mxu0 0
      %236 = vmatprep.subr.bf16.mxu0 0
      %237 = vmatpush1.bf16.xpose.msra.mxu0 0
      %238 = vmatprep.subr.bf16.mxu0 0
      %239 = vmatpush1.bf16.xpose.msra.mxu0 0
      %240 = vmatprep.subr.bf16.mxu0 0
      %241 = vmatpush1.bf16.xpose.msra.mxu0 0
      %242 = vmatprep.subr.bf16.mxu0 0
      %243 = vmatpush1.bf16.xpose.msra.mxu0 0
      %244 = vmatprep.subr.bf16.mxu0 0
      %245 = vmatpush1.bf16.xpose.msra.mxu0 0
      %246 = vmatprep.mubr.bf16.mxu0 0
      %247 = vmatmul.mubr.bf16.gmra.mrb[0].mxu0 %v209
      %v248 = vpop.f32.mrb[0].mxu0
      %v249 = vadd.f32 %v203, %v248
      %v250 = vpop.f32.mrb[0].mxu0
      %v251 = vpop.f32.mrb[0].mxu0
      %v252 = vpop.f32.mrb[0].mxu0
      %253 = vdwg.mxu0
      %vm254 = vcmask 64512
      %v255 = vsel %vm254, %v249, -inf
      %256 = vmax.xlane.f32.xlu0 %v255
      %v257 = vpop.xlane.xlu0 %256
      %v258 = vsub.f32 %v249, %v257
      %v259 = vmul.f32 %v258, 1.442695
      %v260 = vpow.pop %v259
      %v261 = vsel %vm254, %v260, 0.0
      %262 = vadd.xlane.f32.xlu0 %v261
      %v263 = vpop.xlane.xlu0 %262
      %v264 = vrcp.pop %v263
      %v265 = vmul.f32 %v260, %v264
      %v266 = vpack.c.bf16 %v265, %v265
      %268 = vrot.lane.b32.xlu0 %v206, 96
      %v269 = vpop.permute.xlu0 %268
      %v271 = vsel %vm254, %v266, 0
      %vm273 = vcmask 1043456
      %v275 = vsel %vm273, %v269, 0
      %277 = vmatprep.subr.bf16.mxu0 0
      %278 = vmatpush1.bf16.msra.mxu0 %v275
      %279 = vmatprep.subr.bf16.mxu0 0
      %280 = vmatpush1.bf16.msra.mxu0 0
      %281 = vmatprep.subr.bf16.mxu0 0
      %282 = vmatpush1.bf16.msra.mxu0 0
      %283 = vmatprep.subr.bf16.mxu0 0
      %284 = vmatpush1.bf16.msra.mxu0 0
      %285 = vmatprep.subr.bf16.mxu0 0
      %286 = vmatpush1.bf16.msra.mxu0 0
      %287 = vmatprep.subr.bf16.mxu0 0
      %288 = vmatpush1.bf16.msra.mxu0 0
      %289 = vmatprep.subr.bf16.mxu0 0
      %290 = vmatpush1.bf16.msra.mxu0 0
      %291 = vmatprep.subr.bf16.mxu0 0
      %292 = vmatpush1.bf16.msra.mxu0 0
      %293 = vmatprep.subr.bf16.mxu0 0
      %294 = vmatpush1.bf16.msra.mxu0 0
      %295 = vmatprep.subr.bf16.mxu0 0
      %296 = vmatpush1.bf16.msra.mxu0 0
      %297 = vmatprep.subr.bf16.mxu0 0
      %298 = vmatpush1.bf16.msra.mxu0 0
      %299 = vmatprep.subr.bf16.mxu0 0
      %300 = vmatpush1.bf16.msra.mxu0 0
      %301 = vmatprep.subr.bf16.mxu0 0
      %302 = vmatpush1.bf16.msra.mxu0 0
      %303 = vmatprep.subr.bf16.mxu0 0
      %304 = vmatpush1.bf16.msra.mxu0 0
      %305 = vmatprep.subr.bf16.mxu0 0
      %306 = vmatpush1.bf16.msra.mxu0 0
      %307 = vmatprep.subr.bf16.mxu0 0
      %308 = vmatpush1.bf16.msra.mxu0 0
      %309 = vmatprep.mubr.bf16.mxu0 0
      %310 = vmatmul.mubr.bf16.gmra.mrb[0].mxu0 %v271
      %v311 = vpop.f32.mrb[0].mxu0
      %v312 = vadd.f32 0.0, %v311
      %v313 = vpop.f32.mrb[0].mxu0
      %v314 = vpop.f32.mrb[0].mxu0
      %v315 = vpop.f32.mrb[0].mxu0
      %316 = vdwg.mxu0
      %318 = vrot.lane.b32.xlu0 %v205, 112
      %v319 = vpop.permute.xlu0 %318
      %320 = vrot.lane.b32.xlu0 %v206, 112
      %v321 = vpop.permute.xlu0 %320
      %v323 = vsel %vm207, %v319, 0
      %v326 = vsel %vm207, %v321, 0
      %328 = vmatprep.subr.bf16.mxu0 0
      %329 = vmatpush1.bf16.xpose.msra.mxu0 %v326
      %330 = vmatprep.subr.bf16.mxu0 0
      %331 = vmatpush1.bf16.xpose.msra.mxu0 0
      %332 = vmatprep.subr.bf16.mxu0 0
      %333 = vmatpush1.bf16.xpose.msra.mxu0 0
      %334 = vmatprep.subr.bf16.mxu0 0
      %335 = vmatpush1.bf16.xpose.msra.mxu0 0
      %336 = vmatprep.subr.bf16.mxu0 0
      %337 = vmatpush1.bf16.xpose.msra.mxu0 0
      %338 = vmatprep.subr.bf16.mxu0 0
      %339 = vmatpush1.bf16.xpose.msra.mxu0 0
      %340 = vmatprep.subr.bf16.mxu0 0
      %341 = vmatpush1.bf16.xpose.msra.mxu0 0
      %342 = vmatprep.subr.bf16.mxu0 0
      %343 = vmatpush1.bf16.xpose.msra.mxu0 0
      %344 = vmatprep.subr.bf16.mxu0 0
      %345 = vmatpush1.bf16.xpose.msra.mxu0 0
      %346 = vmatprep.subr.bf16.mxu0 0
      %347 = vmatpush1.bf16.xpose.msra.mxu0 0
      %348 = vmatprep.subr.bf16.mxu0 0
      %349 = vmatpush1.bf16.xpose.msra.mxu0 0
      %350 = vmatprep.subr.bf16.mxu0 0
      %351 = vmatpush1.bf16.xpose.msra.mxu0 0
      %352 = vmatprep.subr.bf16.mxu0 0
      %353 = vmatpush1.bf16.xpose.msra.mxu0 0
      %354 = vmatprep.subr.bf16.mxu0 0
      %355 = vmatpush1.bf16.xpose.msra.mxu0 0
      %356 = vmatprep.subr.bf16.mxu0 0
      %357 = vmatpush1.bf16.xpose.msra.mxu0 0
      %358 = vmatprep.subr.bf16.mxu0 0
      %359 = vmatpush1.bf16.xpose.msra.mxu0 0
      %360 = vmatprep.mubr.bf16.mxu0 0
      %361 = vmatmul.mubr.bf16.gmra.mrb[0].mxu0 %v323
      %v362 = vpop.f32.mrb[0].mxu0
      %v363 = vadd.f32 %v203, %v362
      %v364 = vpop.f32.mrb[0].mxu0
      %v365 = vpop.f32.mrb[0].mxu0
      %v366 = vpop.f32.mrb[0].mxu0
      %367 = vdwg.mxu0
      %v368 = vsel %vm254, %v363, -inf
      %369 = vmax.xlane.f32.xlu0 %v368
      %v370 = vpop.xlane.xlu0 %369
      %v371 = vsub.f32 %v363, %v370
      %v372 = vmul.f32 %v371, 1.442695
      %v373 = vpow.pop %v372
      %v374 = vsel %vm254, %v373, 0.0
      %375 = vadd.xlane.f32.xlu0 %v374
      %v376 = vpop.xlane.xlu0 %375
      %v377 = vrcp.pop %v376
      %v378 = vmul.f32 %v373, %v377
      %v379 = vpack.c.bf16 %v378, %v378
      %380 = vrot.lane.b32.xlu0 %v206, 80
      %v381 = vpop.permute.xlu0 %380
      %v383 = vsel %vm254, %v379, 0
      %v386 = vsel %vm273, %v381, 0
      %388 = vmatprep.subr.bf16.mxu0 0
      %389 = vmatpush1.bf16.msra.mxu0 %v386
      %390 = vmatprep.subr.bf16.mxu0 0
      %391 = vmatpush1.bf16.msra.mxu0 0
      %392 = vmatprep.subr.bf16.mxu0 0
      %393 = vmatpush1.bf16.msra.mxu0 0
      %394 = vmatprep.subr.bf16.mxu0 0
      %395 = vmatpush1.bf16.msra.mxu0 0
      %396 = vmatprep.subr.bf16.mxu0 0
      %397 = vmatpush1.bf16.msra.mxu0 0
      %398 = vmatprep.subr.bf16.mxu0 0
      %399 = vmatpush1.bf16.msra.mxu0 0
      %400 = vmatprep.subr.bf16.mxu0 0
      %401 = vmatpush1.bf16.msra.mxu0 0
      %402 = vmatprep.subr.bf16.mxu0 0
      %403 = vmatpush1.bf16.msra.mxu0 0
      %404 = vmatprep.subr.bf16.mxu0 0
      %405 = vmatpush1.bf16.msra.mxu0 0
      %406 = vmatprep.subr.bf16.mxu0 0
      %407 = vmatpush1.bf16.msra.mxu0 0
      %408 = vmatprep.subr.bf16.mxu0 0
      %409 = vmatpush1.bf16.msra.mxu0 0
      %410 = vmatprep.subr.bf16.mxu0 0
      %411 = vmatpush1.bf16.msra.mxu0 0
      %412 = vmatprep.subr.bf16.mxu0 0
      %413 = vmatpush1.bf16.msra.mxu0 0
      %414 = vmatprep.subr.bf16.mxu0 0
      %415 = vmatpush1.bf16.msra.mxu0 0
      %416 = vmatprep.subr.bf16.mxu0 0
      %417 = vmatpush1.bf16.msra.mxu0 0
      %418 = vmatprep.subr.bf16.mxu0 0
      %419 = vmatpush1.bf16.msra.mxu0 0
      %420 = vmatprep.mubr.bf16.mxu0 0
      %421 = vmatmul.mubr.bf16.gmra.mrb[0].mxu0 %v383
      %v422 = vpop.f32.mrb[0].mxu0
      %v423 = vadd.f32 0.0, %v422
      %v424 = vpop.f32.mrb[0].mxu0
      %v425 = vpop.f32.mrb[0].mxu0
      %v426 = vpop.f32.mrb[0].mxu0
      %427 = vdwg.mxu0
      %429 = vrot.lane.b32.xlu0 %v423, 16
      %v430 = vpop.permute.xlu0 %429
      %v432 = vsel %vm207, %v312, %v430
      %vm433 = vcmask 261120
      %434 = vst.msk [vmem:[%s199] sm:$0xff] %vm433, %v432
      %p435 = scmp.lt.s32.totalorder %s14, 1
      %s436 = scalar_select %p435, %s14, 1
      %s437 = smul.addr %s436, 8
      %s438 = scalar_lea.vmem %s3, %s437
      // Predicated region
      $region33: #{decoder_forward.23} parent=31 // pred_check
        %p439 = pneg %p110
      $region34: #{decoder_forward.23} parent=31 // pred_check_branch
        %441 = sbr.rel (%p439) target = $region36
      $region35: #{decoder_forward.23} parent=31 // pred_region
        _
      $region36: #{decoder_forward.23} parent=31 // pred_fallthru
        _
    $region32: #{decoder_forward.23} parent=5 // pred_fallthru
      _
    %p442 = scmp.le.s32.totalorder 2, %s9
    // Predicated region
    $region37: #{decoder_forward.23} parent=5 // pred_check
      %p443 = pneg %p442
    $region38: #{decoder_forward.23} parent=5 // pred_check_branch
      %445 = sbr.rel (%p443) target = $region40
    $region39: #{decoder_forward.23} parent=5 // pred_region
      %s446 = ssub.s32 %s9, 2
      // Predicated region
      $region41: #{decoder_forward.23} parent=39 // pred_check
        %p447 = pneg %p116
      $region42: #{decoder_forward.23} parent=39 // pred_check_branch
        %449 = sbr.rel (%p447) target = $region44
      $region43: #{decoder_forward.23} parent=39 // pred_region
        %p450 = scmp.lt.s32.totalorder %s15, 1
        %s451 = scalar_select %p450, %s15, 1
        %s452 = smul.addr %s451, 8
        %s453 = scalar_lea.vmem %s3, %s452
      $region44: #{decoder_forward.23} parent=39 // pred_fallthru
        _
    $region40: #{decoder_forward.23} parent=5 // pred_fallthru
      _
  $region6: #{decoder_forward.23} parent=0 // loop_footer
    %s13 = sadd.s32 1, %s9
  $region7: #{decoder_forward.23} parent=0 // loop_footer_branch
    %8 = sbr.rel target = $region3
  $region8: #{decoder_forward.23} parent=0 // loop_exit
    _

// kernel: decoder_forward.25
$region0: #{decoder_forward.25}
  #allocation0 [shape = 'u32[]', space=smem, size = 0x4, offset = 0x4, fixed_abs, tag = 'smem constant byte address 0x4 - core index']
  #allocation1 [shape = 'u32[144,128]{1,0:T(1,128)}', space=vmem, size = 0x12000, scoped, tag = 'internal scratch']
  %s0 = inlined_call_operand.vmem [shape: f32[16,32], index: 0, kind: input, shape index: {}]
  %s1 = inlined_call_operand.vmem [shape: bf16[32,64], index: 1, kind: input, shape index: {}]
  %s2 = inlined_call_operand.vmem [shape: f32[1,64], index: 2, kind: input, shape index: {}]
  %s3 = inlined_call_operand.vmem [shape: bf16[64,32], index: 3, kind: input, shape index: {}]
  %s4 = inlined_call_operand.vmem [shape: f32[1,32], index: 4, kind: input, shape index: {}]
  %s5 = inlined_call_operand.vmem [shape: f32[1,32], index: 5, kind: input, shape index: {}]
  %s6 = inlined_call_operand.vmem [shape: f32[1,32], index: 6, kind: input, shape index: {}]
  %s7 = inlined_call_operand.vmem [shape: f32[16,32], index: 7, kind: output, shape index: {}]
  %s8 = sld [smem:[#allocation0]]
  $region38: #{decoder_forward.25} parent=0
    _
  %s10 = ssub.s32 1, %s8
  %s11 = scalar_select 0, %s10, %s8
  // Predicated region
  $region2: #{decoder_forward.25} parent=0 // pred_check
    _
  $region3: #{decoder_forward.25} parent=0 // pred_check_branch
    %13 = sbr.rel (0) target = $region5
  $region4: #{decoder_forward.25} parent=0 // pred_region
    _
  $region5: #{decoder_forward.25} parent=0 // pred_fallthru
    _
  // Predicated region
  $region6: #{decoder_forward.25} parent=0 // pred_check
    _
  $region7: #{decoder_forward.25} parent=0 // pred_check_branch
    %15 = sbr.rel (0) target = $region9
  $region8: #{decoder_forward.25} parent=0 // pred_region
    _
  $region9: #{decoder_forward.25} parent=0 // pred_fallthru
    _
  // Predicated region
  $region10: #{decoder_forward.25} parent=0 // pred_check
    _
  $region11: #{decoder_forward.25} parent=0 // pred_check_branch
    %17 = sbr.rel (0) target = $region13
  $region12: #{decoder_forward.25} parent=0 // pred_region
    _
  $region13: #{decoder_forward.25} parent=0 // pred_fallthru
    _
  // Predicated region
  $region14: #{decoder_forward.25} parent=0 // pred_check
    _
  $region15: #{decoder_forward.25} parent=0 // pred_check_branch
    %19 = sbr.rel (0) target = $region17
  $region16: #{decoder_forward.25} parent=0 // pred_region
    _
  $region17: #{decoder_forward.25} parent=0 // pred_fallthru
    _
  // Predicated region
  $region18: #{decoder_forward.25} parent=0 // pred_check
    _
  $region19: #{decoder_forward.25} parent=0 // pred_check_branch
    %21 = sbr.rel (0) target = $region21
  $region20: #{decoder_forward.25} parent=0 // pred_region
    _
  $region21: #{decoder_forward.25} parent=0 // pred_fallthru
    _
  // Predicated region
  $region22: #{decoder_forward.25} parent=0 // pred_check
    _
  $region23: #{decoder_forward.25} parent=0 // pred_check_branch
    %23 = sbr.rel (0) target = $region25
  $region24: #{decoder_forward.25} parent=0 // pred_region
    _
  $region25: #{decoder_forward.25} parent=0 // pred_fallthru
    _
  // Predicated region
  $region26: #{decoder_forward.25} parent=0 // pred_check
    _
  $region27: #{decoder_forward.25} parent=0 // pred_check_branch
    %25 = sbr.rel (0) target = $region29
  $region28: #{decoder_forward.25} parent=0 // pred_region
    _
  $region29: #{decoder_forward.25} parent=0 // pred_fallthru
    _
  %v27 = vld [vmem:[%s0] sm:$0xff]
  %v28 = vld [vmem:[%s0 + $0x8] sm:$0xff]
  %v29 = vpack.c.bf16 %v28, %v27
  %v30 = vld [vmem:[%s1] sm:$0xf]
  %v31 = vld [vmem:[%s1 + $0x4] sm:$0xf]
  %v32 = vld [vmem:[%s1 + $0x8] sm:$0xf]
  %v33 = vld [vmem:[%s1 + $0xc] sm:$0xf]
  %v34 = vld [vmem:[%s2] sm:$0x1]
  %v36 = vlaneseq
  %v37 = vshrl.u32 %v36, 7
  %v38 = vsub.s32 0, %v37
  %v39 = vrot.slane %v34, %v38
  %v45 = vunpack.c.l.b16 %v30
  %v46 = vunpack.c.l.b16 %v31
  %v47 = vunpack.c.l.b16 %v32
  %v48 = vunpack.c.l.b16 %v33
  %v49 = vpack.c.b16 %v46, %v45
  %v50 = vpack.c.b16 %v48, %v47
  %vm53 = vcmask 261120
  %v55 = vsel %vm53, %v29, 0
  %57 = vmatprep.subr.bf16.mxu0 0
  %58 = vmatpush1.bf16.msra.mxu0 %v49
  %59 = vmatprep.subr.bf16.mxu0 0
  %60 = vmatpush1.bf16.msra.mxu0 %v50
  %61 = vmatprep.subr.bf16.mxu0 0
  %62 = vmatpush1.bf16.msra.mxu0 0
  %63 = vmatprep.subr.bf16.mxu0 0
  %64 = vmatpush1.bf16.msra.mxu0 0
  %65 = vmatprep.subr.bf16.mxu0 0
  %66 = vmatpush1.bf16.msra.mxu0 0
  %67 = vmatprep.subr.bf16.mxu0 0
  %68 = vmatpush1.bf16.msra.mxu0 0
  %69 = vmatprep.subr.bf16.mxu0 0
  %70 = vmatpush1.bf16.msra.mxu0 0
  %71 = vmatprep.subr.bf16.mxu0 0
  %72 = vmatpush1.bf16.msra.mxu0 0
  %73 = vmatprep.subr.bf16.mxu0 0
  %74 = vmatpush1.bf16.msra.mxu0 0
  %75 = vmatprep.subr.bf16.mxu0 0
  %76 = vmatpush1.bf16.msra.mxu0 0
  %77 = vmatprep.subr.bf16.mxu0 0
  %78 = vmatpush1.bf16.msra.mxu0 0
  %79 = vmatprep.subr.bf16.mxu0 0
  %80 = vmatpush1.bf16.msra.mxu0 0
  %81 = vmatprep.subr.bf16.mxu0 0
  %82 = vmatpush1.bf16.msra.mxu0 0
  %83 = vmatprep.subr.bf16.mxu0 0
  %84 = vmatpush1.bf16.msra.mxu0 0
  %85 = vmatprep.subr.bf16.mxu0 0
  %86 = vmatpush1.bf16.msra.mxu0 0
  %87 = vmatprep.subr.bf16.mxu0 0
  %88 = vmatpush1.bf16.msra.mxu0 0
  %89 = vmatprep.mubr.bf16.mxu0 0
  %90 = vmatmul.mubr.bf16.gmra.mrb[0].mxu0 %v55
  %v91 = vpop.f32.mrb[0].mxu0
  %v92 = vadd.f32 %v39, %v91
  %v93 = vpop.f32.mrb[0].mxu0
  %v94 = vpop.f32.mrb[0].mxu0
  %v95 = vadd.f32 %v39, %v94
  %v96 = vpop.f32.mrb[0].mxu0
  %97 = vdwg.mxu0
  %v98 = vmax.f32 %v92, 0.0
  %v99 = vmax.f32 %v95, 0.0
  %v100 = vpack.c.bf16 %v99, %v98
  %v101 = vld [vmem:[%s3] sm:$0xf]
  %v102 = vld [vmem:[%s3 + $0x4] sm:$0xf]
  %v103 = vld [vmem:[%s3 + $0x8] sm:$0xf]
  %v104 = vld [vmem:[%s3 + $0xc] sm:$0xf]
  %v105 = vld [vmem:[%s3 + $0x10] sm:$0xf]
  %v106 = vld [vmem:[%s3 + $0x14] sm:$0xf]
  %v107 = vld [vmem:[%s3 + $0x18] sm:$0xf]
  %v108 = vld [vmem:[%s3 + $0x1c] sm:$0xf]
  %v109 = vld [vmem:[%s4] sm:$0x1]
  %v111 = vlaneseq
  %v112 = vshrl.u32 %v111, 7
  %v113 = vsub.s32 0, %v112
  %v114 = vrot.slane %v109, %v113
  %v124 = vunpack.c.l.b16 %v101
  %v125 = vunpack.c.l.b16 %v102
  %v126 = vunpack.c.l.b16 %v103
  %v127 = vunpack.c.l.b16 %v104
  %v128 = vunpack.c.l.b16 %v105
  %v129 = vunpack.c.l.b16 %v106
  %v130 = vunpack.c.l.b16 %v107
  %v131 = vunpack.c.l.b16 %v108
  %v132 = vpack.c.b16 %v125, %v124
  %v133 = vpack.c.b16 %v127, %v126
  %v134 = vpack.c.b16 %v129, %v128
  %v135 = vpack.c.b16 %v131, %v130
  %vm140 = vcmask 523264
  %v142 = vsel %vm140, %v100, 0
  %144 = vmatprep.subr.bf16.mxu0 0
  %145 = vmatpush1.bf16.msra.mxu0 %v132
  %146 = vmatprep.subr.bf16.mxu0 0
  %147 = vmatpush1.bf16.msra.mxu0 %v133
  %148 = vmatprep.subr.bf16.mxu0 0
  %149 = vmatpush1.bf16.msra.mxu0 %v134
  %150 = vmatprep.subr.bf16.mxu0 0
  %151 = vmatpush1.bf16.msra.mxu0 %v135
  %152 = vmatprep.subr.bf16.mxu0 0
  %153 = vmatpush1.bf16.msra.mxu0 0
  %154 = vmatprep.subr.bf16.mxu0 0
  %155 = vmatpush1.bf16.msra.mxu0 0
  %156 = vmatprep.subr.bf16.mxu0 0
  %157 = vmatpush1.bf16.msra.mxu0 0
  %158 = vmatprep.subr.bf16.mxu0 0
  %159 = vmatpush1.bf16.msra.mxu0 0
  %160 = vmatprep.subr.bf16.mxu0 0
  %161 = vmatpush1.bf16.msra.mxu0 0
  %162 = vmatprep.subr.bf16.mxu0 0
  %163 = vmatpush1.bf16.msra.mxu0 0
  %164 = vmatprep.subr.bf16.mxu0 0
  %165 = vmatpush1.bf16.msra.mxu0 0
  %166 = vmatprep.subr.bf16.mxu0 0
  %167 = vmatpush1.bf16.msra.mxu0 0
  %168 = vmatprep.subr.bf16.mxu0 0
  %169 = vmatpush1.bf16.msra.mxu0 0
  %170 = vmatprep.subr.bf16.mxu0 0
  %171 = vmatpush1.bf16.msra.mxu0 0
  %172 = vmatprep.subr.bf16.mxu0 0
  %173 = vmatpush1.bf16.msra.mxu0 0
  %174 = vmatprep.subr.bf16.mxu0 0
  %175 = vmatpush1.bf16.msra.mxu0 0
  %176 = vmatprep.mubr.bf16.mxu0 0
  %177 = vmatmul.mubr.bf16.gmra.mrb[0].mxu0 %v142
  %v178 = vpop.f32.mrb[0].mxu0
  %v179 = vadd.f32 %v114, %v178
  %v180 = vpop.f32.mrb[0].mxu0
  %v181 = vpop.f32.mrb[0].mxu0
  %v182 = vadd.f32 %v114, %v181
  %v183 = vpop.f32.mrb[0].mxu0
  %184 = vdwg.mxu0
  %v185 = vadd.f32 %v179, %v27
  %v186 = vadd.f32 %v182, %v28
  %v187 = vld [vmem:[%s5] sm:$0x1]
  %v188 = vld [vmem:[%s6] sm:$0x1]
  %v189 = vsel %vm53, %v185, 0.0
  %190 = vadd.xlane.f32.xlu0 %v189
  %v191 = vpop.xlane.xlu0 %190
  %v192 = vsel %vm53, %v186, 0.0
  %193 = vadd.xlane.f32.xlu0 %v192
  %v194 = vpop.xlane.xlu0 %193
  %v195 = vrcp.pop 32.0
  %v196 = vmul.f32 %v191, %v195
  %v197 = vmul.f32 %v194, %v195
  %v198 = vsub.f32 %v185, %v196
  %v199 = vsub.f32 %v186, %v197
  %v200 = vmul.f32 %v198, %v198
  %v201 = vmul.f32 %v199, %v199
  %v202 = vsel %vm53, %v200, 0.0
  %203 = vadd.xlane.f32.xlu0 %v202
  %v204 = vpop.xlane.xlu0 %203
  %v205 = vsel %vm53, %v201, 0.0
  %206 = vadd.xlane.f32.xlu0 %v205
  %v207 = vpop.xlane.xlu0 %206
  %v208 = vmul.f32 %v204, %v195
  %v209 = vmul.f32 %v207, %v195
  %v210 = vadd.f32 %v208, 1e-06
  %v211 = vadd.f32 %v209, 1e-06
  %v212 = vrsqrt.pop %v210
  %v213 = vrsqrt.pop %v211
  %v214 = vmul.f32 %v198, %v212
  %v215 = vmul.f32 %v199, %v213
  %v217 = vlaneseq
  %v218 = vshrl.u32 %v217, 7
  %v219 = vsub.s32 0, %v218
  %v220 = vrot.slane %v187, %v219
  %v222 = vmul.f32 %v214, %v220
  %v223 = vmul.f32 %v215, %v220
  %v225 = vlaneseq
  %v226 = vshrl.u32 %v225, 7
  %v227 = vsub.s32 0, %v226
  %v228 = vrot.slane %v188, %v227
  %v230 = vadd.f32 %v222, %v228
  %v231 = vadd.f32 %v223, %v228
  %232 = vst.msk [vmem:[%s7] sm:$0xff] %vm53, %v230
  %233 = vst.msk [vmem:[%s7 + $0x8] sm:$0xff] %vm53, %v231
  // Predicated region
  $region30: #{decoder_forward.25} parent=0 // pred_check
    _
  $region31: #{decoder_forward.25} parent=0 // pred_check_branch
    %235 = sbr.rel (0) target = $region33
  $region32: #{decoder_forward.25} parent=0 // pred_region
    _
  $region33: #{decoder_forward.25} parent=0 // pred_fallthru
    _
  // Predicated region
  $region34: #{decoder_forward.25} parent=0 // pred_check
    _
  $region35: #{decoder_forward.25} parent=0 // pred_check_branch
    %237 = sbr.rel (0) target = $region37
  $region36: #{decoder_forward.25} parent=0 // pred_region
    _
  $region37: #{decoder_forward.25} parent=0 // pred_fallthru
    _

// kernel: decoder_forward.33
$region0: #{decoder_forward.33}
  #allocation0 [shape = 'u32[]', space=smem, size = 0x4, offset = 0x4, fixed_abs, tag = 'smem constant byte address 0x4 - core index']
  #allocation1 [shape = 'u32[144,128]{1,0:T(1,128)}', space=vmem, size = 0x12000, scoped, tag = 'internal scratch']
  %s0 = inlined_call_operand.vmem [shape: f32[16,32], index: 0, kind: input, shape index: {}]
  %s1 = inlined_call_operand.vmem [shape: bf16[32,64], index: 1, kind: input, shape index: {}]
  %s2 = inlined_call_operand.vmem [shape: f32[1,64], index: 2, kind: input, shape index: {}]
  %s3 = inlined_call_operand.vmem [shape: bf16[64,32], index: 3, kind: input, shape index: {}]
  %s4 = inlined_call_operand.vmem [shape: f32[1,32], index: 4, kind: input, shape index: {}]
  %s5 = inlined_call_operand.vmem [shape: f32[1,32], index: 5, kind: input, shape index: {}]
  %s6 = inlined_call_operand.vmem [shape: f32[1,32], index: 6, kind: input, shape index: {}]
  %s7 = inlined_call_operand.hbm [shape: f32[16,32], index: 7, kind: output, shape index: {}]
  %s8 = sld [smem:[#allocation0]]
  $region38: #{decoder_forward.33} parent=0
    _
  %s10 = ssub.s32 1, %s8
  %s11 = scalar_select 0, %s10, %s8
  $region1: #{decoder_forward.33} parent=0
    #allocation2 [shape = 'u8[8192]{0}', space=vmem, size = 0x2000, scoped, tag = 'output window, operand 0, single buffered']
    #allocation3 [shape = 's32[1]{0}', space=sflag, size = 0x4, scoped, tag = 'scoped memory for decoder_forward.33']
    %12 = vsyncpa [#allocation3], 0
    // Predicated region
    $region2: #{decoder_forward.33} parent=1 // pred_check
      _
    $region3: #{decoder_forward.33} parent=1 // pred_check_branch
      %14 = sbr.rel (0) target = $region5
    $region4: #{decoder_forward.33} parent=1 // pred_region
      _
    $region5: #{decoder_forward.33} parent=1 // pred_fallthru
      _
    // Predicated region
    $region6: #{decoder_forward.33} parent=1 // pred_check
      _
    $region7: #{decoder_forward.33} parent=1 // pred_check_branch
      %16 = sbr.rel (0) target = $region9
    $region8: #{decoder_forward.33} parent=1 // pred_region
      _
    $region9: #{decoder_forward.33} parent=1 // pred_fallthru
      _
    // Predicated region
    $region10: #{decoder_forward.33} parent=1 // pred_check
      _
    $region11: #{decoder_forward.33} parent=1 // pred_check_branch
      %18 = sbr.rel (0) target = $region13
    $region12: #{decoder_forward.33} parent=1 // pred_region
      _
    $region13: #{decoder_forward.33} parent=1 // pred_fallthru
      _
    // Predicated region
    $region14: #{decoder_forward.33} parent=1 // pred_check
      _
    $region15: #{decoder_forward.33} parent=1 // pred_check_branch
      %20 = sbr.rel (0) target = $region17
    $region16: #{decoder_forward.33} parent=1 // pred_region
      _
    $region17: #{decoder_forward.33} parent=1 // pred_fallthru
      _
    // Predicated region
    $region18: #{decoder_forward.33} parent=1 // pred_check
      _
    $region19: #{decoder_forward.33} parent=1 // pred_check_branch
      %22 = sbr.rel (0) target = $region21
    $region20: #{decoder_forward.33} parent=1 // pred_region
      _
    $region21: #{decoder_forward.33} parent=1 // pred_fallthru
      _
    // Predicated region
    $region22: #{decoder_forward.33} parent=1 // pred_check
      _
    $region23: #{decoder_forward.33} parent=1 // pred_check_branch
      %24 = sbr.rel (0) target = $region25
    $region24: #{decoder_forward.33} parent=1 // pred_region
      _
    $region25: #{decoder_forward.33} parent=1 // pred_fallthru
      _
    // Predicated region
    $region26: #{decoder_forward.33} parent=1 // pred_check
      _
    $region27: #{decoder_forward.33} parent=1 // pred_check_branch
      %26 = sbr.rel (0) target = $region29
    $region28: #{decoder_forward.33} parent=1 // pred_region
      _
    $region29: #{decoder_forward.33} parent=1 // pred_fallthru
      _
    %v28 = vld [vmem:[%s0] sm:$0xff]
    %v29 = vld [vmem:[%s0 + $0x8] sm:$0xff]
    %v30 = vpack.c.bf16 %v29, %v28
    %v31 = vld [vmem:[%s1] sm:$0xf]
    %v32 = vld [vmem:[%s1 + $0x4] sm:$0xf]
    %v33 = vld [vmem:[%s1 + $0x8] sm:$0xf]
    %v34 = vld [vmem:[%s1 + $0xc] sm:$0xf]
    %v35 = vld [vmem:[%s2] sm:$0x1]
    %v37 = vlaneseq
    %v38 = vshrl.u32 %v37, 7
    %v39 = vsub.s32 0, %v38
    %v40 = vrot.slane %v35, %v39
    %v46 = vunpack.c.l.b16 %v31
    %v47 = vunpack.c.l.b16 %v32
    %v48 = vunpack.c.l.b16 %v33
    %v49 = vunpack.c.l.b16 %v34
    %v50 = vpack.c.b16 %v47, %v46
    %v51 = vpack.c.b16 %v49, %v48
    %vm54 = vcmask 261120
    %v56 = vsel %vm54, %v30, 0
    %58 = vmatprep.subr.bf16.mxu0 0
    %59 = vmatpush1.bf16.msra.mxu0 %v50
    %60 = vmatprep.subr.bf16.mxu0 0
    %61 = vmatpush1.bf16.msra.mxu0 %v51
    %62 = vmatprep.subr.bf16.mxu0 0
    %63 = vmatpush1.bf16.msra.mxu0 0
    %64 = vmatprep.subr.bf16.mxu0 0
    %65 = vmatpush1.bf16.msra.mxu0 0
    %66 = vmatprep.subr.bf16.mxu0 0
    %67 = vmatpush1.bf16.msra.mxu0 0
    %68 = vmatprep.subr.bf16.mxu0 0
    %69 = vmatpush1.bf16.msra.mxu0 0
    %70 = vmatprep.subr.bf16.mxu0 0
    %71 = vmatpush1.bf16.msra.mxu0 0
    %72 = vmatprep.subr.bf16.mxu0 0
    %73 = vmatpush1.bf16.msra.mxu0 0
    %74 = vmatprep.subr.bf16.mxu0 0
    %75 = vmatpush1.bf16.msra.mxu0 0
    %76 = vmatprep.subr.bf16.mxu0 0
    %77 = vmatpush1.bf16.msra.mxu0 0
    %78 = vmatprep.subr.bf16.mxu0 0
    %79 = vmatpush1.bf16.msra.mxu0 0
    %80 = vmatprep.subr.bf16.mxu0 0
    %81 = vmatpush1.bf16.msra.mxu0 0
    %82 = vmatprep.subr.bf16.mxu0 0
    %83 = vmatpush1.bf16.msra.mxu0 0
    %84 = vmatprep.subr.bf16.mxu0 0
    %85 = vmatpush1.bf16.msra.mxu0 0
    %86 = vmatprep.subr.bf16.mxu0 0
    %87 = vmatpush1.bf16.msra.mxu0 0
    %88 = vmatprep.subr.bf16.mxu0 0
    %89 = vmatpush1.bf16.msra.mxu0 0
    %90 = vmatprep.mubr.bf16.mxu0 0
    %91 = vmatmul.mubr.bf16.gmra.mrb[0].mxu0 %v56
    %v92 = vpop.f32.mrb[0].mxu0
    %v93 = vadd.f32 %v40, %v92
    %v94 = vpop.f32.mrb[0].mxu0
    %v95 = vpop.f32.mrb[0].mxu0
    %v96 = vadd.f32 %v40, %v95
    %v97 = vpop.f32.mrb[0].mxu0
    %98 = vdwg.mxu0
    %v99 = vmax.f32 %v93, 0.0
    %v100 = vmax.f32 %v96, 0.0
    %v101 = vpack.c.bf16 %v100, %v99
    %v102 = vld [vmem:[%s3] sm:$0xf]
    %v103 = vld [vmem:[%s3 + $0x4] sm:$0xf]
    %v104 = vld [vmem:[%s3 + $0x8] sm:$0xf]
    %v105 = vld [vmem:[%s3 + $0xc] sm:$0xf]
    %v106 = vld [vmem:[%s3 + $0x10] sm:$0xf]
    %v107 = vld [vmem:[%s3 + $0x14] sm:$0xf]
    %v108 = vld [vmem:[%s3 + $0x18] sm:$0xf]
    %v109 = vld [vmem:[%s3 + $0x1c] sm:$0xf]
    %v110 = vld [vmem:[%s4] sm:$0x1]
    %v112 = vlaneseq
    %v113 = vshrl.u32 %v112, 7
    %v114 = vsub.s32 0, %v113
    %v115 = vrot.slane %v110, %v114
    %v125 = vunpack.c.l.b16 %v102
    %v126 = vunpack.c.l.b16 %v103
    %v127 = vunpack.c.l.b16 %v104
    %v128 = vunpack.c.l.b16 %v105
    %v129 = vunpack.c.l.b16 %v106
    %v130 = vunpack.c.l.b16 %v107
    %v131 = vunpack.c.l.b16 %v108
    %v132 = vunpack.c.l.b16 %v109
    %v133 = vpack.c.b16 %v126, %v125
    %v134 = vpack.c.b16 %v128, %v127
    %v135 = vpack.c.b16 %v130, %v129
    %v136 = vpack.c.b16 %v132, %v131
    %vm141 = vcmask 523264
    %v143 = vsel %vm141, %v101, 0
    %145 = vmatprep.subr.bf16.mxu0 0
    %146 = vmatpush1.bf16.msra.mxu0 %v133
    %147 = vmatprep.subr.bf16.mxu0 0
    %148 = vmatpush1.bf16.msra.mxu0 %v134
    %149 = vmatprep.subr.bf16.mxu0 0
    %150 = vmatpush1.bf16.msra.mxu0 %v135
    %151 = vmatprep.subr.bf16.mxu0 0
    %152 = vmatpush1.bf16.msra.mxu0 %v136
    %153 = vmatprep.subr.bf16.mxu0 0
    %154 = vmatpush1.bf16.msra.mxu0 0
    %155 = vmatprep.subr.bf16.mxu0 0
    %156 = vmatpush1.bf16.msra.mxu0 0
    %157 = vmatprep.subr.bf16.mxu0 0
    %158 = vmatpush1.bf16.msra.mxu0 0
    %159 = vmatprep.subr.bf16.mxu0 0
    %160 = vmatpush1.bf16.msra.mxu0 0
    %161 = vmatprep.subr.bf16.mxu0 0
    %162 = vmatpush1.bf16.msra.mxu0 0
    %163 = vmatprep.subr.bf16.mxu0 0
    %164 = vmatpush1.bf16.msra.mxu0 0
    %165 = vmatprep.subr.bf16.mxu0 0
    %166 = vmatpush1.bf16.msra.mxu0 0
    %167 = vmatprep.subr.bf16.mxu0 0
    %168 = vmatpush1.bf16.msra.mxu0 0
    %169 = vmatprep.subr.bf16.mxu0 0
    %170 = vmatpush1.bf16.msra.mxu0 0
    %171 = vmatprep.subr.bf16.mxu0 0
    %172 = vmatpush1.bf16.msra.mxu0 0
    %173 = vmatprep.subr.bf16.mxu0 0
    %174 = vmatpush1.bf16.msra.mxu0 0
    %175 = vmatprep.subr.bf16.mxu0 0
    %176 = vmatpush1.bf16.msra.mxu0 0
    %177 = vmatprep.mubr.bf16.mxu0 0
    %178 = vmatmul.mubr.bf16.gmra.mrb[0].mxu0 %v143
    %v179 = vpop.f32.mrb[0].mxu0
    %v180 = vadd.f32 %v115, %v179
    %v181 = vpop.f32.mrb[0].mxu0
    %v182 = vpop.f32.mrb[0].mxu0
    %v183 = vadd.f32 %v115, %v182
    %v184 = vpop.f32.mrb[0].mxu0
    %185 = vdwg.mxu0
    %v186 = vadd.f32 %v180, %v28
    %v187 = vadd.f32 %v183, %v29
    %v188 = vld [vmem:[%s5] sm:$0x1]
    %v189 = vld [vmem:[%s6] sm:$0x1]
    %v190 = vsel %vm54, %v186, 0.0
    %191 = vadd.xlane.f32.xlu0 %v190
    %v192 = vpop.xlane.xlu0 %191
    %v193 = vsel %vm54, %v187, 0.0
    %194 = vadd.xlane.f32.xlu0 %v193
    %v195 = vpop.xlane.xlu0 %194
    %v196 = vrcp.pop 32.0
    %v197 = vmul.f32 %v192, %v196
    %v198 = vmul.f32 %v195, %v196
    %v199 = vsub.f32 %v186, %v197
    %v200 = vsub.f32 %v187, %v198
    %v201 = vmul.f32 %v199, %v199
    %v202 = vmul.f32 %v200, %v200
    %v203 = vsel %vm54, %v201, 0.0
    %204 = vadd.xlane.f32.xlu0 %v203
    %v205 = vpop.xlane.xlu0 %204
    %v206 = vsel %vm54, %v202, 0.0
    %207 = vadd.xlane.f32.xlu0 %v206
    %v208 = vpop.xlane.xlu0 %207
    %v209 = vmul.f32 %v205, %v196
    %v210 = vmul.f32 %v208, %v196
    %v211 = vadd.f32 %v209, 1e-06
    %v212 = vadd.f32 %v210, 1e-06
    %v213 = vrsqrt.pop %v211
    %v214 = vrsqrt.pop %v212
    %v215 = vmul.f32 %v199, %v213
    %v216 = vmul.f32 %v200, %v214
    %v218 = vlaneseq
    %v219 = vshrl.u32 %v218, 7
    %v220 = vsub.s32 0, %v219
    %v221 = vrot.slane %v188, %v220
    %v223 = vmul.f32 %v215, %v221
    %v224 = vmul.f32 %v216, %v221
    %v226 = vlaneseq
    %v227 = vshrl.u32 %v226, 7
    %v228 = vsub.s32 0, %v227
    %v229 = vrot.slane %v189, %v228
    %v231 = vadd.f32 %v223, %v229
    %v232 = vadd.f32 %v224, %v229
    %233 = vst.msk [vmem:[#allocation2] sm:$0xff] %vm54, %v231
    %234 = vst.msk [vmem:[#allocation2 + $0x8] sm:$0xff] %vm54, %v232
    // Predicated region
    $region30: #{decoder_forward.33} parent=1 // pred_check
      _
    $region31: #{decoder_forward.33} parent=1 // pred_check_branch
      %236 = sbr.rel (0) target = $region33
    $region32: #{decoder_forward.33} parent=1 // pred_region
      %s238 = ssub.s32 256, 256
      %239 = vsyncadd [#allocation3], %s238
      %s240 = sshll.u32 [#allocation2], 4
      %s241 = int_to_ptr.vmem [resolvable:$true] %s240
      %246 = dma.vmem_to_hbm [thread:$0]  %s241, 256, %s7, [#allocation3], 128, 128, 8
    $region33: #{decoder_forward.33} parent=1 // pred_fallthru
      _
    // Predicated region
    $region34: #{decoder_forward.33} parent=1 // pred_check
      _
    $region35: #{decoder_forward.33} parent=1 // pred_check_branch
      %248 = sbr.rel (0) target = $region37
    $region36: #{decoder_forward.33} parent=1 // pred_region
      %249 = dma.done [#allocation3], 256
    $region37: #{decoder_forward.33} parent=1 // pred_fallthru
      _
    %250 = vsyncpa [#allocation3], 1

</llo_original>
